<compile_context>
chip_gen: v6e
topology: v6e:2x2x1
jax: 0.10.0
libtpu: 0.0.40
codegen_flags: <defaults>
</compile_context>

<pallas_src>
import numpy as np
import jax
import jax.numpy as jnp
from jax.experimental import pallas as pl
from jax.experimental.pallas import tpu as pltpu


# --------------------------------------------------------------------------
# Encoder: per-NIRS-channel LSTM (input_size = 1), full recurrence in-kernel.
# --------------------------------------------------------------------------
def encoder_lstm_kernel(x_ref, w_ih_ref, w_hh_ref, b_ref, hs_ref):
    # x_ref : (T, N, 1)     N = batch * nirs_channels
    # w_ih  : (1, 4H)   w_hh : (H, 4H)   b : (1, 4H)
    # hs_ref: (T, N, H)
    T, N, _ = x_ref.shape
    H = w_hh_ref.shape[0]

    # Hoist the input contribution + bias out of the serial recurrence.
    ig = x_ref[...] * w_ih_ref[...] + b_ref[...]           # (T, N, 4H)
    w_hh = w_hh_ref[...]

    h = jnp.zeros((N, H), jnp.float32)
    c = jnp.zeros((N, H), jnp.float32)
    for t in range(T):                                     # static -> fully unrolled
        gates = ig[t] + jnp.dot(h, w_hh, preferred_element_type=jnp.float32)
        i = jax.nn.sigmoid(gates[:, 0 * H:1 * H])
        f = jax.nn.sigmoid(gates[:, 1 * H:2 * H])
        g = jnp.tanh(gates[:, 2 * H:3 * H])
        o = jax.nn.sigmoid(gates[:, 3 * H:4 * H])
        c = f * c + i * g
        h = o * jnp.tanh(c)
        hs_ref[t] = h


def run_encoder(nirs_inputs, enc_params):
    # nirs_inputs: (B, C, T)  ->  encoder_outputs (B, C*T, H_enc)
    B, C, T = nirs_inputs.shape
    N = B * C
    H = enc_params["w_hh"].shape[0]
    x_tm = jnp.transpose(nirs_inputs, (2, 0, 1)).reshape(T, N, 1)

    vmem = pl.BlockSpec(memory_space=pltpu.MemorySpace.VMEM)
    hs = pl.pallas_call(
        encoder_lstm_kernel,
        out_shape=jax.ShapeDtypeStruct((T, N, H), jnp.float32),
        in_specs=[vmem] * 4,
        out_specs=vmem,
    )(x_tm, enc_params["w_ih"], enc_params["w_hh"], enc_params["b"])

    # (T, N, H) -> (B, C, T, H) -> (B, C*T, H).  Tiny; stays inside the jit.
    return jnp.transpose(hs, (1, 0, 2)).reshape(B, C, T, H).reshape(B, C * T, H)


# --------------------------------------------------------------------------
# Decoder: whole time loop fused into one kernel.  Spatial (distance-biased)
# attention + LSTM cell (single fused gate matmul) + output projection.
# --------------------------------------------------------------------------
def decoder_seq_kernel(tf_ref, eeg_ref, enc_ref, dist_ref,
                       w_att_ref, w_g_ref, b_g_ref, w_o_ref, b_o_ref,
                       out_ref):
    # tf_ref : (Te,)  SMEM   teacher-forcing mask (1.0 = use teacher input)
    # eeg_ref: (Te, B, E)    teacher inputs, time-major
    # enc_ref: (B, L, He)    encoder outputs, resident in VMEM for whole call
    # dist   : (B, L)        distance bias on attention logits
    # w_att  : (Hd, He)
    # w_g    : (E+He+Hd, 4Hd)   concat([w_ix, w_ic, w_hh], axis=0)
    # b_g    : (1, 4Hd)
    # w_o    : (Hd+He, E)       concat([w_oh, w_oc], axis=0)
    # b_o    : (1, E)
    # out_ref: (Te, B, E)
    Te, B, E = eeg_ref.shape
    Hd = w_att_ref.shape[0]

    enc = enc_ref[...]
    dist = dist_ref[...]
    w_att = w_att_ref[...]
    w_g = w_g_ref[...]
    b_g = b_g_ref[...]
    w_o = w_o_ref[...]
    b_o = b_o_ref[...]

    out_ref[0] = jnp.zeros((B, E), jnp.float32)        # outputs[:, 0, :] stays zero

    h = jnp.zeros((B, Hd), jnp.float32)
    c = jnp.zeros((B, Hd), jnp.float32)
    inp = eeg_ref[0]                                   # first decoder input

    for t in range(1, Te):                             # static -> fully unrolled
        # ---- spatial attention ------------------------------------------
        # TODO(synk): decoder source not provided; distance_matrix_expanded is
        # modeled as an additive bias on the attention logits.
        query = jnp.dot(h, w_att, preferred_element_type=jnp.float32)     # (B, He)
        scores = jnp.sum(enc * query[:, None, :], axis=-1) + dist         # (B, L)
        scores = scores - jnp.max(scores, axis=-1, keepdims=True)
        e = jnp.exp(scores)
        attn = e * pl.reciprocal(jnp.sum(e, axis=-1, keepdims=True), approx=True)
        context = jnp.sum(attn[:, :, None] * enc, axis=1)                 # (B, He)

        # ---- LSTM cell: single fused gate matmul --------------------------
        xcat = jnp.concatenate([inp, context, h], axis=-1)                # (B, E+He+Hd)
        gates = jnp.dot(xcat, w_g, preferred_element_type=jnp.float32) + b_g
        i = jax.nn.sigmoid(gates[:, 0 * Hd:1 * Hd])
        f = jax.nn.sigmoid(gates[:, 1 * Hd:2 * Hd])
        g = jnp.tanh(gates[:, 2 * Hd:3 * Hd])
        o = jax.nn.sigmoid(gates[:, 3 * Hd:4 * Hd])
        c = f * c + i * g
        h = o * jnp.tanh(c)

        # ---- fused output projection --------------------------------------
        out = jnp.dot(jnp.concatenate([h, context], axis=-1), w_o,
                      preferred_element_type=jnp.float32) + b_o           # (B, E)
        out_ref[t] = out

        # ---- teacher forcing select (mask sampled on the host) ------------
        m = tf_ref[t]
        inp = m * eeg_ref[t] + (1.0 - m) * out


def run_decoder_seq(eeg_targets, encoder_outputs, dist, tf_mask, dec_params):
    B, Te, E = eeg_targets.shape
    eeg_tm = jnp.transpose(eeg_targets, (1, 0, 2))          # (Te, B, E)

    # Fold the three gate matmuls / two output matmuls into single matrices.
    w_g = jnp.concatenate(
        [dec_params["w_ix"], dec_params["w_ic"], dec_params["w_hh"]], axis=0)
    w_o = jnp.concatenate([dec_params["w_oh"], dec_params["w_oc"]], axis=0)

    vmem = pl.BlockSpec(memory_space=pltpu.MemorySpace.VMEM)
    smem = pl.BlockSpec(memory_space=pltpu.MemorySpace.SMEM)

    out_tm = pl.pallas_call(
        decoder_seq_kernel,
        out_shape=jax.ShapeDtypeStruct((Te, B, E), jnp.float32),
        in_specs=[smem] + [vmem] * 8,
        out_specs=vmem,
    )(tf_mask, eeg_tm, encoder_outputs, dist,
      dec_params["w_att"], w_g, dec_params["b"], w_o, dec_params["b_out"])

    return jnp.transpose(out_tm, (1, 0, 2))                  # (B, Te, E)


# --------------------------------------------------------------------------
# Seq2Seq forward (single jit; only teacher-forcing coin flips stay on host).
# --------------------------------------------------------------------------
@jax.jit
def _seq2seq_forward_jit(params, nirs_inputs, eeg_targets, dist, tf_mask):
    encoder_outputs = run_encoder(nirs_inputs, params["enc"])      # (B, C*T, He)
    return run_decoder_seq(eeg_targets, encoder_outputs, dist, tf_mask,
                           params["dec"])                          # (B, Te, E)


def seq2seq_forward(params, nirs_inputs, eeg_targets, distance_matrix_expanded,
                    teacher_forcing_ratio=0.5, np_seed=0):
    Te = eeg_targets.shape[1]
    # Host-side numpy per-step coin flips, mirroring the PyTorch loop; the
    # decision for t=0 is never used (outputs[:, 0, :] stays zero).
    rng = np.random.RandomState(np_seed)
    draws = rng.random_sample(max(Te - 1, 0)) < teacher_forcing_ratio
    tf_mask = jnp.asarray(
        np.concatenate([[True], draws]).astype(np.float32)[:Te])
    return _seq2seq_forward_jit(params, nirs_inputs, eeg_targets,
                                jnp.asarray(distance_matrix_expanded), tf_mask)


# --------------------------------------------------------------------------
# Deterministic parameter init.
# --------------------------------------------------------------------------
def init_params(key, H_enc, H_dec, eeg_channels):
    ks = jax.random.split(key, 12)
    s = 0.1
    enc = {
        "w_ih": s * jax.random.normal(ks[0], (1, 4 * H_enc), jnp.float32),
        "w_hh": s * jax.random.normal(ks[1], (H_enc, 4 * H_enc), jnp.float32),
        "b":    s * jax.random.normal(ks[2], (1, 4 * H_enc), jnp.float32),
    }
    dec = {
        "w_att": s * jax.random.normal(ks[3], (H_dec, H_enc), jnp.float32),
        "w_ix":  s * jax.random.normal(ks[4], (eeg_channels, 4 * H_dec), jnp.float32),
        "w_ic":  s * jax.random.normal(ks[5], (H_enc, 4 * H_dec), jnp.float32),
        "w_hh":  s * jax.random.normal(ks[6], (H_dec, 4 * H_dec), jnp.float32),
        "b":     s * jax.random.normal(ks[7], (1, 4 * H_dec), jnp.float32),
        "w_oh":  s * jax.random.normal(ks[8], (H_dec, eeg_channels), jnp.float32),
        "w_oc":  s * jax.random.normal(ks[9], (H_enc, eeg_channels), jnp.float32),
        "b_out": s * jax.random.normal(ks[10], (1, eeg_channels), jnp.float32),
    }
    return {"enc": enc, "dec": dec}


if __name__ == "__main__":
    B, C_nirs, T_nirs = 2, 4, 8          # batch, NIRS channels, NIRS seq len
    H_enc, H_dec = 32, 32                # encoder / decoder hidden sizes
    T_eeg, E = 8, 8                      # EEG seq len, EEG channels
    L = C_nirs * T_nirs                  # attention length

    key = jax.random.PRNGKey(0)
    k_p, k_x, k_y, k_d = jax.random.split(key, 4)

    params = init_params(k_p, H_enc, H_dec, E)
    nirs_inputs = jax.random.normal(k_x, (B, C_nirs, T_nirs), jnp.float32)
    eeg_targets = jax.random.normal(k_y, (B, T_eeg, E), jnp.float32)
    distance_matrix_expanded = jax.random.uniform(k_d, (B, L), jnp.float32)

    out = seq2seq_forward(params, nirs_inputs, eeg_targets,
                          distance_matrix_expanded,
                          teacher_forcing_ratio=0.5, np_seed=0)
    out = jax.block_until_ready(out)
    assert out.shape == (B, T_eeg, E)
    assert bool(jnp.all(jnp.isfinite(out)))
    print("KERNEL_OK")
</pallas_src>

<mosaic_0001>
module attributes {stable_mosaic.version = 11 : i64} {
  func.func @encoder_lstm_kernel(%arg0: memref<8x8x1xf32, #tpu.memory_space<vmem>>, %arg1: memref<1x128xf32, #tpu.memory_space<vmem>>, %arg2: memref<32x128xf32, #tpu.memory_space<vmem>>, %arg3: memref<1x128xf32, #tpu.memory_space<vmem>>, %arg4: memref<8x8x32xf32, #tpu.memory_space<vmem>>) attributes {dimension_semantics = [], scalar_prefetch = 0 : i64, scratch_operands = 0 : i64, tpu.core_type = #tpu.core_type<tc>} {
    %c0 = arith.constant 0 : index
    %c0_0 = arith.constant 0 : index
    %c0_1 = arith.constant 0 : index
    %0 = vector.load %arg0[%c0, %c0_0, %c0_1] : memref<8x8x1xf32, #tpu.memory_space<vmem>>, vector<8x8x1xf32>
    %c0_2 = arith.constant 0 : index
    %c0_3 = arith.constant 0 : index
    %1 = vector.load %arg1[%c0_2, %c0_3] : memref<1x128xf32, #tpu.memory_space<vmem>>, vector<1x128xf32>
    %2 = vector.shape_cast %1 : vector<1x128xf32> to vector<1x1x128xf32>
    %3 = vector.broadcast %0 : vector<8x8x1xf32> to vector<8x8x128xf32>
    %4 = vector.broadcast %2 : vector<1x1x128xf32> to vector<8x8x128xf32>
    %5 = arith.mulf %3, %4 : vector<8x8x128xf32>
    %c0_4 = arith.constant 0 : index
    %c0_5 = arith.constant 0 : index
    %6 = vector.load %arg3[%c0_4, %c0_5] : memref<1x128xf32, #tpu.memory_space<vmem>>, vector<1x128xf32>
    %7 = vector.shape_cast %6 : vector<1x128xf32> to vector<1x1x128xf32>
    %8 = vector.broadcast %7 : vector<1x1x128xf32> to vector<8x8x128xf32>
    %9 = arith.addf %5, %8 : vector<8x8x128xf32>
    %c0_6 = arith.constant 0 : index
    %c0_7 = arith.constant 0 : index
    %10 = vector.load %arg2[%c0_6, %c0_7] : memref<32x128xf32, #tpu.memory_space<vmem>>, vector<32x128xf32>
    %cst = arith.constant 0.000000e+00 : f32
    %11 = vector.broadcast %cst : f32 to vector<8x32xf32>
    %cst_8 = arith.constant 0.000000e+00 : f32
    %12 = vector.broadcast %cst_8 : f32 to vector<8x32xf32>
    %13 = vector.extract_strided_slice %9 {offsets = [0, 0, 0], sizes = [1, 8, 128], strides = [1, 1, 1]} : vector<8x8x128xf32> to vector<1x8x128xf32>
    %14 = vector.shape_cast %13 : vector<1x8x128xf32> to vector<8x128xf32>
    %cst_9 = arith.constant dense<0.000000e+00> : vector<8x128xf32>
    %15 = tpu.matmul %11, %10, %cst_9 {dimension_numbers = #tpu.dot_dimension_numbers<[1], [0], [0], [1], [0, 0, 1, 1], [], []>} : vector<8x32xf32>, vector<32x128xf32>, vector<8x128xf32> -> vector<8x128xf32>
    %16 = arith.addf %14, %15 : vector<8x128xf32>
    %17 = vector.extract_strided_slice %16 {offsets = [0, 0], sizes = [8, 32], strides = [1, 1]} : vector<8x128xf32> to vector<8x32xf32>
    %18 = arith.negf %17 : vector<8x32xf32>
    %19 = math.exp %18 : vector<8x32xf32>
    %cst_10 = arith.constant 1.000000e+00 : f32
    %20 = vector.broadcast %cst_10 : f32 to vector<8x32xf32>
    %21 = arith.addf %20, %19 : vector<8x32xf32>
    %22 = arith.divf %20, %21 : vector<8x32xf32>
    %23 = vector.extract_strided_slice %16 {offsets = [0, 32], sizes = [8, 32], strides = [1, 1]} : vector<8x128xf32> to vector<8x32xf32>
    %24 = arith.negf %23 : vector<8x32xf32>
    %25 = math.exp %24 : vector<8x32xf32>
    %cst_11 = arith.constant 1.000000e+00 : f32
    %26 = vector.broadcast %cst_11 : f32 to vector<8x32xf32>
    %27 = arith.addf %26, %25 : vector<8x32xf32>
    %28 = arith.divf %26, %27 : vector<8x32xf32>
    %29 = vector.extract_strided_slice %16 {offsets = [0, 64], sizes = [8, 32], strides = [1, 1]} : vector<8x128xf32> to vector<8x32xf32>
    %30 = math.tanh %29 : vector<8x32xf32>
    %31 = vector.extract_strided_slice %16 {offsets = [0, 96], sizes = [8, 32], strides = [1, 1]} : vector<8x128xf32> to vector<8x32xf32>
    %32 = arith.negf %31 : vector<8x32xf32>
    %33 = math.exp %32 : vector<8x32xf32>
    %cst_12 = arith.constant 1.000000e+00 : f32
    %34 = vector.broadcast %cst_12 : f32 to vector<8x32xf32>
    %35 = arith.addf %34, %33 : vector<8x32xf32>
    %36 = arith.divf %34, %35 : vector<8x32xf32>
    %37 = arith.mulf %28, %12 : vector<8x32xf32>
    %38 = arith.mulf %22, %30 : vector<8x32xf32>
    %39 = arith.addf %37, %38 : vector<8x32xf32>
    %40 = math.tanh %39 : vector<8x32xf32>
    %41 = arith.mulf %36, %40 : vector<8x32xf32>
    %c0_13 = arith.constant 0 : index
    %c0_14 = arith.constant 0 : index
    %c0_15 = arith.constant 0 : index
    %42 = vector.load %arg4[%c0_13, %c0_14, %c0_15] : memref<8x8x32xf32, #tpu.memory_space<vmem>>, vector<1x8x32xf32>
    %43 = vector.shape_cast %42 : vector<1x8x32xf32> to vector<8x32xf32>
    %44 = vector.shape_cast %41 : vector<8x32xf32> to vector<1x8x32xf32>
    tpu.vector_store %arg4[%c0_13, %c0_14, %c0_15], %44 {strides = array<i32>} : memref<8x8x32xf32, #tpu.memory_space<vmem>>, vector<1x8x32xf32>,
    %45 = vector.extract_strided_slice %9 {offsets = [1, 0, 0], sizes = [1, 8, 128], strides = [1, 1, 1]} : vector<8x8x128xf32> to vector<1x8x128xf32>
    %46 = vector.shape_cast %45 : vector<1x8x128xf32> to vector<8x128xf32>
    %cst_16 = arith.constant dense<0.000000e+00> : vector<8x128xf32>
    %47 = tpu.matmul %41, %10, %cst_16 {dimension_numbers = #tpu.dot_dimension_numbers<[1], [0], [0], [1], [0, 0, 1, 1], [], []>} : vector<8x32xf32>, vector<32x128xf32>, vector<8x128xf32> -> vector<8x128xf32>
    %48 = arith.addf %46, %47 : vector<8x128xf32>
    %49 = vector.extract_strided_slice %48 {offsets = [0, 0], sizes = [8, 32], strides = [1, 1]} : vector<8x128xf32> to vector<8x32xf32>
    %50 = arith.negf %49 : vector<8x32xf32>
    %51 = math.exp %50 : vector<8x32xf32>
    %cst_17 = arith.constant 1.000000e+00 : f32
    %52 = vector.broadcast %cst_17 : f32 to vector<8x32xf32>
    %53 = arith.addf %52, %51 : vector<8x32xf32>
    %54 = arith.divf %52, %53 : vector<8x32xf32>
    %55 = vector.extract_strided_slice %48 {offsets = [0, 32], sizes = [8, 32], strides = [1, 1]} : vector<8x128xf32> to vector<8x32xf32>
    %56 = arith.negf %55 : vector<8x32xf32>
    %57 = math.exp %56 : vector<8x32xf32>
    %cst_18 = arith.constant 1.000000e+00 : f32
    %58 = vector.broadcast %cst_18 : f32 to vector<8x32xf32>
    %59 = arith.addf %58, %57 : vector<8x32xf32>
    %60 = arith.divf %58, %59 : vector<8x32xf32>
    %61 = vector.extract_strided_slice %48 {offsets = [0, 64], sizes = [8, 32], strides = [1, 1]} : vector<8x128xf32> to vector<8x32xf32>
    %62 = math.tanh %61 : vector<8x32xf32>
    %63 = vector.extract_strided_slice %48 {offsets = [0, 96], sizes = [8, 32], strides = [1, 1]} : vector<8x128xf32> to vector<8x32xf32>
    %64 = arith.negf %63 : vector<8x32xf32>
    %65 = math.exp %64 : vector<8x32xf32>
    %cst_19 = arith.constant 1.000000e+00 : f32
    %66 = vector.broadcast %cst_19 : f32 to vector<8x32xf32>
    %67 = arith.addf %66, %65 : vector<8x32xf32>
    %68 = arith.divf %66, %67 : vector<8x32xf32>
    %69 = arith.mulf %60, %39 : vector<8x32xf32>
    %70 = arith.mulf %54, %62 : vector<8x32xf32>
    %71 = arith.addf %69, %70 : vector<8x32xf32>
    %72 = math.tanh %71 : vector<8x32xf32>
    %73 = arith.mulf %68, %72 : vector<8x32xf32>
    %c1 = arith.constant 1 : index
    %c0_20 = arith.constant 0 : index
    %c0_21 = arith.constant 0 : index
    %74 = vector.load %arg4[%c1, %c0_20, %c0_21] : memref<8x8x32xf32, #tpu.memory_space<vmem>>, vector<1x8x32xf32>
    %75 = vector.shape_cast %74 : vector<1x8x32xf32> to vector<8x32xf32>
    %76 = vector.shape_cast %73 : vector<8x32xf32> to vector<1x8x32xf32>
    tpu.vector_store %arg4[%c1, %c0_20, %c0_21], %76 {strides = array<i32>} : memref<8x8x32xf32, #tpu.memory_space<vmem>>, vector<1x8x32xf32>,
    %77 = vector.extract_strided_slice %9 {offsets = [2, 0, 0], sizes = [1, 8, 128], strides = [1, 1, 1]} : vector<8x8x128xf32> to vector<1x8x128xf32>
    %78 = vector.shape_cast %77 : vector<1x8x128xf32> to vector<8x128xf32>
    %cst_22 = arith.constant dense<0.000000e+00> : vector<8x128xf32>
    %79 = tpu.matmul %73, %10, %cst_22 {dimension_numbers = #tpu.dot_dimension_numbers<[1], [0], [0], [1], [0, 0, 1, 1], [], []>} : vector<8x32xf32>, vector<32x128xf32>, vector<8x128xf32> -> vector<8x128xf32>
    %80 = arith.addf %78, %79 : vector<8x128xf32>
    %81 = vector.extract_strided_slice %80 {offsets = [0, 0], sizes = [8, 32], strides = [1, 1]} : vector<8x128xf32> to vector<8x32xf32>
    %82 = arith.negf %81 : vector<8x32xf32>
    %83 = math.exp %82 : vector<8x32xf32>
    %cst_23 = arith.constant 1.000000e+00 : f32
    %84 = vector.broadcast %cst_23 : f32 to vector<8x32xf32>
    %85 = arith.addf %84, %83 : vector<8x32xf32>
    %86 = arith.divf %84, %85 : vector<8x32xf32>
    %87 = vector.extract_strided_slice %80 {offsets = [0, 32], sizes = [8, 32], strides = [1, 1]} : vector<8x128xf32> to vector<8x32xf32>
    %88 = arith.negf %87 : vector<8x32xf32>
    %89 = math.exp %88 : vector<8x32xf32>
    %cst_24 = arith.constant 1.000000e+00 : f32
    %90 = vector.broadcast %cst_24 : f32 to vector<8x32xf32>
    %91 = arith.addf %90, %89 : vector<8x32xf32>
    %92 = arith.divf %90, %91 : vector<8x32xf32>
    %93 = vector.extract_strided_slice %80 {offsets = [0, 64], sizes = [8, 32], strides = [1, 1]} : vector<8x128xf32> to vector<8x32xf32>
    %94 = math.tanh %93 : vector<8x32xf32>
    %95 = vector.extract_strided_slice %80 {offsets = [0, 96], sizes = [8, 32], strides = [1, 1]} : vector<8x128xf32> to vector<8x32xf32>
    %96 = arith.negf %95 : vector<8x32xf32>
    %97 = math.exp %96 : vector<8x32xf32>
    %cst_25 = arith.constant 1.000000e+00 : f32
    %98 = vector.broadcast %cst_25 : f32 to vector<8x32xf32>
    %99 = arith.addf %98, %97 : vector<8x32xf32>
    %100 = arith.divf %98, %99 : vector<8x32xf32>
    %101 = arith.mulf %92, %71 : vector<8x32xf32>
    %102 = arith.mulf %86, %94 : vector<8x32xf32>
    %103 = arith.addf %101, %102 : vector<8x32xf32>
    %104 = math.tanh %103 : vector<8x32xf32>
    %105 = arith.mulf %100, %104 : vector<8x32xf32>
    %c2 = arith.constant 2 : index
    %c0_26 = arith.constant 0 : index
    %c0_27 = arith.constant 0 : index
    %106 = vector.load %arg4[%c2, %c0_26, %c0_27] : memref<8x8x32xf32, #tpu.memory_space<vmem>>, vector<1x8x32xf32>
    %107 = vector.shape_cast %106 : vector<1x8x32xf32> to vector<8x32xf32>
    %108 = vector.shape_cast %105 : vector<8x32xf32> to vector<1x8x32xf32>
    tpu.vector_store %arg4[%c2, %c0_26, %c0_27], %108 {strides = array<i32>} : memref<8x8x32xf32, #tpu.memory_space<vmem>>, vector<1x8x32xf32>,
    %109 = vector.extract_strided_slice %9 {offsets = [3, 0, 0], sizes = [1, 8, 128], strides = [1, 1, 1]} : vector<8x8x128xf32> to vector<1x8x128xf32>
    %110 = vector.shape_cast %109 : vector<1x8x128xf32> to vector<8x128xf32>
    %cst_28 = arith.constant dense<0.000000e+00> : vector<8x128xf32>
    %111 = tpu.matmul %105, %10, %cst_28 {dimension_numbers = #tpu.dot_dimension_numbers<[1], [0], [0], [1], [0, 0, 1, 1], [], []>} : vector<8x32xf32>, vector<32x128xf32>, vector<8x128xf32> -> vector<8x128xf32>
    %112 = arith.addf %110, %111 : vector<8x128xf32>
    %113 = vector.extract_strided_slice %112 {offsets = [0, 0], sizes = [8, 32], strides = [1, 1]} : vector<8x128xf32> to vector<8x32xf32>
    %114 = arith.negf %113 : vector<8x32xf32>
    %115 = math.exp %114 : vector<8x32xf32>
    %cst_29 = arith.constant 1.000000e+00 : f32
    %116 = vector.broadcast %cst_29 : f32 to vector<8x32xf32>
    %117 = arith.addf %116, %115 : vector<8x32xf32>
    %118 = arith.divf %116, %117 : vector<8x32xf32>
    %119 = vector.extract_strided_slice %112 {offsets = [0, 32], sizes = [8, 32], strides = [1, 1]} : vector<8x128xf32> to vector<8x32xf32>
    %120 = arith.negf %119 : vector<8x32xf32>
    %121 = math.exp %120 : vector<8x32xf32>
    %cst_30 = arith.constant 1.000000e+00 : f32
    %122 = vector.broadcast %cst_30 : f32 to vector<8x32xf32>
    %123 = arith.addf %122, %121 : vector<8x32xf32>
    %124 = arith.divf %122, %123 : vector<8x32xf32>
    %125 = vector.extract_strided_slice %112 {offsets = [0, 64], sizes = [8, 32], strides = [1, 1]} : vector<8x128xf32> to vector<8x32xf32>
    %126 = math.tanh %125 : vector<8x32xf32>
    %127 = vector.extract_strided_slice %112 {offsets = [0, 96], sizes = [8, 32], strides = [1, 1]} : vector<8x128xf32> to vector<8x32xf32>
    %128 = arith.negf %127 : vector<8x32xf32>
    %129 = math.exp %128 : vector<8x32xf32>
    %cst_31 = arith.constant 1.000000e+00 : f32
    %130 = vector.broadcast %cst_31 : f32 to vector<8x32xf32>
    %131 = arith.addf %130, %129 : vector<8x32xf32>
    %132 = arith.divf %130, %131 : vector<8x32xf32>
    %133 = arith.mulf %124, %103 : vector<8x32xf32>
    %134 = arith.mulf %118, %126 : vector<8x32xf32>
    %135 = arith.addf %133, %134 : vector<8x32xf32>
    %136 = math.tanh %135 : vector<8x32xf32>
    %137 = arith.mulf %132, %136 : vector<8x32xf32>
    %c3 = arith.constant 3 : index
    %c0_32 = arith.constant 0 : index
    %c0_33 = arith.constant 0 : index
    %138 = vector.load %arg4[%c3, %c0_32, %c0_33] : memref<8x8x32xf32, #tpu.memory_space<vmem>>, vector<1x8x32xf32>
    %139 = vector.shape_cast %138 : vector<1x8x32xf32> to vector<8x32xf32>
    %140 = vector.shape_cast %137 : vector<8x32xf32> to vector<1x8x32xf32>
    tpu.vector_store %arg4[%c3, %c0_32, %c0_33], %140 {strides = array<i32>} : memref<8x8x32xf32, #tpu.memory_space<vmem>>, vector<1x8x32xf32>,
    %141 = vector.extract_strided_slice %9 {offsets = [4, 0, 0], sizes = [1, 8, 128], strides = [1, 1, 1]} : vector<8x8x128xf32> to vector<1x8x128xf32>
    %142 = vector.shape_cast %141 : vector<1x8x128xf32> to vector<8x128xf32>
    %cst_34 = arith.constant dense<0.000000e+00> : vector<8x128xf32>
    %143 = tpu.matmul %137, %10, %cst_34 {dimension_numbers = #tpu.dot_dimension_numbers<[1], [0], [0], [1], [0, 0, 1, 1], [], []>} : vector<8x32xf32>, vector<32x128xf32>, vector<8x128xf32> -> vector<8x128xf32>
    %144 = arith.addf %142, %143 : vector<8x128xf32>
    %145 = vector.extract_strided_slice %144 {offsets = [0, 0], sizes = [8, 32], strides = [1, 1]} : vector<8x128xf32> to vector<8x32xf32>
    %146 = arith.negf %145 : vector<8x32xf32>
    %147 = math.exp %146 : vector<8x32xf32>
    %cst_35 = arith.constant 1.000000e+00 : f32
    %148 = vector.broadcast %cst_35 : f32 to vector<8x32xf32>
    %149 = arith.addf %148, %147 : vector<8x32xf32>
    %150 = arith.divf %148, %149 : vector<8x32xf32>
    %151 = vector.extract_strided_slice %144 {offsets = [0, 32], sizes = [8, 32], strides = [1, 1]} : vector<8x128xf32> to vector<8x32xf32>
    %152 = arith.negf %151 : vector<8x32xf32>
    %153 = math.exp %152 : vector<8x32xf32>
    %cst_36 = arith.constant 1.000000e+00 : f32
    %154 = vector.broadcast %cst_36 : f32 to vector<8x32xf32>
    %155 = arith.addf %154, %153 : vector<8x32xf32>
    %156 = arith.divf %154, %155 : vector<8x32xf32>
    %157 = vector.extract_strided_slice %144 {offsets = [0, 64], sizes = [8, 32], strides = [1, 1]} : vector<8x128xf32> to vector<8x32xf32>
    %158 = math.tanh %157 : vector<8x32xf32>
    %159 = vector.extract_strided_slice %144 {offsets = [0, 96], sizes = [8, 32], strides = [1, 1]} : vector<8x128xf32> to vector<8x32xf32>
    %160 = arith.negf %159 : vector<8x32xf32>
    %161 = math.exp %160 : vector<8x32xf32>
    %cst_37 = arith.constant 1.000000e+00 : f32
    %162 = vector.broadcast %cst_37 : f32 to vector<8x32xf32>
    %163 = arith.addf %162, %161 : vector<8x32xf32>
    %164 = arith.divf %162, %163 : vector<8x32xf32>
    %165 = arith.mulf %156, %135 : vector<8x32xf32>
    %166 = arith.mulf %150, %158 : vector<8x32xf32>
    %167 = arith.addf %165, %166 : vector<8x32xf32>
    %168 = math.tanh %167 : vector<8x32xf32>
    %169 = arith.mulf %164, %168 : vector<8x32xf32>
    %c4 = arith.constant 4 : index
    %c0_38 = arith.constant 0 : index
    %c0_39 = arith.constant 0 : index
    %170 = vector.load %arg4[%c4, %c0_38, %c0_39] : memref<8x8x32xf32, #tpu.memory_space<vmem>>, vector<1x8x32xf32>
    %171 = vector.shape_cast %170 : vector<1x8x32xf32> to vector<8x32xf32>
    %172 = vector.shape_cast %169 : vector<8x32xf32> to vector<1x8x32xf32>
    tpu.vector_store %arg4[%c4, %c0_38, %c0_39], %172 {strides = array<i32>} : memref<8x8x32xf32, #tpu.memory_space<vmem>>, vector<1x8x32xf32>,
    %173 = vector.extract_strided_slice %9 {offsets = [5, 0, 0], sizes = [1, 8, 128], strides = [1, 1, 1]} : vector<8x8x128xf32> to vector<1x8x128xf32>
    %174 = vector.shape_cast %173 : vector<1x8x128xf32> to vector<8x128xf32>
    %cst_40 = arith.constant dense<0.000000e+00> : vector<8x128xf32>
    %175 = tpu.matmul %169, %10, %cst_40 {dimension_numbers = #tpu.dot_dimension_numbers<[1], [0], [0], [1], [0, 0, 1, 1], [], []>} : vector<8x32xf32>, vector<32x128xf32>, vector<8x128xf32> -> vector<8x128xf32>
    %176 = arith.addf %174, %175 : vector<8x128xf32>
    %177 = vector.extract_strided_slice %176 {offsets = [0, 0], sizes = [8, 32], strides = [1, 1]} : vector<8x128xf32> to vector<8x32xf32>
    %178 = arith.negf %177 : vector<8x32xf32>
    %179 = math.exp %178 : vector<8x32xf32>
    %cst_41 = arith.constant 1.000000e+00 : f32
    %180 = vector.broadcast %cst_41 : f32 to vector<8x32xf32>
    %181 = arith.addf %180, %179 : vector<8x32xf32>
    %182 = arith.divf %180, %181 : vector<8x32xf32>
    %183 = vector.extract_strided_slice %176 {offsets = [0, 32], sizes = [8, 32], strides = [1, 1]} : vector<8x128xf32> to vector<8x32xf32>
    %184 = arith.negf %183 : vector<8x32xf32>
    %185 = math.exp %184 : vector<8x32xf32>
    %cst_42 = arith.constant 1.000000e+00 : f32
    %186 = vector.broadcast %cst_42 : f32 to vector<8x32xf32>
    %187 = arith.addf %186, %185 : vector<8x32xf32>
    %188 = arith.divf %186, %187 : vector<8x32xf32>
    %189 = vector.extract_strided_slice %176 {offsets = [0, 64], sizes = [8, 32], strides = [1, 1]} : vector<8x128xf32> to vector<8x32xf32>
    %190 = math.tanh %189 : vector<8x32xf32>
    %191 = vector.extract_strided_slice %176 {offsets = [0, 96], sizes = [8, 32], strides = [1, 1]} : vector<8x128xf32> to vector<8x32xf32>
    %192 = arith.negf %191 : vector<8x32xf32>
    %193 = math.exp %192 : vector<8x32xf32>
    %cst_43 = arith.constant 1.000000e+00 : f32
    %194 = vector.broadcast %cst_43 : f32 to vector<8x32xf32>
    %195 = arith.addf %194, %193 : vector<8x32xf32>
    %196 = arith.divf %194, %195 : vector<8x32xf32>
    %197 = arith.mulf %188, %167 : vector<8x32xf32>
    %198 = arith.mulf %182, %190 : vector<8x32xf32>
    %199 = arith.addf %197, %198 : vector<8x32xf32>
    %200 = math.tanh %199 : vector<8x32xf32>
    %201 = arith.mulf %196, %200 : vector<8x32xf32>
    %c5 = arith.constant 5 : index
    %c0_44 = arith.constant 0 : index
    %c0_45 = arith.constant 0 : index
    %202 = vector.load %arg4[%c5, %c0_44, %c0_45] : memref<8x8x32xf32, #tpu.memory_space<vmem>>, vector<1x8x32xf32>
    %203 = vector.shape_cast %202 : vector<1x8x32xf32> to vector<8x32xf32>
    %204 = vector.shape_cast %201 : vector<8x32xf32> to vector<1x8x32xf32>
    tpu.vector_store %arg4[%c5, %c0_44, %c0_45], %204 {strides = array<i32>} : memref<8x8x32xf32, #tpu.memory_space<vmem>>, vector<1x8x32xf32>,
    %205 = vector.extract_strided_slice %9 {offsets = [6, 0, 0], sizes = [1, 8, 128], strides = [1, 1, 1]} : vector<8x8x128xf32> to vector<1x8x128xf32>
    %206 = vector.shape_cast %205 : vector<1x8x128xf32> to vector<8x128xf32>
    %cst_46 = arith.constant dense<0.000000e+00> : vector<8x128xf32>
    %207 = tpu.matmul %201, %10, %cst_46 {dimension_numbers = #tpu.dot_dimension_numbers<[1], [0], [0], [1], [0, 0, 1, 1], [], []>} : vector<8x32xf32>, vector<32x128xf32>, vector<8x128xf32> -> vector<8x128xf32>
    %208 = arith.addf %206, %207 : vector<8x128xf32>
    %209 = vector.extract_strided_slice %208 {offsets = [0, 0], sizes = [8, 32], strides = [1, 1]} : vector<8x128xf32> to vector<8x32xf32>
    %210 = arith.negf %209 : vector<8x32xf32>
    %211 = math.exp %210 : vector<8x32xf32>
    %cst_47 = arith.constant 1.000000e+00 : f32
    %212 = vector.broadcast %cst_47 : f32 to vector<8x32xf32>
    %213 = arith.addf %212, %211 : vector<8x32xf32>
    %214 = arith.divf %212, %213 : vector<8x32xf32>
    %215 = vector.extract_strided_slice %208 {offsets = [0, 32], sizes = [8, 32], strides = [1, 1]} : vector<8x128xf32> to vector<8x32xf32>
    %216 = arith.negf %215 : vector<8x32xf32>
    %217 = math.exp %216 : vector<8x32xf32>
    %cst_48 = arith.constant 1.000000e+00 : f32
    %218 = vector.broadcast %cst_48 : f32 to vector<8x32xf32>
    %219 = arith.addf %218, %217 : vector<8x32xf32>
    %220 = arith.divf %218, %219 : vector<8x32xf32>
    %221 = vector.extract_strided_slice %208 {offsets = [0, 64], sizes = [8, 32], strides = [1, 1]} : vector<8x128xf32> to vector<8x32xf32>
    %222 = math.tanh %221 : vector<8x32xf32>
    %223 = vector.extract_strided_slice %208 {offsets = [0, 96], sizes = [8, 32], strides = [1, 1]} : vector<8x128xf32> to vector<8x32xf32>
    %224 = arith.negf %223 : vector<8x32xf32>
    %225 = math.exp %224 : vector<8x32xf32>
    %cst_49 = arith.constant 1.000000e+00 : f32
    %226 = vector.broadcast %cst_49 : f32 to vector<8x32xf32>
    %227 = arith.addf %226, %225 : vector<8x32xf32>
    %228 = arith.divf %226, %227 : vector<8x32xf32>
    %229 = arith.mulf %220, %199 : vector<8x32xf32>
    %230 = arith.mulf %214, %222 : vector<8x32xf32>
    %231 = arith.addf %229, %230 : vector<8x32xf32>
    %232 = math.tanh %231 : vector<8x32xf32>
    %233 = arith.mulf %228, %232 : vector<8x32xf32>
    %c6 = arith.constant 6 : index
    %c0_50 = arith.constant 0 : index
    %c0_51 = arith.constant 0 : index
    %234 = vector.load %arg4[%c6, %c0_50, %c0_51] : memref<8x8x32xf32, #tpu.memory_space<vmem>>, vector<1x8x32xf32>
    %235 = vector.shape_cast %234 : vector<1x8x32xf32> to vector<8x32xf32>
    %236 = vector.shape_cast %233 : vector<8x32xf32> to vector<1x8x32xf32>
    tpu.vector_store %arg4[%c6, %c0_50, %c0_51], %236 {strides = array<i32>} : memref<8x8x32xf32, #tpu.memory_space<vmem>>, vector<1x8x32xf32>,
    %237 = vector.extract_strided_slice %9 {offsets = [7, 0, 0], sizes = [1, 8, 128], strides = [1, 1, 1]} : vector<8x8x128xf32> to vector<1x8x128xf32>
    %238 = vector.shape_cast %237 : vector<1x8x128xf32> to vector<8x128xf32>
    %cst_52 = arith.constant dense<0.000000e+00> : vector<8x128xf32>
    %239 = tpu.matmul %233, %10, %cst_52 {dimension_numbers = #tpu.dot_dimension_numbers<[1], [0], [0], [1], [0, 0, 1, 1], [], []>} : vector<8x32xf32>, vector<32x128xf32>, vector<8x128xf32> -> vector<8x128xf32>
    %240 = arith.addf %238, %239 : vector<8x128xf32>
    %241 = vector.extract_strided_slice %240 {offsets = [0, 0], sizes = [8, 32], strides = [1, 1]} : vector<8x128xf32> to vector<8x32xf32>
    %242 = arith.negf %241 : vector<8x32xf32>
    %243 = math.exp %242 : vector<8x32xf32>
    %cst_53 = arith.constant 1.000000e+00 : f32
    %244 = vector.broadcast %cst_53 : f32 to vector<8x32xf32>
    %245 = arith.addf %244, %243 : vector<8x32xf32>
    %246 = arith.divf %244, %245 : vector<8x32xf32>
    %247 = vector.extract_strided_slice %240 {offsets = [0, 32], sizes = [8, 32], strides = [1, 1]} : vector<8x128xf32> to vector<8x32xf32>
    %248 = arith.negf %247 : vector<8x32xf32>
    %249 = math.exp %248 : vector<8x32xf32>
    %cst_54 = arith.constant 1.000000e+00 : f32
    %250 = vector.broadcast %cst_54 : f32 to vector<8x32xf32>
    %251 = arith.addf %250, %249 : vector<8x32xf32>
    %252 = arith.divf %250, %251 : vector<8x32xf32>
    %253 = vector.extract_strided_slice %240 {offsets = [0, 64], sizes = [8, 32], strides = [1, 1]} : vector<8x128xf32> to vector<8x32xf32>
    %254 = math.tanh %253 : vector<8x32xf32>
    %255 = vector.extract_strided_slice %240 {offsets = [0, 96], sizes = [8, 32], strides = [1, 1]} : vector<8x128xf32> to vector<8x32xf32>
    %256 = arith.negf %255 : vector<8x32xf32>
    %257 = math.exp %256 : vector<8x32xf32>
    %cst_55 = arith.constant 1.000000e+00 : f32
    %258 = vector.broadcast %cst_55 : f32 to vector<8x32xf32>
    %259 = arith.addf %258, %257 : vector<8x32xf32>
    %260 = arith.divf %258, %259 : vector<8x32xf32>
    %261 = arith.mulf %252, %231 : vector<8x32xf32>
    %262 = arith.mulf %246, %254 : vector<8x32xf32>
    %263 = arith.addf %261, %262 : vector<8x32xf32>
    %264 = math.tanh %263 : vector<8x32xf32>
    %265 = arith.mulf %260, %264 : vector<8x32xf32>
    %c7 = arith.constant 7 : index
    %c0_56 = arith.constant 0 : index
    %c0_57 = arith.constant 0 : index
    %266 = vector.load %arg4[%c7, %c0_56, %c0_57] : memref<8x8x32xf32, #tpu.memory_space<vmem>>, vector<1x8x32xf32>
    %267 = vector.shape_cast %266 : vector<1x8x32xf32> to vector<8x32xf32>
    %268 = vector.shape_cast %265 : vector<8x32xf32> to vector<1x8x32xf32>
    tpu.vector_store %arg4[%c7, %c0_56, %c0_57], %268 {strides = array<i32>} : memref<8x8x32xf32, #tpu.memory_space<vmem>>, vector<1x8x32xf32>,
    return
  }
}

module attributes {stable_mosaic.version = 11 : i64} {
  func.func @decoder_seq_kernel(%arg0: memref<8xf32, #tpu.memory_space<smem>>, %arg1: memref<8x2x8xf32, #tpu.memory_space<vmem>>, %arg2: memref<2x32x32xf32, #tpu.memory_space<vmem>>, %arg3: memref<2x32xf32, #tpu.memory_space<vmem>>, %arg4: memref<32x32xf32, #tpu.memory_space<vmem>>, %arg5: memref<72x128xf32, #tpu.memory_space<vmem>>, %arg6: memref<1x128xf32, #tpu.memory_space<vmem>>, %arg7: memref<64x8xf32, #tpu.memory_space<vmem>>, %arg8: memref<1x8xf32, #tpu.memory_space<vmem>>, %arg9: memref<8x2x8xf32, #tpu.memory_space<vmem>>) attributes {dimension_semantics = [], scalar_prefetch = 0 : i64, scratch_operands = 0 : i64, tpu.core_type = #tpu.core_type<tc>} {
    %c0 = arith.constant 0 : index
    %c0_0 = arith.constant 0 : index
    %c0_1 = arith.constant 0 : index
    %0 = vector.load %arg2[%c0, %c0_0, %c0_1] : memref<2x32x32xf32, #tpu.memory_space<vmem>>, vector<2x32x32xf32>
    %c0_2 = arith.constant 0 : index
    %c0_3 = arith.constant 0 : index
    %1 = vector.load %arg3[%c0_2, %c0_3] : memref<2x32xf32, #tpu.memory_space<vmem>>, vector<2x32xf32>
    %c0_4 = arith.constant 0 : index
    %c0_5 = arith.constant 0 : index
    %2 = vector.load %arg4[%c0_4, %c0_5] : memref<32x32xf32, #tpu.memory_space<vmem>>, vector<32x32xf32>
    %c0_6 = arith.constant 0 : index
    %c0_7 = arith.constant 0 : index
    %3 = vector.load %arg5[%c0_6, %c0_7] : memref<72x128xf32, #tpu.memory_space<vmem>>, vector<72x128xf32>
    %c0_8 = arith.constant 0 : index
    %c0_9 = arith.constant 0 : index
    %4 = vector.load %arg6[%c0_8, %c0_9] : memref<1x128xf32, #tpu.memory_space<vmem>>, vector<1x128xf32>
    %c0_10 = arith.constant 0 : index
    %c0_11 = arith.constant 0 : index
    %5 = vector.load %arg7[%c0_10, %c0_11] : memref<64x8xf32, #tpu.memory_space<vmem>>, vector<64x8xf32>
    %c0_12 = arith.constant 0 : index
    %c0_13 = arith.constant 0 : index
    %6 = vector.load %arg8[%c0_12, %c0_13] : memref<1x8xf32, #tpu.memory_space<vmem>>, vector<1x8xf32>
    %cst = arith.constant 0.000000e+00 : f32
    %7 = vector.broadcast %cst : f32 to vector<2x8xf32>
    %c0_14 = arith.constant 0 : index
    %c0_15 = arith.constant 0 : index
    %c0_16 = arith.constant 0 : index
    %8 = vector.load %arg9[%c0_14, %c0_15, %c0_16] : memref<8x2x8xf32, #tpu.memory_space<vmem>>, vector<1x2x8xf32>
    %9 = vector.shape_cast %8 : vector<1x2x8xf32> to vector<2x8xf32>
    %10 = vector.shape_cast %7 : vector<2x8xf32> to vector<1x2x8xf32>
    tpu.vector_store %arg9[%c0_14, %c0_15, %c0_16], %10 {strides = array<i32>} : memref<8x2x8xf32, #tpu.memory_space<vmem>>, vector<1x2x8xf32>,
    %cst_17 = arith.constant 0.000000e+00 : f32
    %11 = vector.broadcast %cst_17 : f32 to vector<2x32xf32>
    %cst_18 = arith.constant 0.000000e+00 : f32
    %12 = vector.broadcast %cst_18 : f32 to vector<2x32xf32>
    %c0_19 = arith.constant 0 : index
    %c0_20 = arith.constant 0 : index
    %c0_21 = arith.constant 0 : index
    %13 = vector.load %arg1[%c0_19, %c0_20, %c0_21] : memref<8x2x8xf32, #tpu.memory_space<vmem>>, vector<1x2x8xf32>
    %14 = vector.shape_cast %13 : vector<1x2x8xf32> to vector<2x8xf32>
    %cst_22 = arith.constant dense<0.000000e+00> : vector<2x32xf32>
    %15 = tpu.matmul %11, %2, %cst_22 {dimension_numbers = #tpu.dot_dimension_numbers<[1], [0], [0], [1], [0, 0, 1, 1], [], []>} : vector<2x32xf32>, vector<32x32xf32>, vector<2x32xf32> -> vector<2x32xf32>
    %16 = vector.shape_cast %15 : vector<2x32xf32> to vector<2x1x32xf32>
    %17 = vector.broadcast %16 : vector<2x1x32xf32> to vector<2x32x32xf32>
    %18 = arith.mulf %0, %17 : vector<2x32x32xf32>
    %cst_23 = arith.constant dense<0.000000e+00> : vector<2x32xf32>
    %19 = vector.multi_reduction <add>, %18, %cst_23 [2] : vector<2x32x32xf32> to vector<2x32xf32>
    %20 = arith.addf %19, %1 : vector<2x32xf32>
    %cst_24 = arith.constant dense<0xFF800000> : vector<2xf32>
    %21 = vector.multi_reduction <maximumf>, %20, %cst_24 [1] : vector<2x32xf32> to vector<2xf32>
    %22 = vector.shape_cast %21 : vector<2xf32> to vector<2x1xf32>
    %23 = vector.broadcast %22 : vector<2x1xf32> to vector<2x32xf32>
    %24 = arith.subf %20, %23 : vector<2x32xf32>
    %25 = math.exp %24 : vector<2x32xf32>
    %cst_25 = arith.constant dense<0.000000e+00> : vector<2xf32>
    %26 = vector.multi_reduction <add>, %25, %cst_25 [1] : vector<2x32xf32> to vector<2xf32>
    %27 = vector.shape_cast %26 : vector<2xf32> to vector<2x1xf32>
    %28 = tpu.reciprocal %27 {approx = true} : vector<2x1xf32> -> vector<2x1xf32>
    %29 = vector.broadcast %28 : vector<2x1xf32> to vector<2x32xf32>
    %30 = arith.mulf %25, %29 : vector<2x32xf32>
    %31 = vector.shape_cast %30 : vector<2x32xf32> to vector<2x32x1xf32>
    %32 = vector.broadcast %31 : vector<2x32x1xf32> to vector<2x32x32xf32>
    %33 = arith.mulf %32, %0 : vector<2x32x32xf32>
    %cst_26 = arith.constant dense<0.000000e+00> : vector<2x32xf32>
    %34 = vector.multi_reduction <add>, %33, %cst_26 [1] : vector<2x32x32xf32> to vector<2x32xf32>
    %35 = tpu.concatenate %14, %34, %11 in 1 : vector<2x8xf32>, vector<2x32xf32>, vector<2x32xf32> -> vector<2x72xf32>
    %cst_27 = arith.constant dense<0.000000e+00> : vector<2x128xf32>
    %36 = tpu.matmul %35, %3, %cst_27 {dimension_numbers = #tpu.dot_dimension_numbers<[1], [0], [0], [1], [0, 0, 1, 1], [], []>} : vector<2x72xf32>, vector<72x128xf32>, vector<2x128xf32> -> vector<2x128xf32>
    %37 = vector.broadcast %4 : vector<1x128xf32> to vector<2x128xf32>
    %38 = arith.addf %36, %37 : vector<2x128xf32>
    %39 = vector.extract_strided_slice %38 {offsets = [0, 0], sizes = [2, 32], strides = [1, 1]} : vector<2x128xf32> to vector<2x32xf32>
    %40 = arith.negf %39 : vector<2x32xf32>
    %41 = math.exp %40 : vector<2x32xf32>
    %cst_28 = arith.constant 1.000000e+00 : f32
    %42 = vector.broadcast %cst_28 : f32 to vector<2x32xf32>
    %43 = arith.addf %42, %41 : vector<2x32xf32>
    %44 = arith.divf %42, %43 : vector<2x32xf32>
    %45 = vector.extract_strided_slice %38 {offsets = [0, 32], sizes = [2, 32], strides = [1, 1]} : vector<2x128xf32> to vector<2x32xf32>
    %46 = arith.negf %45 : vector<2x32xf32>
    %47 = math.exp %46 : vector<2x32xf32>
    %cst_29 = arith.constant 1.000000e+00 : f32
    %48 = vector.broadcast %cst_29 : f32 to vector<2x32xf32>
    %49 = arith.addf %48, %47 : vector<2x32xf32>
    %50 = arith.divf %48, %49 : vector<2x32xf32>
    %51 = vector.extract_strided_slice %38 {offsets = [0, 64], sizes = [2, 32], strides = [1, 1]} : vector<2x128xf32> to vector<2x32xf32>
    %52 = math.tanh %51 : vector<2x32xf32>
    %53 = vector.extract_strided_slice %38 {offsets = [0, 96], sizes = [2, 32], strides = [1, 1]} : vector<2x128xf32> to vector<2x32xf32>
    %54 = arith.negf %53 : vector<2x32xf32>
    %55 = math.exp %54 : vector<2x32xf32>
    %cst_30 = arith.constant 1.000000e+00 : f32
    %56 = vector.broadcast %cst_30 : f32 to vector<2x32xf32>
    %57 = arith.addf %56, %55 : vector<2x32xf32>
    %58 = arith.divf %56, %57 : vector<2x32xf32>
    %59 = arith.mulf %50, %12 : vector<2x32xf32>
    %60 = arith.mulf %44, %52 : vector<2x32xf32>
    %61 = arith.addf %59, %60 : vector<2x32xf32>
    %62 = math.tanh %61 : vector<2x32xf32>
    %63 = arith.mulf %58, %62 : vector<2x32xf32>
    %64 = tpu.concatenate %63, %34 in 1 : vector<2x32xf32>, vector<2x32xf32> -> vector<2x64xf32>
    %cst_31 = arith.constant dense<0.000000e+00> : vector<2x8xf32>
    %65 = tpu.matmul %64, %5, %cst_31 {dimension_numbers = #tpu.dot_dimension_numbers<[1], [0], [0], [1], [0, 0, 1, 1], [], []>} : vector<2x64xf32>, vector<64x8xf32>, vector<2x8xf32> -> vector<2x8xf32>
    %66 = vector.broadcast %6 : vector<1x8xf32> to vector<2x8xf32>
    %67 = arith.addf %65, %66 : vector<2x8xf32>
    %c1 = arith.constant 1 : index
    %c0_32 = arith.constant 0 : index
    %c0_33 = arith.constant 0 : index
    %68 = vector.load %arg9[%c1, %c0_32, %c0_33] : memref<8x2x8xf32, #tpu.memory_space<vmem>>, vector<1x2x8xf32>
    %69 = vector.shape_cast %68 : vector<1x2x8xf32> to vector<2x8xf32>
    %70 = vector.shape_cast %67 : vector<2x8xf32> to vector<1x2x8xf32>
    tpu.vector_store %arg9[%c1, %c0_32, %c0_33], %70 {strides = array<i32>} : memref<8x2x8xf32, #tpu.memory_space<vmem>>, vector<1x2x8xf32>,
    %c1_34 = arith.constant 1 : index
    %71 = memref.load %arg0[%c1_34] : memref<8xf32, #tpu.memory_space<smem>>
    %c1_35 = arith.constant 1 : index
    %c0_36 = arith.constant 0 : index
    %c0_37 = arith.constant 0 : index
    %72 = vector.load %arg1[%c1_35, %c0_36, %c0_37] : memref<8x2x8xf32, #tpu.memory_space<vmem>>, vector<1x2x8xf32>
    %73 = vector.shape_cast %72 : vector<1x2x8xf32> to vector<2x8xf32>
    %74 = vector.broadcast %71 : f32 to vector<2x8xf32>
    %75 = arith.mulf %74, %73 : vector<2x8xf32>
    %cst_38 = arith.constant 1.000000e+00 : f32
    %76 = arith.subf %cst_38, %71 : f32
    %77 = vector.broadcast %76 : f32 to vector<2x8xf32>
    %78 = arith.mulf %77, %67 : vector<2x8xf32>
    %79 = arith.addf %75, %78 : vector<2x8xf32>
    %cst_39 = arith.constant dense<0.000000e+00> : vector<2x32xf32>
    %80 = tpu.matmul %63, %2, %cst_39 {dimension_numbers = #tpu.dot_dimension_numbers<[1], [0], [0], [1], [0, 0, 1, 1], [], []>} : vector<2x32xf32>, vector<32x32xf32>, vector<2x32xf32> -> vector<2x32xf32>
    %81 = vector.shape_cast %80 : vector<2x32xf32> to vector<2x1x32xf32>
    %82 = vector.broadcast %81 : vector<2x1x32xf32> to vector<2x32x32xf32>
    %83 = arith.mulf %0, %82 : vector<2x32x32xf32>
    %cst_40 = arith.constant dense<0.000000e+00> : vector<2x32xf32>
    %84 = vector.multi_reduction <add>, %83, %cst_40 [2] : vector<2x32x32xf32> to vector<2x32xf32>
    %85 = arith.addf %84, %1 : vector<2x32xf32>
    %cst_41 = arith.constant dense<0xFF800000> : vector<2xf32>
    %86 = vector.multi_reduction <maximumf>, %85, %cst_41 [1] : vector<2x32xf32> to vector<2xf32>
    %87 = vector.shape_cast %86 : vector<2xf32> to vector<2x1xf32>
    %88 = vector.broadcast %87 : vector<2x1xf32> to vector<2x32xf32>
    %89 = arith.subf %85, %88 : vector<2x32xf32>
    %90 = math.exp %89 : vector<2x32xf32>
    %cst_42 = arith.constant dense<0.000000e+00> : vector<2xf32>
    %91 = vector.multi_reduction <add>, %90, %cst_42 [1] : vector<2x32xf32> to vector<2xf32>
    %92 = vector.shape_cast %91 : vector<2xf32> to vector<2x1xf32>
    %93 = tpu.reciprocal %92 {approx = true} : vector<2x1xf32> -> vector<2x1xf32>
    %94 = vector.broadcast %93 : vector<2x1xf32> to vector<2x32xf32>
    %95 = arith.mulf %90, %94 : vector<2x32xf32>
    %96 = vector.shape_cast %95 : vector<2x32xf32> to vector<2x32x1xf32>
    %97 = vector.broadcast %96 : vector<2x32x1xf32> to vector<2x32x32xf32>
    %98 = arith.mulf %97, %0 : vector<2x32x32xf32>
    %cst_43 = arith.constant dense<0.000000e+00> : vector<2x32xf32>
    %99 = vector.multi_reduction <add>, %98, %cst_43 [1] : vector<2x32x32xf32> to vector<2x32xf32>
    %100 = tpu.concatenate %79, %99, %63 in 1 : vector<2x8xf32>, vector<2x32xf32>, vector<2x32xf32> -> vector<2x72xf32>
    %cst_44 = arith.constant dense<0.000000e+00> : vector<2x128xf32>
    %101 = tpu.matmul %100, %3, %cst_44 {dimension_numbers = #tpu.dot_dimension_numbers<[1], [0], [0], [1], [0, 0, 1, 1], [], []>} : vector<2x72xf32>, vector<72x128xf32>, vector<2x128xf32> -> vector<2x128xf32>
    %102 = vector.broadcast %4 : vector<1x128xf32> to vector<2x128xf32>
    %103 = arith.addf %101, %102 : vector<2x128xf32>
    %104 = vector.extract_strided_slice %103 {offsets = [0, 0], sizes = [2, 32], strides = [1, 1]} : vector<2x128xf32> to vector<2x32xf32>
    %105 = arith.negf %104 : vector<2x32xf32>
    %106 = math.exp %105 : vector<2x32xf32>
    %cst_45 = arith.constant 1.000000e+00 : f32
    %107 = vector.broadcast %cst_45 : f32 to vector<2x32xf32>
    %108 = arith.addf %107, %106 : vector<2x32xf32>
    %109 = arith.divf %107, %108 : vector<2x32xf32>
    %110 = vector.extract_strided_slice %103 {offsets = [0, 32], sizes = [2, 32], strides = [1, 1]} : vector<2x128xf32> to vector<2x32xf32>
    %111 = arith.negf %110 : vector<2x32xf32>
    %112 = math.exp %111 : vector<2x32xf32>
    %cst_46 = arith.constant 1.000000e+00 : f32
    %113 = vector.broadcast %cst_46 : f32 to vector<2x32xf32>
    %114 = arith.addf %113, %112 : vector<2x32xf32>
    %115 = arith.divf %113, %114 : vector<2x32xf32>
    %116 = vector.extract_strided_slice %103 {offsets = [0, 64], sizes = [2, 32], strides = [1, 1]} : vector<2x128xf32> to vector<2x32xf32>
    %117 = math.tanh %116 : vector<2x32xf32>
    %118 = vector.extract_strided_slice %103 {offsets = [0, 96], sizes = [2, 32], strides = [1, 1]} : vector<2x128xf32> to vector<2x32xf32>
    %119 = arith.negf %118 : vector<2x32xf32>
    %120 = math.exp %119 : vector<2x32xf32>
    %cst_47 = arith.constant 1.000000e+00 : f32
    %121 = vector.broadcast %cst_47 : f32 to vector<2x32xf32>
    %122 = arith.addf %121, %120 : vector<2x32xf32>
    %123 = arith.divf %121, %122 : vector<2x32xf32>
    %124 = arith.mulf %115, %61 : vector<2x32xf32>
    %125 = arith.mulf %109, %117 : vector<2x32xf32>
    %126 = arith.addf %124, %125 : vector<2x32xf32>
    %127 = math.tanh %126 : vector<2x32xf32>
    %128 = arith.mulf %123, %127 : vector<2x32xf32>
    %129 = tpu.concatenate %128, %99 in 1 : vector<2x32xf32>, vector<2x32xf32> -> vector<2x64xf32>
    %cst_48 = arith.constant dense<0.000000e+00> : vector<2x8xf32>
    %130 = tpu.matmul %129, %5, %cst_48 {dimension_numbers = #tpu.dot_dimension_numbers<[1], [0], [0], [1], [0, 0, 1, 1], [], []>} : vector<2x64xf32>, vector<64x8xf32>, vector<2x8xf32> -> vector<2x8xf32>
    %131 = vector.broadcast %6 : vector<1x8xf32> to vector<2x8xf32>
    %132 = arith.addf %130, %131 : vector<2x8xf32>
    %c2 = arith.constant 2 : index
    %c0_49 = arith.constant 0 : index
    %c0_50 = arith.constant 0 : index
    %133 = vector.load %arg9[%c2, %c0_49, %c0_50] : memref<8x2x8xf32, #tpu.memory_space<vmem>>, vector<1x2x8xf32>
    %134 = vector.shape_cast %133 : vector<1x2x8xf32> to vector<2x8xf32>
    %135 = vector.shape_cast %132 : vector<2x8xf32> to vector<1x2x8xf32>
    tpu.vector_store %arg9[%c2, %c0_49, %c0_50], %135 {strides = array<i32>} : memref<8x2x8xf32, #tpu.memory_space<vmem>>, vector<1x2x8xf32>,
    %c2_51 = arith.constant 2 : index
    %136 = memref.load %arg0[%c2_51] : memref<8xf32, #tpu.memory_space<smem>>
    %c2_52 = arith.constant 2 : index
    %c0_53 = arith.constant 0 : index
    %c0_54 = arith.constant 0 : index
    %137 = vector.load %arg1[%c2_52, %c0_53, %c0_54] : memref<8x2x8xf32, #tpu.memory_space<vmem>>, vector<1x2x8xf32>
    %138 = vector.shape_cast %137 : vector<1x2x8xf32> to vector<2x8xf32>
    %139 = vector.broadcast %136 : f32 to vector<2x8xf32>
    %140 = arith.mulf %139, %138 : vector<2x8xf32>
    %cst_55 = arith.constant 1.000000e+00 : f32
    %141 = arith.subf %cst_55, %136 : f32
    %142 = vector.broadcast %141 : f32 to vector<2x8xf32>
    %143 = arith.mulf %142, %132 : vector<2x8xf32>
    %144 = arith.addf %140, %143 : vector<2x8xf32>
    %cst_56 = arith.constant dense<0.000000e+00> : vector<2x32xf32>
    %145 = tpu.matmul %128, %2, %cst_56 {dimension_numbers = #tpu.dot_dimension_numbers<[1], [0], [0], [1], [0, 0, 1, 1], [], []>} : vector<2x32xf32>, vector<32x32xf32>, vector<2x32xf32> -> vector<2x32xf32>
    %146 = vector.shape_cast %145 : vector<2x32xf32> to vector<2x1x32xf32>
    %147 = vector.broadcast %146 : vector<2x1x32xf32> to vector<2x32x32xf32>
    %148 = arith.mulf %0, %147 : vector<2x32x32xf32>
    %cst_57 = arith.constant dense<0.000000e+00> : vector<2x32xf32>
    %149 = vector.multi_reduction <add>, %148, %cst_57 [2] : vector<2x32x32xf32> to vector<2x32xf32>
    %150 = arith.addf %149, %1 : vector<2x32xf32>
    %cst_58 = arith.constant dense<0xFF800000> : vector<2xf32>
    %151 = vector.multi_reduction <maximumf>, %150, %cst_58 [1] : vector<2x32xf32> to vector<2xf32>
    %152 = vector.shape_cast %151 : vector<2xf32> to vector<2x1xf32>
    %153 = vector.broadcast %152 : vector<2x1xf32> to vector<2x32xf32>
    %154 = arith.subf %150, %153 : vector<2x32xf32>
    %155 = math.exp %154 : vector<2x32xf32>
    %cst_59 = arith.constant dense<0.000000e+00> : vector<2xf32>
    %156 = vector.multi_reduction <add>, %155, %cst_59 [1] : vector<2x32xf32> to vector<2xf32>
    %157 = vector.shape_cast %156 : vector<2xf32> to vector<2x1xf32>
    %158 = tpu.reciprocal %157 {approx = true} : vector<2x1xf32> -> vector<2x1xf32>
    %159 = vector.broadcast %158 : vector<2x1xf32> to vector<2x32xf32>
    %160 = arith.mulf %155, %159 : vector<2x32xf32>
    %161 = vector.shape_cast %160 : vector<2x32xf32> to vector<2x32x1xf32>
    %162 = vector.broadcast %161 : vector<2x32x1xf32> to vector<2x32x32xf32>
    %163 = arith.mulf %162, %0 : vector<2x32x32xf32>
    %cst_60 = arith.constant dense<0.000000e+00> : vector<2x32xf32>
    %164 = vector.multi_reduction <add>, %163, %cst_60 [1] : vector<2x32x32xf32> to vector<2x32xf32>
    %165 = tpu.concatenate %144, %164, %128 in 1 : vector<2x8xf32>, vector<2x32xf32>, vector<2x32xf32> -> vector<2x72xf32>
    %cst_61 = arith.constant dense<0.000000e+00> : vector<2x128xf32>
    %166 = tpu.matmul %165, %3, %cst_61 {dimension_numbers = #tpu.dot_dimension_numbers<[1], [0], [0], [1], [0, 0, 1, 1], [], []>} : vector<2x72xf32>, vector<72x128xf32>, vector<2x128xf32> -> vector<2x128xf32>
    %167 = vector.broadcast %4 : vector<1x128xf32> to vector<2x128xf32>
    %168 = arith.addf %166, %167 : vector<2x128xf32>
    %169 = vector.extract_strided_slice %168 {offsets = [0, 0], sizes = [2, 32], strides = [1, 1]} : vector<2x128xf32> to vector<2x32xf32>
    %170 = arith.negf %169 : vector<2x32xf32>
    %171 = math.exp %170 : vector<2x32xf32>
    %cst_62 = arith.constant 1.000000e+00 : f32
    %172 = vector.broadcast %cst_62 : f32 to vector<2x32xf32>
    %173 = arith.addf %172, %171 : vector<2x32xf32>
    %174 = arith.divf %172, %173 : vector<2x32xf32>
    %175 = vector.extract_strided_slice %168 {offsets = [0, 32], sizes = [2, 32], strides = [1, 1]} : vector<2x128xf32> to vector<2x32xf32>
    %176 = arith.negf %175 : vector<2x32xf32>
    %177 = math.exp %176 : vector<2x32xf32>
    %cst_63 = arith.constant 1.000000e+00 : f32
    %178 = vector.broadcast %cst_63 : f32 to vector<2x32xf32>
    %179 = arith.addf %178, %177 : vector<2x32xf32>
    %180 = arith.divf %178, %179 : vector<2x32xf32>
    %181 = vector.extract_strided_slice %168 {offsets = [0, 64], sizes = [2, 32], strides = [1, 1]} : vector<2x128xf32> to vector<2x32xf32>
    %182 = math.tanh %181 : vector<2x32xf32>
    %183 = vector.extract_strided_slice %168 {offsets = [0, 96], sizes = [2, 32], strides = [1, 1]} : vector<2x128xf32> to vector<2x32xf32>
    %184 = arith.negf %183 : vector<2x32xf32>
    %185 = math.exp %184 : vector<2x32xf32>
    %cst_64 = arith.constant 1.000000e+00 : f32
    %186 = vector.broadcast %cst_64 : f32 to vector<2x32xf32>
    %187 = arith.addf %186, %185 : vector<2x32xf32>
    %188 = arith.divf %186, %187 : vector<2x32xf32>
    %189 = arith.mulf %180, %126 : vector<2x32xf32>
    %190 = arith.mulf %174, %182 : vector<2x32xf32>
    %191 = arith.addf %189, %190 : vector<2x32xf32>
    %192 = math.tanh %191 : vector<2x32xf32>
    %193 = arith.mulf %188, %192 : vector<2x32xf32>
    %194 = tpu.concatenate %193, %164 in 1 : vector<2x32xf32>, vector<2x32xf32> -> vector<2x64xf32>
    %cst_65 = arith.constant dense<0.000000e+00> : vector<2x8xf32>
    %195 = tpu.matmul %194, %5, %cst_65 {dimension_numbers = #tpu.dot_dimension_numbers<[1], [0], [0], [1], [0, 0, 1, 1], [], []>} : vector<2x64xf32>, vector<64x8xf32>, vector<2x8xf32> -> vector<2x8xf32>
    %196 = vector.broadcast %6 : vector<1x8xf32> to vector<2x8xf32>
    %197 = arith.addf %195, %196 : vector<2x8xf32>
    %c3 = arith.constant 3 : index
    %c0_66 = arith.constant 0 : index
    %c0_67 = arith.constant 0 : index
    %198 = vector.load %arg9[%c3, %c0_66, %c0_67] : memref<8x2x8xf32, #tpu.memory_space<vmem>>, vector<1x2x8xf32>
    %199 = vector.shape_cast %198 : vector<1x2x8xf32> to vector<2x8xf32>
    %200 = vector.shape_cast %197 : vector<2x8xf32> to vector<1x2x8xf32>
    tpu.vector_store %arg9[%c3, %c0_66, %c0_67], %200 {strides = array<i32>} : memref<8x2x8xf32, #tpu.memory_space<vmem>>, vector<1x2x8xf32>,
    %c3_68 = arith.constant 3 : index
    %201 = memref.load %arg0[%c3_68] : memref<8xf32, #tpu.memory_space<smem>>
    %c3_69 = arith.constant 3 : index
    %c0_70 = arith.constant 0 : index
    %c0_71 = arith.constant 0 : index
    %202 = vector.load %arg1[%c3_69, %c0_70, %c0_71] : memref<8x2x8xf32, #tpu.memory_space<vmem>>, vector<1x2x8xf32>
    %203 = vector.shape_cast %202 : vector<1x2x8xf32> to vector<2x8xf32>
    %204 = vector.broadcast %201 : f32 to vector<2x8xf32>
    %205 = arith.mulf %204, %203 : vector<2x8xf32>
    %cst_72 = arith.constant 1.000000e+00 : f32
    %206 = arith.subf %cst_72, %201 : f32
    %207 = vector.broadcast %206 : f32 to vector<2x8xf32>
    %208 = arith.mulf %207, %197 : vector<2x8xf32>
    %209 = arith.addf %205, %208 : vector<2x8xf32>
    %cst_73 = arith.constant dense<0.000000e+00> : vector<2x32xf32>
    %210 = tpu.matmul %193, %2, %cst_73 {dimension_numbers = #tpu.dot_dimension_numbers<[1], [0], [0], [1], [0, 0, 1, 1], [], []>} : vector<2x32xf32>, vector<32x32xf32>, vector<2x32xf32> -> vector<2x32xf32>
    %211 = vector.shape_cast %210 : vector<2x32xf32> to vector<2x1x32xf32>
    %212 = vector.broadcast %211 : vector<2x1x32xf32> to vector<2x32x32xf32>
    %213 = arith.mulf %0, %212 : vector<2x32x32xf32>
    %cst_74 = arith.constant dense<0.000000e+00> : vector<2x32xf32>
    %214 = vector.multi_reduction <add>, %213, %cst_74 [2] : vector<2x32x32xf32> to vector<2x32xf32>
    %215 = arith.addf %214, %1 : vector<2x32xf32>
    %cst_75 = arith.constant dense<0xFF800000> : vector<2xf32>
    %216 = vector.multi_reduction <maximumf>, %215, %cst_75 [1] : vector<2x32xf32> to vector<2xf32>
    %217 = vector.shape_cast %216 : vector<2xf32> to vector<2x1xf32>
    %218 = vector.broadcast %217 : vector<2x1xf32> to vector<2x32xf32>
    %219 = arith.subf %215, %218 : vector<2x32xf32>
    %220 = math.exp %219 : vector<2x32xf32>
    %cst_76 = arith.constant dense<0.000000e+00> : vector<2xf32>
    %221 = vector.multi_reduction <add>, %220, %cst_76 [1] : vector<2x32xf32> to vector<2xf32>
    %222 = vector.shape_cast %221 : vector<2xf32> to vector<2x1xf32>
    %223 = tpu.reciprocal %222 {approx = true} : vector<2x1xf32> -> vector<2x1xf32>
    %224 = vector.broadcast %223 : vector<2x1xf32> to vector<2x32xf32>
    %225 = arith.mulf %220, %224 : vector<2x32xf32>
    %226 = vector.shape_cast %225 : vector<2x32xf32> to vector<2x32x1xf32>
    %227 = vector.broadcast %226 : vector<2x32x1xf32> to vector<2x32x32xf32>
    %228 = arith.mulf %227, %0 : vector<2x32x32xf32>
    %cst_77 = arith.constant dense<0.000000e+00> : vector<2x32xf32>
    %229 = vector.multi_reduction <add>, %228, %cst_77 [1] : vector<2x32x32xf32> to vector<2x32xf32>
    %230 = tpu.concatenate %209, %229, %193 in 1 : vector<2x8xf32>, vector<2x32xf32>, vector<2x32xf32> -> vector<2x72xf32>
    %cst_78 = arith.constant dense<0.000000e+00> : vector<2x128xf32>
    %231 = tpu.matmul %230, %3, %cst_78 {dimension_numbers = #tpu.dot_dimension_numbers<[1], [0], [0], [1], [0, 0, 1, 1], [], []>} : vector<2x72xf32>, vector<72x128xf32>, vector<2x128xf32> -> vector<2x128xf32>
    %232 = vector.broadcast %4 : vector<1x128xf32> to vector<2x128xf32>
    %233 = arith.addf %231, %232 : vector<2x128xf32>
    %234 = vector.extract_strided_slice %233 {offsets = [0, 0], sizes = [2, 32], strides = [1, 1]} : vector<2x128xf32> to vector<2x32xf32>
    %235 = arith.negf %234 : vector<2x32xf32>
    %236 = math.exp %235 : vector<2x32xf32>
    %cst_79 = arith.constant 1.000000e+00 : f32
    %237 = vector.broadcast %cst_79 : f32 to vector<2x32xf32>
    %238 = arith.addf %237, %236 : vector<2x32xf32>
    %239 = arith.divf %237, %238 : vector<2x32xf32>
    %240 = vector.extract_strided_slice %233 {offsets = [0, 32], sizes = [2, 32], strides = [1, 1]} : vector<2x128xf32> to vector<2x32xf32>
    %241 = arith.negf %240 : vector<2x32xf32>
    %242 = math.exp %241 : vector<2x32xf32>
    %cst_80 = arith.constant 1.000000e+00 : f32
    %243 = vector.broadcast %cst_80 : f32 to vector<2x32xf32>
    %244 = arith.addf %243, %242 : vector<2x32xf32>
    %245 = arith.divf %243, %244 : vector<2x32xf32>
    %246 = vector.extract_strided_slice %233 {offsets = [0, 64], sizes = [2, 32], strides = [1, 1]} : vector<2x128xf32> to vector<2x32xf32>
    %247 = math.tanh %246 : vector<2x32xf32>
    %248 = vector.extract_strided_slice %233 {offsets = [0, 96], sizes = [2, 32], strides = [1, 1]} : vector<2x128xf32> to vector<2x32xf32>
    %249 = arith.negf %248 : vector<2x32xf32>
    %250 = math.exp %249 : vector<2x32xf32>
    %cst_81 = arith.constant 1.000000e+00 : f32
    %251 = vector.broadcast %cst_81 : f32 to vector<2x32xf32>
    %252 = arith.addf %251, %250 : vector<2x32xf32>
    %253 = arith.divf %251, %252 : vector<2x32xf32>
    %254 = arith.mulf %245, %191 : vector<2x32xf32>
    %255 = arith.mulf %239, %247 : vector<2x32xf32>
    %256 = arith.addf %254, %255 : vector<2x32xf32>
    %257 = math.tanh %256 : vector<2x32xf32>
    %258 = arith.mulf %253, %257 : vector<2x32xf32>
    %259 = tpu.concatenate %258, %229 in 1 : vector<2x32xf32>, vector<2x32xf32> -> vector<2x64xf32>
    %cst_82 = arith.constant dense<0.000000e+00> : vector<2x8xf32>
    %260 = tpu.matmul %259, %5, %cst_82 {dimension_numbers = #tpu.dot_dimension_numbers<[1], [0], [0], [1], [0, 0, 1, 1], [], []>} : vector<2x64xf32>, vector<64x8xf32>, vector<2x8xf32> -> vector<2x8xf32>
    %261 = vector.broadcast %6 : vector<1x8xf32> to vector<2x8xf32>
    %262 = arith.addf %260, %261 : vector<2x8xf32>
    %c4 = arith.constant 4 : index
    %c0_83 = arith.constant 0 : index
    %c0_84 = arith.constant 0 : index
    %263 = vector.load %arg9[%c4, %c0_83, %c0_84] : memref<8x2x8xf32, #tpu.memory_space<vmem>>, vector<1x2x8xf32>
    %264 = vector.shape_cast %263 : vector<1x2x8xf32> to vector<2x8xf32>
    %265 = vector.shape_cast %262 : vector<2x8xf32> to vector<1x2x8xf32>
    tpu.vector_store %arg9[%c4, %c0_83, %c0_84], %265 {strides = array<i32>} : memref<8x2x8xf32, #tpu.memory_space<vmem>>, vector<1x2x8xf32>,
    %c4_85 = arith.constant 4 : index
    %266 = memref.load %arg0[%c4_85] : memref<8xf32, #tpu.memory_space<smem>>
    %c4_86 = arith.constant 4 : index
    %c0_87 = arith.constant 0 : index
    %c0_88 = arith.constant 0 : index
    %267 = vector.load %arg1[%c4_86, %c0_87, %c0_88] : memref<8x2x8xf32, #tpu.memory_space<vmem>>, vector<1x2x8xf32>
    %268 = vector.shape_cast %267 : vector<1x2x8xf32> to vector<2x8xf32>
    %269 = vector.broadcast %266 : f32 to vector<2x8xf32>
    %270 = arith.mulf %269, %268 : vector<2x8xf32>
    %cst_89 = arith.constant 1.000000e+00 : f32
    %271 = arith.subf %cst_89, %266 : f32
    %272 = vector.broadcast %271 : f32 to vector<2x8xf32>
    %273 = arith.mulf %272, %262 : vector<2x8xf32>
    %274 = arith.addf %270, %273 : vector<2x8xf32>
    %cst_90 = arith.constant dense<0.000000e+00> : vector<2x32xf32>
    %275 = tpu.matmul %258, %2, %cst_90 {dimension_numbers = #tpu.dot_dimension_numbers<[1], [0], [0], [1], [0, 0, 1, 1], [], []>} : vector<2x32xf32>, vector<32x32xf32>, vector<2x32xf32> -> vector<2x32xf32>
    %276 = vector.shape_cast %275 : vector<2x32xf32> to vector<2x1x32xf32>
    %277 = vector.broadcast %276 : vector<2x1x32xf32> to vector<2x32x32xf32>
    %278 = arith.mulf %0, %277 : vector<2x32x32xf32>
    %cst_91 = arith.constant dense<0.000000e+00> : vector<2x32xf32>
    %279 = vector.multi_reduction <add>, %278, %cst_91 [2] : vector<2x32x32xf32> to vector<2x32xf32>
    %280 = arith.addf %279, %1 : vector<2x32xf32>
    %cst_92 = arith.constant dense<0xFF800000> : vector<2xf32>
    %281 = vector.multi_reduction <maximumf>, %280, %cst_92 [1] : vector<2x32xf32> to vector<2xf32>
    %282 = vector.shape_cast %281 : vector<2xf32> to vector<2x1xf32>
    %283 = vector.broadcast %282 : vector<2x1xf32> to vector<2x32xf32>
    %284 = arith.subf %280, %283 : vector<2x32xf32>
    %285 = math.exp %284 : vector<2x32xf32>
    %cst_93 = arith.constant dense<0.000000e+00> : vector<2xf32>
    %286 = vector.multi_reduction <add>, %285, %cst_93 [1] : vector<2x32xf32> to vector<2xf32>
    %287 = vector.shape_cast %286 : vector<2xf32> to vector<2x1xf32>
    %288 = tpu.reciprocal %287 {approx = true} : vector<2x1xf32> -> vector<2x1xf32>
    %289 = vector.broadcast %288 : vector<2x1xf32> to vector<2x32xf32>
    %290 = arith.mulf %285, %289 : vector<2x32xf32>
    %291 = vector.shape_cast %290 : vector<2x32xf32> to vector<2x32x1xf32>
    %292 = vector.broadcast %291 : vector<2x32x1xf32> to vector<2x32x32xf32>
    %293 = arith.mulf %292, %0 : vector<2x32x32xf32>
    %cst_94 = arith.constant dense<0.000000e+00> : vector<2x32xf32>
    %294 = vector.multi_reduction <add>, %293, %cst_94 [1] : vector<2x32x32xf32> to vector<2x32xf32>
    %295 = tpu.concatenate %274, %294, %258 in 1 : vector<2x8xf32>, vector<2x32xf32>, vector<2x32xf32> -> vector<2x72xf32>
    %cst_95 = arith.constant dense<0.000000e+00> : vector<2x128xf32>
    %296 = tpu.matmul %295, %3, %cst_95 {dimension_numbers = #tpu.dot_dimension_numbers<[1], [0], [0], [1], [0, 0, 1, 1], [], []>} : vector<2x72xf32>, vector<72x128xf32>, vector<2x128xf32> -> vector<2x128xf32>
    %297 = vector.broadcast %4 : vector<1x128xf32> to vector<2x128xf32>
    %298 = arith.addf %296, %297 : vector<2x128xf32>
    %299 = vector.extract_strided_slice %298 {offsets = [0, 0], sizes = [2, 32], strides = [1, 1]} : vector<2x128xf32> to vector<2x32xf32>
    %300 = arith.negf %299 : vector<2x32xf32>
    %301 = math.exp %300 : vector<2x32xf32>
    %cst_96 = arith.constant 1.000000e+00 : f32
    %302 = vector.broadcast %cst_96 : f32 to vector<2x32xf32>
    %303 = arith.addf %302, %301 : vector<2x32xf32>
    %304 = arith.divf %302, %303 : vector<2x32xf32>
    %305 = vector.extract_strided_slice %298 {offsets = [0, 32], sizes = [2, 32], strides = [1, 1]} : vector<2x128xf32> to vector<2x32xf32>
    %306 = arith.negf %305 : vector<2x32xf32>
    %307 = math.exp %306 : vector<2x32xf32>
    %cst_97 = arith.constant 1.000000e+00 : f32
    %308 = vector.broadcast %cst_97 : f32 to vector<2x32xf32>
    %309 = arith.addf %308, %307 : vector<2x32xf32>
    %310 = arith.divf %308, %309 : vector<2x32xf32>
    %311 = vector.extract_strided_slice %298 {offsets = [0, 64], sizes = [2, 32], strides = [1, 1]} : vector<2x128xf32> to vector<2x32xf32>
    %312 = math.tanh %311 : vector<2x32xf32>
    %313 = vector.extract_strided_slice %298 {offsets = [0, 96], sizes = [2, 32], strides = [1, 1]} : vector<2x128xf32> to vector<2x32xf32>
    %314 = arith.negf %313 : vector<2x32xf32>
    %315 = math.exp %314 : vector<2x32xf32>
    %cst_98 = arith.constant 1.000000e+00 : f32
    %316 = vector.broadcast %cst_98 : f32 to vector<2x32xf32>
    %317 = arith.addf %316, %315 : vector<2x32xf32>
    %318 = arith.divf %316, %317 : vector<2x32xf32>
    %319 = arith.mulf %310, %256 : vector<2x32xf32>
    %320 = arith.mulf %304, %312 : vector<2x32xf32>
    %321 = arith.addf %319, %320 : vector<2x32xf32>
    %322 = math.tanh %321 : vector<2x32xf32>
    %323 = arith.mulf %318, %322 : vector<2x32xf32>
    %324 = tpu.concatenate %323, %294 in 1 : vector<2x32xf32>, vector<2x32xf32> -> vector<2x64xf32>
    %cst_99 = arith.constant dense<0.000000e+00> : vector<2x8xf32>
    %325 = tpu.matmul %324, %5, %cst_99 {dimension_numbers = #tpu.dot_dimension_numbers<[1], [0], [0], [1], [0, 0, 1, 1], [], []>} : vector<2x64xf32>, vector<64x8xf32>, vector<2x8xf32> -> vector<2x8xf32>
    %326 = vector.broadcast %6 : vector<1x8xf32> to vector<2x8xf32>
    %327 = arith.addf %325, %326 : vector<2x8xf32>
    %c5 = arith.constant 5 : index
    %c0_100 = arith.constant 0 : index
    %c0_101 = arith.constant 0 : index
    %328 = vector.load %arg9[%c5, %c0_100, %c0_101] : memref<8x2x8xf32, #tpu.memory_space<vmem>>, vector<1x2x8xf32>
    %329 = vector.shape_cast %328 : vector<1x2x8xf32> to vector<2x8xf32>
    %330 = vector.shape_cast %327 : vector<2x8xf32> to vector<1x2x8xf32>
    tpu.vector_store %arg9[%c5, %c0_100, %c0_101], %330 {strides = array<i32>} : memref<8x2x8xf32, #tpu.memory_space<vmem>>, vector<1x2x8xf32>,
    %c5_102 = arith.constant 5 : index
    %331 = memref.load %arg0[%c5_102] : memref<8xf32, #tpu.memory_space<smem>>
    %c5_103 = arith.constant 5 : index
    %c0_104 = arith.constant 0 : index
    %c0_105 = arith.constant 0 : index
    %332 = vector.load %arg1[%c5_103, %c0_104, %c0_105] : memref<8x2x8xf32, #tpu.memory_space<vmem>>, vector<1x2x8xf32>
    %333 = vector.shape_cast %332 : vector<1x2x8xf32> to vector<2x8xf32>
    %334 = vector.broadcast %331 : f32 to vector<2x8xf32>
    %335 = arith.mulf %334, %333 : vector<2x8xf32>
    %cst_106 = arith.constant 1.000000e+00 : f32
    %336 = arith.subf %cst_106, %331 : f32
    %337 = vector.broadcast %336 : f32 to vector<2x8xf32>
    %338 = arith.mulf %337, %327 : vector<2x8xf32>
    %339 = arith.addf %335, %338 : vector<2x8xf32>
    %cst_107 = arith.constant dense<0.000000e+00> : vector<2x32xf32>
    %340 = tpu.matmul %323, %2, %cst_107 {dimension_numbers = #tpu.dot_dimension_numbers<[1], [0], [0], [1], [0, 0, 1, 1], [], []>} : vector<2x32xf32>, vector<32x32xf32>, vector<2x32xf32> -> vector<2x32xf32>
    %341 = vector.shape_cast %340 : vector<2x32xf32> to vector<2x1x32xf32>
    %342 = vector.broadcast %341 : vector<2x1x32xf32> to vector<2x32x32xf32>
    %343 = arith.mulf %0, %342 : vector<2x32x32xf32>
    %cst_108 = arith.constant dense<0.000000e+00> : vector<2x32xf32>
    %344 = vector.multi_reduction <add>, %343, %cst_108 [2] : vector<2x32x32xf32> to vector<2x32xf32>
    %345 = arith.addf %344, %1 : vector<2x32xf32>
    %cst_109 = arith.constant dense<0xFF800000> : vector<2xf32>
    %346 = vector.multi_reduction <maximumf>, %345, %cst_109 [1] : vector<2x32xf32> to vector<2xf32>
    %347 = vector.shape_cast %346 : vector<2xf32> to vector<2x1xf32>
    %348 = vector.broadcast %347 : vector<2x1xf32> to vector<2x32xf32>
    %349 = arith.subf %345, %348 : vector<2x32xf32>
    %350 = math.exp %349 : vector<2x32xf32>
    %cst_110 = arith.constant dense<0.000000e+00> : vector<2xf32>
    %351 = vector.multi_reduction <add>, %350, %cst_110 [1] : vector<2x32xf32> to vector<2xf32>
    %352 = vector.shape_cast %351 : vector<2xf32> to vector<2x1xf32>
    %353 = tpu.reciprocal %352 {approx = true} : vector<2x1xf32> -> vector<2x1xf32>
    %354 = vector.broadcast %353 : vector<2x1xf32> to vector<2x32xf32>
    %355 = arith.mulf %350, %354 : vector<2x32xf32>
    %356 = vector.shape_cast %355 : vector<2x32xf32> to vector<2x32x1xf32>
    %357 = vector.broadcast %356 : vector<2x32x1xf32> to vector<2x32x32xf32>
    %358 = arith.mulf %357, %0 : vector<2x32x32xf32>
    %cst_111 = arith.constant dense<0.000000e+00> : vector<2x32xf32>
    %359 = vector.multi_reduction <add>, %358, %cst_111 [1] : vector<2x32x32xf32> to vector<2x32xf32>
    %360 = tpu.concatenate %339, %359, %323 in 1 : vector<2x8xf32>, vector<2x32xf32>, vector<2x32xf32> -> vector<2x72xf32>
    %cst_112 = arith.constant dense<0.000000e+00> : vector<2x128xf32>
    %361 = tpu.matmul %360, %3, %cst_112 {dimension_numbers = #tpu.dot_dimension_numbers<[1], [0], [0], [1], [0, 0, 1, 1], [], []>} : vector<2x72xf32>, vector<72x128xf32>, vector<2x128xf32> -> vector<2x128xf32>
    %362 = vector.broadcast %4 : vector<1x128xf32> to vector<2x128xf32>
    %363 = arith.addf %361, %362 : vector<2x128xf32>
    %364 = vector.extract_strided_slice %363 {offsets = [0, 0], sizes = [2, 32], strides = [1, 1]} : vector<2x128xf32> to vector<2x32xf32>
    %365 = arith.negf %364 : vector<2x32xf32>
    %366 = math.exp %365 : vector<2x32xf32>
    %cst_113 = arith.constant 1.000000e+00 : f32
    %367 = vector.broadcast %cst_113 : f32 to vector<2x32xf32>
    %368 = arith.addf %367, %366 : vector<2x32xf32>
    %369 = arith.divf %367, %368 : vector<2x32xf32>
    %370 = vector.extract_strided_slice %363 {offsets = [0, 32], sizes = [2, 32], strides = [1, 1]} : vector<2x128xf32> to vector<2x32xf32>
    %371 = arith.negf %370 : vector<2x32xf32>
    %372 = math.exp %371 : vector<2x32xf32>
    %cst_114 = arith.constant 1.000000e+00 : f32
    %373 = vector.broadcast %cst_114 : f32 to vector<2x32xf32>
    %374 = arith.addf %373, %372 : vector<2x32xf32>
    %375 = arith.divf %373, %374 : vector<2x32xf32>
    %376 = vector.extract_strided_slice %363 {offsets = [0, 64], sizes = [2, 32], strides = [1, 1]} : vector<2x128xf32> to vector<2x32xf32>
    %377 = math.tanh %376 : vector<2x32xf32>
    %378 = vector.extract_strided_slice %363 {offsets = [0, 96], sizes = [2, 32], strides = [1, 1]} : vector<2x128xf32> to vector<2x32xf32>
    %379 = arith.negf %378 : vector<2x32xf32>
    %380 = math.exp %379 : vector<2x32xf32>
    %cst_115 = arith.constant 1.000000e+00 : f32
    %381 = vector.broadcast %cst_115 : f32 to vector<2x32xf32>
    %382 = arith.addf %381, %380 : vector<2x32xf32>
    %383 = arith.divf %381, %382 : vector<2x32xf32>
    %384 = arith.mulf %375, %321 : vector<2x32xf32>
    %385 = arith.mulf %369, %377 : vector<2x32xf32>
    %386 = arith.addf %384, %385 : vector<2x32xf32>
    %387 = math.tanh %386 : vector<2x32xf32>
    %388 = arith.mulf %383, %387 : vector<2x32xf32>
    %389 = tpu.concatenate %388, %359 in 1 : vector<2x32xf32>, vector<2x32xf32> -> vector<2x64xf32>
    %cst_116 = arith.constant dense<0.000000e+00> : vector<2x8xf32>
    %390 = tpu.matmul %389, %5, %cst_116 {dimension_numbers = #tpu.dot_dimension_numbers<[1], [0], [0], [1], [0, 0, 1, 1], [], []>} : vector<2x64xf32>, vector<64x8xf32>, vector<2x8xf32> -> vector<2x8xf32>
    %391 = vector.broadcast %6 : vector<1x8xf32> to vector<2x8xf32>
    %392 = arith.addf %390, %391 : vector<2x8xf32>
    %c6 = arith.constant 6 : index
    %c0_117 = arith.constant 0 : index
    %c0_118 = arith.constant 0 : index
    %393 = vector.load %arg9[%c6, %c0_117, %c0_118] : memref<8x2x8xf32, #tpu.memory_space<vmem>>, vector<1x2x8xf32>
    %394 = vector.shape_cast %393 : vector<1x2x8xf32> to vector<2x8xf32>
    %395 = vector.shape_cast %392 : vector<2x8xf32> to vector<1x2x8xf32>
    tpu.vector_store %arg9[%c6, %c0_117, %c0_118], %395 {strides = array<i32>} : memref<8x2x8xf32, #tpu.memory_space<vmem>>, vector<1x2x8xf32>,
    %c6_119 = arith.constant 6 : index
    %396 = memref.load %arg0[%c6_119] : memref<8xf32, #tpu.memory_space<smem>>
    %c6_120 = arith.constant 6 : index
    %c0_121 = arith.constant 0 : index
    %c0_122 = arith.constant 0 : index
    %397 = vector.load %arg1[%c6_120, %c0_121, %c0_122] : memref<8x2x8xf32, #tpu.memory_space<vmem>>, vector<1x2x8xf32>
    %398 = vector.shape_cast %397 : vector<1x2x8xf32> to vector<2x8xf32>
    %399 = vector.broadcast %396 : f32 to vector<2x8xf32>
    %400 = arith.mulf %399, %398 : vector<2x8xf32>
    %cst_123 = arith.constant 1.000000e+00 : f32
    %401 = arith.subf %cst_123, %396 : f32
    %402 = vector.broadcast %401 : f32 to vector<2x8xf32>
    %403 = arith.mulf %402, %392 : vector<2x8xf32>
    %404 = arith.addf %400, %403 : vector<2x8xf32>
    %cst_124 = arith.constant dense<0.000000e+00> : vector<2x32xf32>
    %405 = tpu.matmul %388, %2, %cst_124 {dimension_numbers = #tpu.dot_dimension_numbers<[1], [0], [0], [1], [0, 0, 1, 1], [], []>} : vector<2x32xf32>, vector<32x32xf32>, vector<2x32xf32> -> vector<2x32xf32>
    %406 = vector.shape_cast %405 : vector<2x32xf32> to vector<2x1x32xf32>
    %407 = vector.broadcast %406 : vector<2x1x32xf32> to vector<2x32x32xf32>
    %408 = arith.mulf %0, %407 : vector<2x32x32xf32>
    %cst_125 = arith.constant dense<0.000000e+00> : vector<2x32xf32>
    %409 = vector.multi_reduction <add>, %408, %cst_125 [2] : vector<2x32x32xf32> to vector<2x32xf32>
    %410 = arith.addf %409, %1 : vector<2x32xf32>
    %cst_126 = arith.constant dense<0xFF800000> : vector<2xf32>
    %411 = vector.multi_reduction <maximumf>, %410, %cst_126 [1] : vector<2x32xf32> to vector<2xf32>
    %412 = vector.shape_cast %411 : vector<2xf32> to vector<2x1xf32>
    %413 = vector.broadcast %412 : vector<2x1xf32> to vector<2x32xf32>
    %414 = arith.subf %410, %413 : vector<2x32xf32>
    %415 = math.exp %414 : vector<2x32xf32>
    %cst_127 = arith.constant dense<0.000000e+00> : vector<2xf32>
    %416 = vector.multi_reduction <add>, %415, %cst_127 [1] : vector<2x32xf32> to vector<2xf32>
    %417 = vector.shape_cast %416 : vector<2xf32> to vector<2x1xf32>
    %418 = tpu.reciprocal %417 {approx = true} : vector<2x1xf32> -> vector<2x1xf32>
    %419 = vector.broadcast %418 : vector<2x1xf32> to vector<2x32xf32>
    %420 = arith.mulf %415, %419 : vector<2x32xf32>
    %421 = vector.shape_cast %420 : vector<2x32xf32> to vector<2x32x1xf32>
    %422 = vector.broadcast %421 : vector<2x32x1xf32> to vector<2x32x32xf32>
    %423 = arith.mulf %422, %0 : vector<2x32x32xf32>
    %cst_128 = arith.constant dense<0.000000e+00> : vector<2x32xf32>
    %424 = vector.multi_reduction <add>, %423, %cst_128 [1] : vector<2x32x32xf32> to vector<2x32xf32>
    %425 = tpu.concatenate %404, %424, %388 in 1 : vector<2x8xf32>, vector<2x32xf32>, vector<2x32xf32> -> vector<2x72xf32>
    %cst_129 = arith.constant dense<0.000000e+00> : vector<2x128xf32>
    %426 = tpu.matmul %425, %3, %cst_129 {dimension_numbers = #tpu.dot_dimension_numbers<[1], [0], [0], [1], [0, 0, 1, 1], [], []>} : vector<2x72xf32>, vector<72x128xf32>, vector<2x128xf32> -> vector<2x128xf32>
    %427 = vector.broadcast %4 : vector<1x128xf32> to vector<2x128xf32>
    %428 = arith.addf %426, %427 : vector<2x128xf32>
    %429 = vector.extract_strided_slice %428 {offsets = [0, 0], sizes = [2, 32], strides = [1, 1]} : vector<2x128xf32> to vector<2x32xf32>
    %430 = arith.negf %429 : vector<2x32xf32>
    %431 = math.exp %430 : vector<2x32xf32>
    %cst_130 = arith.constant 1.000000e+00 : f32
    %432 = vector.broadcast %cst_130 : f32 to vector<2x32xf32>
    %433 = arith.addf %432, %431 : vector<2x32xf32>
    %434 = arith.divf %432, %433 : vector<2x32xf32>
    %435 = vector.extract_strided_slice %428 {offsets = [0, 32], sizes = [2, 32], strides = [1, 1]} : vector<2x128xf32> to vector<2x32xf32>
    %436 = arith.negf %435 : vector<2x32xf32>
    %437 = math.exp %436 : vector<2x32xf32>
    %cst_131 = arith.constant 1.000000e+00 : f32
    %438 = vector.broadcast %cst_131 : f32 to vector<2x32xf32>
    %439 = arith.addf %438, %437 : vector<2x32xf32>
    %440 = arith.divf %438, %439 : vector<2x32xf32>
    %441 = vector.extract_strided_slice %428 {offsets = [0, 64], sizes = [2, 32], strides = [1, 1]} : vector<2x128xf32> to vector<2x32xf32>
    %442 = math.tanh %441 : vector<2x32xf32>
    %443 = vector.extract_strided_slice %428 {offsets = [0, 96], sizes = [2, 32], strides = [1, 1]} : vector<2x128xf32> to vector<2x32xf32>
    %444 = arith.negf %443 : vector<2x32xf32>
    %445 = math.exp %444 : vector<2x32xf32>
    %cst_132 = arith.constant 1.000000e+00 : f32
    %446 = vector.broadcast %cst_132 : f32 to vector<2x32xf32>
    %447 = arith.addf %446, %445 : vector<2x32xf32>
    %448 = arith.divf %446, %447 : vector<2x32xf32>
    %449 = arith.mulf %440, %386 : vector<2x32xf32>
    %450 = arith.mulf %434, %442 : vector<2x32xf32>
    %451 = arith.addf %449, %450 : vector<2x32xf32>
    %452 = math.tanh %451 : vector<2x32xf32>
    %453 = arith.mulf %448, %452 : vector<2x32xf32>
    %454 = tpu.concatenate %453, %424 in 1 : vector<2x32xf32>, vector<2x32xf32> -> vector<2x64xf32>
    %cst_133 = arith.constant dense<0.000000e+00> : vector<2x8xf32>
    %455 = tpu.matmul %454, %5, %cst_133 {dimension_numbers = #tpu.dot_dimension_numbers<[1], [0], [0], [1], [0, 0, 1, 1], [], []>} : vector<2x64xf32>, vector<64x8xf32>, vector<2x8xf32> -> vector<2x8xf32>
    %456 = vector.broadcast %6 : vector<1x8xf32> to vector<2x8xf32>
    %457 = arith.addf %455, %456 : vector<2x8xf32>
    %c7 = arith.constant 7 : index
    %c0_134 = arith.constant 0 : index
    %c0_135 = arith.constant 0 : index
    %458 = vector.load %arg9[%c7, %c0_134, %c0_135] : memref<8x2x8xf32, #tpu.memory_space<vmem>>, vector<1x2x8xf32>
    %459 = vector.shape_cast %458 : vector<1x2x8xf32> to vector<2x8xf32>
    %460 = vector.shape_cast %457 : vector<2x8xf32> to vector<1x2x8xf32>
    tpu.vector_store %arg9[%c7, %c0_134, %c0_135], %460 {strides = array<i32>} : memref<8x2x8xf32, #tpu.memory_space<vmem>>, vector<1x2x8xf32>,
    return
  }
}

</mosaic_0001>

<llo_original>
// kernel: _seq2seq_forward_jit.2
$region0: #{_seq2seq_forward_jit.2}
  #allocation0 [shape = 'u32[]', space=smem, size = 0x4, offset = 0x4, fixed_abs, tag = 'smem constant byte address 0x4 - core index']
  #allocation1 [shape = 'u32[144,128]{1,0:T(1,128)}', space=vmem, size = 0x12000, scoped, tag = 'internal scratch']
  %s0 = inlined_call_operand.vmem [shape: f32[8,8,1], index: 0, kind: input, shape index: {}]
  %s1 = inlined_call_operand.vmem [shape: f32[1,128], index: 1, kind: input, shape index: {}]
  %s2 = inlined_call_operand.vmem [shape: f32[32,128], index: 2, kind: input, shape index: {}]
  %s3 = inlined_call_operand.vmem [shape: f32[1,128], index: 3, kind: input, shape index: {}]
  %s4 = inlined_call_operand.vmem [shape: f32[8,8,32], index: 4, kind: output, shape index: {}]
  %s5 = sld [smem:[#allocation0]]
  $region26: #{_seq2seq_forward_jit.2} parent=0
    _
  %s7 = ssub.s32 1, %s5
  %s8 = scalar_select 0, %s7, %s5
  // Predicated region
  $region2: #{_seq2seq_forward_jit.2} parent=0 // pred_check
    _
  $region3: #{_seq2seq_forward_jit.2} parent=0 // pred_check_branch
    %10 = sbr.rel (0) target = $region5
  $region4: #{_seq2seq_forward_jit.2} parent=0 // pred_region
    _
  $region5: #{_seq2seq_forward_jit.2} parent=0 // pred_fallthru
    _
  // Predicated region
  $region6: #{_seq2seq_forward_jit.2} parent=0 // pred_check
    _
  $region7: #{_seq2seq_forward_jit.2} parent=0 // pred_check_branch
    %12 = sbr.rel (0) target = $region9
  $region8: #{_seq2seq_forward_jit.2} parent=0 // pred_region
    _
  $region9: #{_seq2seq_forward_jit.2} parent=0 // pred_fallthru
    _
  // Predicated region
  $region10: #{_seq2seq_forward_jit.2} parent=0 // pred_check
    _
  $region11: #{_seq2seq_forward_jit.2} parent=0 // pred_check_branch
    %14 = sbr.rel (0) target = $region13
  $region12: #{_seq2seq_forward_jit.2} parent=0 // pred_region
    _
  $region13: #{_seq2seq_forward_jit.2} parent=0 // pred_fallthru
    _
  // Predicated region
  $region14: #{_seq2seq_forward_jit.2} parent=0 // pred_check
    _
  $region15: #{_seq2seq_forward_jit.2} parent=0 // pred_check_branch
    %16 = sbr.rel (0) target = $region17
  $region16: #{_seq2seq_forward_jit.2} parent=0 // pred_region
    _
  $region17: #{_seq2seq_forward_jit.2} parent=0 // pred_fallthru
    _
  %v17 = vld [vmem:[%s0] sm:$0xff]
  %v18 = vld [vmem:[%s0 + $0x8] sm:$0xff]
  %v19 = vld [vmem:[%s0 + $0x10] sm:$0xff]
  %v20 = vld [vmem:[%s0 + $0x18] sm:$0xff]
  %v21 = vld [vmem:[%s0 + $0x20] sm:$0xff]
  %v22 = vld [vmem:[%s0 + $0x28] sm:$0xff]
  %v23 = vld [vmem:[%s0 + $0x30] sm:$0xff]
  %v24 = vld [vmem:[%s0 + $0x38] sm:$0xff]
  %v25 = vld [vmem:[%s1] sm:$0x1]
  %27 = vset.pattern.permute.xlu0 0
  %28 = vperm.xlu0 %27, %v17
  %v29 = vpop.permute.xlu0 %28
  %32 = vset.pattern.permute.xlu0 0
  %33 = vperm.xlu0 %32, %v18
  %v34 = vpop.permute.xlu0 %33
  %37 = vset.pattern.permute.xlu0 0
  %38 = vperm.xlu0 %37, %v19
  %v39 = vpop.permute.xlu0 %38
  %42 = vset.pattern.permute.xlu0 0
  %43 = vperm.xlu0 %42, %v20
  %v44 = vpop.permute.xlu0 %43
  %47 = vset.pattern.permute.xlu0 0
  %48 = vperm.xlu0 %47, %v21
  %v49 = vpop.permute.xlu0 %48
  %52 = vset.pattern.permute.xlu0 0
  %53 = vperm.xlu0 %52, %v22
  %v54 = vpop.permute.xlu0 %53
  %57 = vset.pattern.permute.xlu0 0
  %58 = vperm.xlu0 %57, %v23
  %v59 = vpop.permute.xlu0 %58
  %62 = vset.pattern.permute.xlu0 0
  %63 = vperm.xlu0 %62, %v24
  %v64 = vpop.permute.xlu0 %63
  %v67 = vlaneseq
  %v68 = vshrl.u32 %v67, 7
  %v69 = vsub.s32 0, %v68
  %v70 = vrot.slane %v25, %v69
  %v72 = vmul.f32 %v29, %v70
  %v73 = vmul.f32 %v34, %v70
  %v74 = vmul.f32 %v39, %v70
  %v75 = vmul.f32 %v44, %v70
  %v76 = vmul.f32 %v49, %v70
  %v77 = vmul.f32 %v54, %v70
  %v78 = vmul.f32 %v59, %v70
  %v79 = vmul.f32 %v64, %v70
  %v80 = vld [vmem:[%s3] sm:$0x1]
  %v82 = vlaneseq
  %v83 = vshrl.u32 %v82, 7
  %v84 = vsub.s32 0, %v83
  %v85 = vrot.slane %v80, %v84
  %v87 = vadd.f32 %v72, %v85
  %v88 = vadd.f32 %v73, %v85
  %v89 = vadd.f32 %v74, %v85
  %v90 = vadd.f32 %v75, %v85
  %v91 = vadd.f32 %v76, %v85
  %v92 = vadd.f32 %v77, %v85
  %v93 = vadd.f32 %v78, %v85
  %v94 = vadd.f32 %v79, %v85
  %v95 = vld [vmem:[%s2] sm:$0xff]
  %v96 = vld [vmem:[%s2 + $0x8] sm:$0xff]
  %v97 = vld [vmem:[%s2 + $0x10] sm:$0xff]
  %v98 = vld [vmem:[%s2 + $0x18] sm:$0xff]
  %vm99 = vcmask 261120
  %v101 = vsel %vm99, 0.0, 0
  %103 = vmatprep.subr.mxu0 0.0
  %104 = vmatpush1.msra.mxu0 0.0
  %105 = vmatprep.subr.mxu0 0.0
  %106 = vmatpush1.msra.mxu0 0.0
  %107 = vmatprep.subr.mxu0 0.0
  %108 = vmatpush1.msra.mxu0 0.0
  %109 = vmatprep.subr.mxu0 0.0
  %110 = vmatpush1.msra.mxu0 0.0
  %111 = vmatprep.subr.mxu0 0.0
  %112 = vmatpush1.msra.mxu0 0.0
  %113 = vmatprep.subr.mxu0 0.0
  %114 = vmatpush1.msra.mxu0 0.0
  %115 = vmatprep.subr.mxu0 0.0
  %116 = vmatpush1.msra.mxu0 0.0
  %117 = vmatprep.subr.mxu0 0.0
  %118 = vmatpush1.msra.mxu0 0.0
  %119 = vmatprep.subr.mxu0 0.0
  %120 = vmatpush1.msra.mxu0 0.0
  %121 = vmatprep.subr.mxu0 0.0
  %122 = vmatpush1.msra.mxu0 0.0
  %123 = vmatprep.subr.mxu0 0.0
  %124 = vmatpush1.msra.mxu0 0.0
  %125 = vmatprep.subr.mxu0 0.0
  %126 = vmatpush1.msra.mxu0 0.0
  %127 = vmatprep.subr.mxu0 0.0
  %128 = vmatpush1.msra.mxu0 %v98
  %129 = vmatprep.subr.mxu0 0.0
  %130 = vmatpush1.msra.mxu0 %v97
  %131 = vmatprep.subr.mxu0 0.0
  %132 = vmatpush1.msra.mxu0 %v96
  %133 = vmatprep.subr.mxu0 0.0
  %134 = vmatpush1.msra.mxu0 %v95
  %135 = vmatprep.subr.mxu0 0.0
  %136 = vmatpush2.msra.mxu0 0.0
  %137 = vmatprep.subr.mxu0 0.0
  %138 = vmatpush2.msra.mxu0 0.0
  %139 = vmatprep.subr.mxu0 0.0
  %140 = vmatpush2.msra.mxu0 0.0
  %141 = vmatprep.subr.mxu0 0.0
  %142 = vmatpush2.msra.mxu0 0.0
  %143 = vmatprep.subr.mxu0 0.0
  %144 = vmatpush2.msra.mxu0 0.0
  %145 = vmatprep.subr.mxu0 0.0
  %146 = vmatpush2.msra.mxu0 0.0
  %147 = vmatprep.subr.mxu0 0.0
  %148 = vmatpush2.msra.mxu0 0.0
  %149 = vmatprep.subr.mxu0 0.0
  %150 = vmatpush2.msra.mxu0 0.0
  %151 = vmatprep.subr.mxu0 0.0
  %152 = vmatpush2.msra.mxu0 0.0
  %153 = vmatprep.subr.mxu0 0.0
  %154 = vmatpush2.msra.mxu0 0.0
  %155 = vmatprep.subr.mxu0 0.0
  %156 = vmatpush2.msra.mxu0 0.0
  %157 = vmatprep.subr.mxu0 0.0
  %158 = vmatpush2.msra.mxu0 0.0
  %159 = vmatprep.subr.mxu0 0.0
  %160 = vmatpush2.msra.mxu0 0.0
  %161 = vmatprep.subr.mxu0 0.0
  %162 = vmatpush2.msra.mxu0 0.0
  %163 = vmatprep.subr.mxu0 0.0
  %164 = vmatpush2.msra.mxu0 0.0
  %165 = vmatprep.subr.mxu0 0.0
  %166 = vmatpush2.msra.mxu0 0.0
  %167 = vmatprep.mubr.f32.mxu0 0.0
  %168 = vmatmul.mubr.f32.gmra.mxu0 %v101
  %v169 = vpop.f32.mrf.mxu0
  %v170 = vadd.f32 0.0, %v169
  %v171 = vpop.f32.mrf.mxu0
  %172 = vdwg.mxu0
  %v173 = vadd.f32 %v87, %v170
  %v174 = vxor.u32 %v173, 2147483648
  %v175 = vmul.f32 %v174, 1.442695
  %v176 = vpow.pop %v175
  %v177 = vadd.f32 %v176, 1.0
  %v178 = vrcp.pop %v177
  %v179 = vmul.f32 1.0, %v178
  %v180 = vtanh.pop %v173
  %v181 = vmul.f32 %v179, 0.0
  %183 = vrot.lane.b32.xlu0 %v180, 64
  %v184 = vpop.permute.xlu0 %183
  %v186 = vmul.f32 %v179, %v184
  %188 = vrot.lane.b32.xlu0 %v186, 32
  %v189 = vpop.permute.xlu0 %188
  %v191 = vadd.f32 %v181, %v189
  %v192 = vtanh.pop %v191
  %194 = vrot.lane.b32.xlu0 %v192, 64
  %v195 = vpop.permute.xlu0 %194
  %v197 = vmul.f32 %v179, %v195
  %199 = vrot.lane.b32.xlu0 %v197, 32
  %v200 = vpop.permute.xlu0 %199
  %202 = vst.msk [vmem:[%s4] sm:$0xff] %vm99, %v200
  %v203 = vsel %vm99, %v200, 0
  %205 = vmatprep.subr.mxu0 0.0
  %206 = vmatpush1.msra.mxu0 0.0
  %207 = vmatprep.subr.mxu0 0.0
  %208 = vmatpush1.msra.mxu0 0.0
  %209 = vmatprep.subr.mxu0 0.0
  %210 = vmatpush1.msra.mxu0 0.0
  %211 = vmatprep.subr.mxu0 0.0
  %212 = vmatpush1.msra.mxu0 0.0
  %213 = vmatprep.subr.mxu0 0.0
  %214 = vmatpush1.msra.mxu0 0.0
  %215 = vmatprep.subr.mxu0 0.0
  %216 = vmatpush1.msra.mxu0 0.0
  %217 = vmatprep.subr.mxu0 0.0
  %218 = vmatpush1.msra.mxu0 0.0
  %219 = vmatprep.subr.mxu0 0.0
  %220 = vmatpush1.msra.mxu0 0.0
  %221 = vmatprep.subr.mxu0 0.0
  %222 = vmatpush1.msra.mxu0 0.0
  %223 = vmatprep.subr.mxu0 0.0
  %224 = vmatpush1.msra.mxu0 0.0
  %225 = vmatprep.subr.mxu0 0.0
  %226 = vmatpush1.msra.mxu0 0.0
  %227 = vmatprep.subr.mxu0 0.0
  %228 = vmatpush1.msra.mxu0 0.0
  %229 = vmatprep.subr.mxu0 0.0
  %230 = vmatpush1.msra.mxu0 %v98
  %231 = vmatprep.subr.mxu0 0.0
  %232 = vmatpush1.msra.mxu0 %v97
  %233 = vmatprep.subr.mxu0 0.0
  %234 = vmatpush1.msra.mxu0 %v96
  %235 = vmatprep.subr.mxu0 0.0
  %236 = vmatpush1.msra.mxu0 %v95
  %237 = vmatprep.subr.mxu0 0.0
  %238 = vmatpush2.msra.mxu0 0.0
  %239 = vmatprep.subr.mxu0 0.0
  %240 = vmatpush2.msra.mxu0 0.0
  %241 = vmatprep.subr.mxu0 0.0
  %242 = vmatpush2.msra.mxu0 0.0
  %243 = vmatprep.subr.mxu0 0.0
  %244 = vmatpush2.msra.mxu0 0.0
  %245 = vmatprep.subr.mxu0 0.0
  %246 = vmatpush2.msra.mxu0 0.0
  %247 = vmatprep.subr.mxu0 0.0
  %248 = vmatpush2.msra.mxu0 0.0
  %249 = vmatprep.subr.mxu0 0.0
  %250 = vmatpush2.msra.mxu0 0.0
  %251 = vmatprep.subr.mxu0 0.0
  %252 = vmatpush2.msra.mxu0 0.0
  %253 = vmatprep.subr.mxu0 0.0
  %254 = vmatpush2.msra.mxu0 0.0
  %255 = vmatprep.subr.mxu0 0.0
  %256 = vmatpush2.msra.mxu0 0.0
  %257 = vmatprep.subr.mxu0 0.0
  %258 = vmatpush2.msra.mxu0 0.0
  %259 = vmatprep.subr.mxu0 0.0
  %260 = vmatpush2.msra.mxu0 0.0
  %261 = vmatprep.subr.mxu0 0.0
  %262 = vmatpush2.msra.mxu0 0.0
  %263 = vmatprep.subr.mxu0 0.0
  %264 = vmatpush2.msra.mxu0 0.0
  %265 = vmatprep.subr.mxu0 0.0
  %266 = vmatpush2.msra.mxu0 0.0
  %267 = vmatprep.subr.mxu0 0.0
  %268 = vmatpush2.msra.mxu0 0.0
  %269 = vmatprep.mubr.f32.mxu0 0.0
  %270 = vmatmul.mubr.f32.gmra.mxu0 %v203
  %v271 = vpop.f32.mrf.mxu0
  %v272 = vadd.f32 0.0, %v271
  %v273 = vpop.f32.mrf.mxu0
  %274 = vdwg.mxu0
  %v275 = vadd.f32 %v88, %v272
  %v276 = vxor.u32 %v275, 2147483648
  %v277 = vmul.f32 %v276, 1.442695
  %v278 = vpow.pop %v277
  %v279 = vadd.f32 %v278, 1.0
  %v280 = vrcp.pop %v279
  %v281 = vmul.f32 1.0, %v280
  %v282 = vtanh.pop %v275
  %v283 = vmul.f32 %v281, %v191
  %285 = vrot.lane.b32.xlu0 %v282, 64
  %v286 = vpop.permute.xlu0 %285
  %v288 = vmul.f32 %v281, %v286
  %290 = vrot.lane.b32.xlu0 %v288, 32
  %v291 = vpop.permute.xlu0 %290
  %v293 = vadd.f32 %v283, %v291
  %v294 = vtanh.pop %v293
  %296 = vrot.lane.b32.xlu0 %v294, 64
  %v297 = vpop.permute.xlu0 %296
  %v299 = vmul.f32 %v281, %v297
  %301 = vrot.lane.b32.xlu0 %v299, 32
  %v302 = vpop.permute.xlu0 %301
  %s304 = scalar_lea.vmem %s4, 8
  %305 = vst.msk [vmem:[%s304] sm:$0xff] %vm99, %v302
  %v306 = vsel %vm99, %v302, 0
  %308 = vmatprep.subr.mxu0 0.0
  %309 = vmatpush1.msra.mxu0 0.0
  %310 = vmatprep.subr.mxu0 0.0
  %311 = vmatpush1.msra.mxu0 0.0
  %312 = vmatprep.subr.mxu0 0.0
  %313 = vmatpush1.msra.mxu0 0.0
  %314 = vmatprep.subr.mxu0 0.0
  %315 = vmatpush1.msra.mxu0 0.0
  %316 = vmatprep.subr.mxu0 0.0
  %317 = vmatpush1.msra.mxu0 0.0
  %318 = vmatprep.subr.mxu0 0.0
  %319 = vmatpush1.msra.mxu0 0.0
  %320 = vmatprep.subr.mxu0 0.0
  %321 = vmatpush1.msra.mxu0 0.0
  %322 = vmatprep.subr.mxu0 0.0
  %323 = vmatpush1.msra.mxu0 0.0
  %324 = vmatprep.subr.mxu0 0.0
  %325 = vmatpush1.msra.mxu0 0.0
  %326 = vmatprep.subr.mxu0 0.0
  %327 = vmatpush1.msra.mxu0 0.0
  %328 = vmatprep.subr.mxu0 0.0
  %329 = vmatpush1.msra.mxu0 0.0
  %330 = vmatprep.subr.mxu0 0.0
  %331 = vmatpush1.msra.mxu0 0.0
  %332 = vmatprep.subr.mxu0 0.0
  %333 = vmatpush1.msra.mxu0 %v98
  %334 = vmatprep.subr.mxu0 0.0
  %335 = vmatpush1.msra.mxu0 %v97
  %336 = vmatprep.subr.mxu0 0.0
  %337 = vmatpush1.msra.mxu0 %v96
  %338 = vmatprep.subr.mxu0 0.0
  %339 = vmatpush1.msra.mxu0 %v95
  %340 = vmatprep.subr.mxu0 0.0
  %341 = vmatpush2.msra.mxu0 0.0
  %342 = vmatprep.subr.mxu0 0.0
  %343 = vmatpush2.msra.mxu0 0.0
  %344 = vmatprep.subr.mxu0 0.0
  %345 = vmatpush2.msra.mxu0 0.0
  %346 = vmatprep.subr.mxu0 0.0
  %347 = vmatpush2.msra.mxu0 0.0
  %348 = vmatprep.subr.mxu0 0.0
  %349 = vmatpush2.msra.mxu0 0.0
  %350 = vmatprep.subr.mxu0 0.0
  %351 = vmatpush2.msra.mxu0 0.0
  %352 = vmatprep.subr.mxu0 0.0
  %353 = vmatpush2.msra.mxu0 0.0
  %354 = vmatprep.subr.mxu0 0.0
  %355 = vmatpush2.msra.mxu0 0.0
  %356 = vmatprep.subr.mxu0 0.0
  %357 = vmatpush2.msra.mxu0 0.0
  %358 = vmatprep.subr.mxu0 0.0
  %359 = vmatpush2.msra.mxu0 0.0
  %360 = vmatprep.subr.mxu0 0.0
  %361 = vmatpush2.msra.mxu0 0.0
  %362 = vmatprep.subr.mxu0 0.0
  %363 = vmatpush2.msra.mxu0 0.0
  %364 = vmatprep.subr.mxu0 0.0
  %365 = vmatpush2.msra.mxu0 0.0
  %366 = vmatprep.subr.mxu0 0.0
  %367 = vmatpush2.msra.mxu0 0.0
  %368 = vmatprep.subr.mxu0 0.0
  %369 = vmatpush2.msra.mxu0 0.0
  %370 = vmatprep.subr.mxu0 0.0
  %371 = vmatpush2.msra.mxu0 0.0
  %372 = vmatprep.mubr.f32.mxu0 0.0
  %373 = vmatmul.mubr.f32.gmra.mxu0 %v306
  %v374 = vpop.f32.mrf.mxu0
  %v375 = vadd.f32 0.0, %v374
  %v376 = vpop.f32.mrf.mxu0
  %377 = vdwg.mxu0
  %v378 = vadd.f32 %v89, %v375
  %v379 = vxor.u32 %v378, 2147483648
  %v380 = vmul.f32 %v379, 1.442695
  %v381 = vpow.pop %v380
  %v382 = vadd.f32 %v381, 1.0
  %v383 = vrcp.pop %v382
  %v384 = vmul.f32 1.0, %v383
  %v385 = vtanh.pop %v378
  %v386 = vmul.f32 %v384, %v293
  %388 = vrot.lane.b32.xlu0 %v385, 64
  %v389 = vpop.permute.xlu0 %388
  %v391 = vmul.f32 %v384, %v389
  %393 = vrot.lane.b32.xlu0 %v391, 32
  %v394 = vpop.permute.xlu0 %393
  %v396 = vadd.f32 %v386, %v394
  %v397 = vtanh.pop %v396
  %399 = vrot.lane.b32.xlu0 %v397, 64
  %v400 = vpop.permute.xlu0 %399
  %v402 = vmul.f32 %v384, %v400
  %404 = vrot.lane.b32.xlu0 %v402, 32
  %v405 = vpop.permute.xlu0 %404
  %s407 = scalar_lea.vmem %s4, 16
  %408 = vst.msk [vmem:[%s407] sm:$0xff] %vm99, %v405
  %v409 = vsel %vm99, %v405, 0
  %411 = vmatprep.subr.mxu0 0.0
  %412 = vmatpush1.msra.mxu0 0.0
  %413 = vmatprep.subr.mxu0 0.0
  %414 = vmatpush1.msra.mxu0 0.0
  %415 = vmatprep.subr.mxu0 0.0
  %416 = vmatpush1.msra.mxu0 0.0
  %417 = vmatprep.subr.mxu0 0.0
  %418 = vmatpush1.msra.mxu0 0.0
  %419 = vmatprep.subr.mxu0 0.0
  %420 = vmatpush1.msra.mxu0 0.0
  %421 = vmatprep.subr.mxu0 0.0
  %422 = vmatpush1.msra.mxu0 0.0
  %423 = vmatprep.subr.mxu0 0.0
  %424 = vmatpush1.msra.mxu0 0.0
  %425 = vmatprep.subr.mxu0 0.0
  %426 = vmatpush1.msra.mxu0 0.0
  %427 = vmatprep.subr.mxu0 0.0
  %428 = vmatpush1.msra.mxu0 0.0
  %429 = vmatprep.subr.mxu0 0.0
  %430 = vmatpush1.msra.mxu0 0.0
  %431 = vmatprep.subr.mxu0 0.0
  %432 = vmatpush1.msra.mxu0 0.0
  %433 = vmatprep.subr.mxu0 0.0
  %434 = vmatpush1.msra.mxu0 0.0
  %435 = vmatprep.subr.mxu0 0.0
  %436 = vmatpush1.msra.mxu0 %v98
  %437 = vmatprep.subr.mxu0 0.0
  %438 = vmatpush1.msra.mxu0 %v97
  %439 = vmatprep.subr.mxu0 0.0
  %440 = vmatpush1.msra.mxu0 %v96
  %441 = vmatprep.subr.mxu0 0.0
  %442 = vmatpush1.msra.mxu0 %v95
  %443 = vmatprep.subr.mxu0 0.0
  %444 = vmatpush2.msra.mxu0 0.0
  %445 = vmatprep.subr.mxu0 0.0
  %446 = vmatpush2.msra.mxu0 0.0
  %447 = vmatprep.subr.mxu0 0.0
  %448 = vmatpush2.msra.mxu0 0.0
  %449 = vmatprep.subr.mxu0 0.0
  %450 = vmatpush2.msra.mxu0 0.0
  %451 = vmatprep.subr.mxu0 0.0
  %452 = vmatpush2.msra.mxu0 0.0
  %453 = vmatprep.subr.mxu0 0.0
  %454 = vmatpush2.msra.mxu0 0.0
  %455 = vmatprep.subr.mxu0 0.0
  %456 = vmatpush2.msra.mxu0 0.0
  %457 = vmatprep.subr.mxu0 0.0
  %458 = vmatpush2.msra.mxu0 0.0
  %459 = vmatprep.subr.mxu0 0.0
  %460 = vmatpush2.msra.mxu0 0.0
  %461 = vmatprep.subr.mxu0 0.0
  %462 = vmatpush2.msra.mxu0 0.0
  %463 = vmatprep.subr.mxu0 0.0
  %464 = vmatpush2.msra.mxu0 0.0
  %465 = vmatprep.subr.mxu0 0.0
  %466 = vmatpush2.msra.mxu0 0.0
  %467 = vmatprep.subr.mxu0 0.0
  %468 = vmatpush2.msra.mxu0 0.0
  %469 = vmatprep.subr.mxu0 0.0
  %470 = vmatpush2.msra.mxu0 0.0
  %471 = vmatprep.subr.mxu0 0.0
  %472 = vmatpush2.msra.mxu0 0.0
  %473 = vmatprep.subr.mxu0 0.0
  %474 = vmatpush2.msra.mxu0 0.0
  %475 = vmatprep.mubr.f32.mxu0 0.0
  %476 = vmatmul.mubr.f32.gmra.mxu0 %v409
  %v477 = vpop.f32.mrf.mxu0
  %v478 = vadd.f32 0.0, %v477
  %v479 = vpop.f32.mrf.mxu0
  %480 = vdwg.mxu0
  %v481 = vadd.f32 %v90, %v478
  %v482 = vxor.u32 %v481, 2147483648
  %v483 = vmul.f32 %v482, 1.442695
  %v484 = vpow.pop %v483
  %v485 = vadd.f32 %v484, 1.0
  %v486 = vrcp.pop %v485
  %v487 = vmul.f32 1.0, %v486
  %v488 = vtanh.pop %v481
  %v489 = vmul.f32 %v487, %v396
  %491 = vrot.lane.b32.xlu0 %v488, 64
  %v492 = vpop.permute.xlu0 %491
  %v494 = vmul.f32 %v487, %v492
  %496 = vrot.lane.b32.xlu0 %v494, 32
  %v497 = vpop.permute.xlu0 %496
  %v499 = vadd.f32 %v489, %v497
  %v500 = vtanh.pop %v499
  %502 = vrot.lane.b32.xlu0 %v500, 64
  %v503 = vpop.permute.xlu0 %502
  %v505 = vmul.f32 %v487, %v503
  %507 = vrot.lane.b32.xlu0 %v505, 32
  %v508 = vpop.permute.xlu0 %507
  %s510 = scalar_lea.vmem %s4, 24
  %511 = vst.msk [vmem:[%s510] sm:$0xff] %vm99, %v508
  %v512 = vsel %vm99, %v508, 0
  %514 = vmatprep.subr.mxu0 0.0
  %515 = vmatpush1.msra.mxu0 0.0
  %516 = vmatprep.subr.mxu0 0.0
  %517 = vmatpush1.msra.mxu0 0.0
  %518 = vmatprep.subr.mxu0 0.0
  %519 = vmatpush1.msra.mxu0 0.0
  %520 = vmatprep.subr.mxu0 0.0
  %521 = vmatpush1.msra.mxu0 0.0
  %522 = vmatprep.subr.mxu0 0.0
  %523 = vmatpush1.msra.mxu0 0.0
  %524 = vmatprep.subr.mxu0 0.0
  %525 = vmatpush1.msra.mxu0 0.0
  %526 = vmatprep.subr.mxu0 0.0
  %527 = vmatpush1.msra.mxu0 0.0
  %528 = vmatprep.subr.mxu0 0.0
  %529 = vmatpush1.msra.mxu0 0.0
  %530 = vmatprep.subr.mxu0 0.0
  %531 = vmatpush1.msra.mxu0 0.0
  %532 = vmatprep.subr.mxu0 0.0
  %533 = vmatpush1.msra.mxu0 0.0
  %534 = vmatprep.subr.mxu0 0.0
  %535 = vmatpush1.msra.mxu0 0.0
  %536 = vmatprep.subr.mxu0 0.0
  %537 = vmatpush1.msra.mxu0 0.0
  %538 = vmatprep.subr.mxu0 0.0
  %539 = vmatpush1.msra.mxu0 %v98
  %540 = vmatprep.subr.mxu0 0.0
  %541 = vmatpush1.msra.mxu0 %v97
  %542 = vmatprep.subr.mxu0 0.0
  %543 = vmatpush1.msra.mxu0 %v96
  %544 = vmatprep.subr.mxu0 0.0
  %545 = vmatpush1.msra.mxu0 %v95
  %546 = vmatprep.subr.mxu0 0.0
  %547 = vmatpush2.msra.mxu0 0.0
  %548 = vmatprep.subr.mxu0 0.0
  %549 = vmatpush2.msra.mxu0 0.0
  %550 = vmatprep.subr.mxu0 0.0
  %551 = vmatpush2.msra.mxu0 0.0
  %552 = vmatprep.subr.mxu0 0.0
  %553 = vmatpush2.msra.mxu0 0.0
  %554 = vmatprep.subr.mxu0 0.0
  %555 = vmatpush2.msra.mxu0 0.0
  %556 = vmatprep.subr.mxu0 0.0
  %557 = vmatpush2.msra.mxu0 0.0
  %558 = vmatprep.subr.mxu0 0.0
  %559 = vmatpush2.msra.mxu0 0.0
  %560 = vmatprep.subr.mxu0 0.0
  %561 = vmatpush2.msra.mxu0 0.0
  %562 = vmatprep.subr.mxu0 0.0
  %563 = vmatpush2.msra.mxu0 0.0
  %564 = vmatprep.subr.mxu0 0.0
  %565 = vmatpush2.msra.mxu0 0.0
  %566 = vmatprep.subr.mxu0 0.0
  %567 = vmatpush2.msra.mxu0 0.0
  %568 = vmatprep.subr.mxu0 0.0
  %569 = vmatpush2.msra.mxu0 0.0
  %570 = vmatprep.subr.mxu0 0.0
  %571 = vmatpush2.msra.mxu0 0.0
  %572 = vmatprep.subr.mxu0 0.0
  %573 = vmatpush2.msra.mxu0 0.0
  %574 = vmatprep.subr.mxu0 0.0
  %575 = vmatpush2.msra.mxu0 0.0
  %576 = vmatprep.subr.mxu0 0.0
  %577 = vmatpush2.msra.mxu0 0.0
  %578 = vmatprep.mubr.f32.mxu0 0.0
  %579 = vmatmul.mubr.f32.gmra.mxu0 %v512
  %v580 = vpop.f32.mrf.mxu0
  %v581 = vadd.f32 0.0, %v580
  %v582 = vpop.f32.mrf.mxu0
  %583 = vdwg.mxu0
  %v584 = vadd.f32 %v91, %v581
  %v585 = vxor.u32 %v584, 2147483648
  %v586 = vmul.f32 %v585, 1.442695
  %v587 = vpow.pop %v586
  %v588 = vadd.f32 %v587, 1.0
  %v589 = vrcp.pop %v588
  %v590 = vmul.f32 1.0, %v589
  %v591 = vtanh.pop %v584
  %v592 = vmul.f32 %v590, %v499
  %594 = vrot.lane.b32.xlu0 %v591, 64
  %v595 = vpop.permute.xlu0 %594
  %v597 = vmul.f32 %v590, %v595
  %599 = vrot.lane.b32.xlu0 %v597, 32
  %v600 = vpop.permute.xlu0 %599
  %v602 = vadd.f32 %v592, %v600
  %v603 = vtanh.pop %v602
  %605 = vrot.lane.b32.xlu0 %v603, 64
  %v606 = vpop.permute.xlu0 %605
  %v608 = vmul.f32 %v590, %v606
  %610 = vrot.lane.b32.xlu0 %v608, 32
  %v611 = vpop.permute.xlu0 %610
  %s613 = scalar_lea.vmem %s4, 32
  %614 = vst.msk [vmem:[%s613] sm:$0xff] %vm99, %v611
  %v615 = vsel %vm99, %v611, 0
  %617 = vmatprep.subr.mxu0 0.0
  %618 = vmatpush1.msra.mxu0 0.0
  %619 = vmatprep.subr.mxu0 0.0
  %620 = vmatpush1.msra.mxu0 0.0
  %621 = vmatprep.subr.mxu0 0.0
  %622 = vmatpush1.msra.mxu0 0.0
  %623 = vmatprep.subr.mxu0 0.0
  %624 = vmatpush1.msra.mxu0 0.0
  %625 = vmatprep.subr.mxu0 0.0
  %626 = vmatpush1.msra.mxu0 0.0
  %627 = vmatprep.subr.mxu0 0.0
  %628 = vmatpush1.msra.mxu0 0.0
  %629 = vmatprep.subr.mxu0 0.0
  %630 = vmatpush1.msra.mxu0 0.0
  %631 = vmatprep.subr.mxu0 0.0
  %632 = vmatpush1.msra.mxu0 0.0
  %633 = vmatprep.subr.mxu0 0.0
  %634 = vmatpush1.msra.mxu0 0.0
  %635 = vmatprep.subr.mxu0 0.0
  %636 = vmatpush1.msra.mxu0 0.0
  %637 = vmatprep.subr.mxu0 0.0
  %638 = vmatpush1.msra.mxu0 0.0
  %639 = vmatprep.subr.mxu0 0.0
  %640 = vmatpush1.msra.mxu0 0.0
  %641 = vmatprep.subr.mxu0 0.0
  %642 = vmatpush1.msra.mxu0 %v98
  %643 = vmatprep.subr.mxu0 0.0
  %644 = vmatpush1.msra.mxu0 %v97
  %645 = vmatprep.subr.mxu0 0.0
  %646 = vmatpush1.msra.mxu0 %v96
  %647 = vmatprep.subr.mxu0 0.0
  %648 = vmatpush1.msra.mxu0 %v95
  %649 = vmatprep.subr.mxu0 0.0
  %650 = vmatpush2.msra.mxu0 0.0
  %651 = vmatprep.subr.mxu0 0.0
  %652 = vmatpush2.msra.mxu0 0.0
  %653 = vmatprep.subr.mxu0 0.0
  %654 = vmatpush2.msra.mxu0 0.0
  %655 = vmatprep.subr.mxu0 0.0
  %656 = vmatpush2.msra.mxu0 0.0
  %657 = vmatprep.subr.mxu0 0.0
  %658 = vmatpush2.msra.mxu0 0.0
  %659 = vmatprep.subr.mxu0 0.0
  %660 = vmatpush2.msra.mxu0 0.0
  %661 = vmatprep.subr.mxu0 0.0
  %662 = vmatpush2.msra.mxu0 0.0
  %663 = vmatprep.subr.mxu0 0.0
  %664 = vmatpush2.msra.mxu0 0.0
  %665 = vmatprep.subr.mxu0 0.0
  %666 = vmatpush2.msra.mxu0 0.0
  %667 = vmatprep.subr.mxu0 0.0
  %668 = vmatpush2.msra.mxu0 0.0
  %669 = vmatprep.subr.mxu0 0.0
  %670 = vmatpush2.msra.mxu0 0.0
  %671 = vmatprep.subr.mxu0 0.0
  %672 = vmatpush2.msra.mxu0 0.0
  %673 = vmatprep.subr.mxu0 0.0
  %674 = vmatpush2.msra.mxu0 0.0
  %675 = vmatprep.subr.mxu0 0.0
  %676 = vmatpush2.msra.mxu0 0.0
  %677 = vmatprep.subr.mxu0 0.0
  %678 = vmatpush2.msra.mxu0 0.0
  %679 = vmatprep.subr.mxu0 0.0
  %680 = vmatpush2.msra.mxu0 0.0
  %681 = vmatprep.mubr.f32.mxu0 0.0
  %682 = vmatmul.mubr.f32.gmra.mxu0 %v615
  %v683 = vpop.f32.mrf.mxu0
  %v684 = vadd.f32 0.0, %v683
  %v685 = vpop.f32.mrf.mxu0
  %686 = vdwg.mxu0
  %v687 = vadd.f32 %v92, %v684
  %v688 = vxor.u32 %v687, 2147483648
  %v689 = vmul.f32 %v688, 1.442695
  %v690 = vpow.pop %v689
  %v691 = vadd.f32 %v690, 1.0
  %v692 = vrcp.pop %v691
  %v693 = vmul.f32 1.0, %v692
  %v694 = vtanh.pop %v687
  %v695 = vmul.f32 %v693, %v602
  %697 = vrot.lane.b32.xlu0 %v694, 64
  %v698 = vpop.permute.xlu0 %697
  %v700 = vmul.f32 %v693, %v698
  %702 = vrot.lane.b32.xlu0 %v700, 32
  %v703 = vpop.permute.xlu0 %702
  %v705 = vadd.f32 %v695, %v703
  %v706 = vtanh.pop %v705
  %708 = vrot.lane.b32.xlu0 %v706, 64
  %v709 = vpop.permute.xlu0 %708
  %v711 = vmul.f32 %v693, %v709
  %713 = vrot.lane.b32.xlu0 %v711, 32
  %v714 = vpop.permute.xlu0 %713
  %s716 = scalar_lea.vmem %s4, 40
  %717 = vst.msk [vmem:[%s716] sm:$0xff] %vm99, %v714
  %v718 = vsel %vm99, %v714, 0
  %720 = vmatprep.subr.mxu0 0.0
  %721 = vmatpush1.msra.mxu0 0.0
  %722 = vmatprep.subr.mxu0 0.0
  %723 = vmatpush1.msra.mxu0 0.0
  %724 = vmatprep.subr.mxu0 0.0
  %725 = vmatpush1.msra.mxu0 0.0
  %726 = vmatprep.subr.mxu0 0.0
  %727 = vmatpush1.msra.mxu0 0.0
  %728 = vmatprep.subr.mxu0 0.0
  %729 = vmatpush1.msra.mxu0 0.0
  %730 = vmatprep.subr.mxu0 0.0
  %731 = vmatpush1.msra.mxu0 0.0
  %732 = vmatprep.subr.mxu0 0.0
  %733 = vmatpush1.msra.mxu0 0.0
  %734 = vmatprep.subr.mxu0 0.0
  %735 = vmatpush1.msra.mxu0 0.0
  %736 = vmatprep.subr.mxu0 0.0
  %737 = vmatpush1.msra.mxu0 0.0
  %738 = vmatprep.subr.mxu0 0.0
  %739 = vmatpush1.msra.mxu0 0.0
  %740 = vmatprep.subr.mxu0 0.0
  %741 = vmatpush1.msra.mxu0 0.0
  %742 = vmatprep.subr.mxu0 0.0
  %743 = vmatpush1.msra.mxu0 0.0
  %744 = vmatprep.subr.mxu0 0.0
  %745 = vmatpush1.msra.mxu0 %v98
  %746 = vmatprep.subr.mxu0 0.0
  %747 = vmatpush1.msra.mxu0 %v97
  %748 = vmatprep.subr.mxu0 0.0
  %749 = vmatpush1.msra.mxu0 %v96
  %750 = vmatprep.subr.mxu0 0.0
  %751 = vmatpush1.msra.mxu0 %v95
  %752 = vmatprep.subr.mxu0 0.0
  %753 = vmatpush2.msra.mxu0 0.0
  %754 = vmatprep.subr.mxu0 0.0
  %755 = vmatpush2.msra.mxu0 0.0
  %756 = vmatprep.subr.mxu0 0.0
  %757 = vmatpush2.msra.mxu0 0.0
  %758 = vmatprep.subr.mxu0 0.0
  %759 = vmatpush2.msra.mxu0 0.0
  %760 = vmatprep.subr.mxu0 0.0
  %761 = vmatpush2.msra.mxu0 0.0
  %762 = vmatprep.subr.mxu0 0.0
  %763 = vmatpush2.msra.mxu0 0.0
  %764 = vmatprep.subr.mxu0 0.0
  %765 = vmatpush2.msra.mxu0 0.0
  %766 = vmatprep.subr.mxu0 0.0
  %767 = vmatpush2.msra.mxu0 0.0
  %768 = vmatprep.subr.mxu0 0.0
  %769 = vmatpush2.msra.mxu0 0.0
  %770 = vmatprep.subr.mxu0 0.0
  %771 = vmatpush2.msra.mxu0 0.0
  %772 = vmatprep.subr.mxu0 0.0
  %773 = vmatpush2.msra.mxu0 0.0
  %774 = vmatprep.subr.mxu0 0.0
  %775 = vmatpush2.msra.mxu0 0.0
  %776 = vmatprep.subr.mxu0 0.0
  %777 = vmatpush2.msra.mxu0 0.0
  %778 = vmatprep.subr.mxu0 0.0
  %779 = vmatpush2.msra.mxu0 0.0
  %780 = vmatprep.subr.mxu0 0.0
  %781 = vmatpush2.msra.mxu0 0.0
  %782 = vmatprep.subr.mxu0 0.0
  %783 = vmatpush2.msra.mxu0 0.0
  %784 = vmatprep.mubr.f32.mxu0 0.0
  %785 = vmatmul.mubr.f32.gmra.mxu0 %v718
  %v786 = vpop.f32.mrf.mxu0
  %v787 = vadd.f32 0.0, %v786
  %v788 = vpop.f32.mrf.mxu0
  %789 = vdwg.mxu0
  %v790 = vadd.f32 %v93, %v787
  %v791 = vxor.u32 %v790, 2147483648
  %v792 = vmul.f32 %v791, 1.442695
  %v793 = vpow.pop %v792
  %v794 = vadd.f32 %v793, 1.0
  %v795 = vrcp.pop %v794
  %v796 = vmul.f32 1.0, %v795
  %v797 = vtanh.pop %v790
  %v798 = vmul.f32 %v796, %v705
  %800 = vrot.lane.b32.xlu0 %v797, 64
  %v801 = vpop.permute.xlu0 %800
  %v803 = vmul.f32 %v796, %v801
  %805 = vrot.lane.b32.xlu0 %v803, 32
  %v806 = vpop.permute.xlu0 %805
  %v808 = vadd.f32 %v798, %v806
  %v809 = vtanh.pop %v808
  %811 = vrot.lane.b32.xlu0 %v809, 64
  %v812 = vpop.permute.xlu0 %811
  %v814 = vmul.f32 %v796, %v812
  %816 = vrot.lane.b32.xlu0 %v814, 32
  %v817 = vpop.permute.xlu0 %816
  %s819 = scalar_lea.vmem %s4, 48
  %820 = vst.msk [vmem:[%s819] sm:$0xff] %vm99, %v817
  %v821 = vsel %vm99, %v817, 0
  %823 = vmatprep.subr.mxu0 0.0
  %824 = vmatpush1.msra.mxu0 0.0
  %825 = vmatprep.subr.mxu0 0.0
  %826 = vmatpush1.msra.mxu0 0.0
  %827 = vmatprep.subr.mxu0 0.0
  %828 = vmatpush1.msra.mxu0 0.0
  %829 = vmatprep.subr.mxu0 0.0
  %830 = vmatpush1.msra.mxu0 0.0
  %831 = vmatprep.subr.mxu0 0.0
  %832 = vmatpush1.msra.mxu0 0.0
  %833 = vmatprep.subr.mxu0 0.0
  %834 = vmatpush1.msra.mxu0 0.0
  %835 = vmatprep.subr.mxu0 0.0
  %836 = vmatpush1.msra.mxu0 0.0
  %837 = vmatprep.subr.mxu0 0.0
  %838 = vmatpush1.msra.mxu0 0.0
  %839 = vmatprep.subr.mxu0 0.0
  %840 = vmatpush1.msra.mxu0 0.0
  %841 = vmatprep.subr.mxu0 0.0
  %842 = vmatpush1.msra.mxu0 0.0
  %843 = vmatprep.subr.mxu0 0.0
  %844 = vmatpush1.msra.mxu0 0.0
  %845 = vmatprep.subr.mxu0 0.0
  %846 = vmatpush1.msra.mxu0 0.0
  %847 = vmatprep.subr.mxu0 0.0
  %848 = vmatpush1.msra.mxu0 %v98
  %849 = vmatprep.subr.mxu0 0.0
  %850 = vmatpush1.msra.mxu0 %v97
  %851 = vmatprep.subr.mxu0 0.0
  %852 = vmatpush1.msra.mxu0 %v96
  %853 = vmatprep.subr.mxu0 0.0
  %854 = vmatpush1.msra.mxu0 %v95
  %855 = vmatprep.subr.mxu0 0.0
  %856 = vmatpush2.msra.mxu0 0.0
  %857 = vmatprep.subr.mxu0 0.0
  %858 = vmatpush2.msra.mxu0 0.0
  %859 = vmatprep.subr.mxu0 0.0
  %860 = vmatpush2.msra.mxu0 0.0
  %861 = vmatprep.subr.mxu0 0.0
  %862 = vmatpush2.msra.mxu0 0.0
  %863 = vmatprep.subr.mxu0 0.0
  %864 = vmatpush2.msra.mxu0 0.0
  %865 = vmatprep.subr.mxu0 0.0
  %866 = vmatpush2.msra.mxu0 0.0
  %867 = vmatprep.subr.mxu0 0.0
  %868 = vmatpush2.msra.mxu0 0.0
  %869 = vmatprep.subr.mxu0 0.0
  %870 = vmatpush2.msra.mxu0 0.0
  %871 = vmatprep.subr.mxu0 0.0
  %872 = vmatpush2.msra.mxu0 0.0
  %873 = vmatprep.subr.mxu0 0.0
  %874 = vmatpush2.msra.mxu0 0.0
  %875 = vmatprep.subr.mxu0 0.0
  %876 = vmatpush2.msra.mxu0 0.0
  %877 = vmatprep.subr.mxu0 0.0
  %878 = vmatpush2.msra.mxu0 0.0
  %879 = vmatprep.subr.mxu0 0.0
  %880 = vmatpush2.msra.mxu0 0.0
  %881 = vmatprep.subr.mxu0 0.0
  %882 = vmatpush2.msra.mxu0 0.0
  %883 = vmatprep.subr.mxu0 0.0
  %884 = vmatpush2.msra.mxu0 0.0
  %885 = vmatprep.subr.mxu0 0.0
  %886 = vmatpush2.msra.mxu0 0.0
  %887 = vmatprep.mubr.f32.mxu0 0.0
  %888 = vmatmul.mubr.f32.gmra.mxu0 %v821
  %v889 = vpop.f32.mrf.mxu0
  %v890 = vadd.f32 0.0, %v889
  %v891 = vpop.f32.mrf.mxu0
  %892 = vdwg.mxu0
  %v893 = vadd.f32 %v94, %v890
  %v894 = vxor.u32 %v893, 2147483648
  %v895 = vmul.f32 %v894, 1.442695
  %v896 = vpow.pop %v895
  %v897 = vadd.f32 %v896, 1.0
  %v898 = vrcp.pop %v897
  %v899 = vmul.f32 1.0, %v898
  %v900 = vtanh.pop %v893
  %v901 = vmul.f32 %v899, %v808
  %903 = vrot.lane.b32.xlu0 %v900, 64
  %v904 = vpop.permute.xlu0 %903
  %v906 = vmul.f32 %v899, %v904
  %908 = vrot.lane.b32.xlu0 %v906, 32
  %v909 = vpop.permute.xlu0 %908
  %v911 = vadd.f32 %v901, %v909
  %v912 = vtanh.pop %v911
  %914 = vrot.lane.b32.xlu0 %v912, 64
  %v915 = vpop.permute.xlu0 %914
  %v917 = vmul.f32 %v899, %v915
  %919 = vrot.lane.b32.xlu0 %v917, 32
  %v920 = vpop.permute.xlu0 %919
  %s922 = scalar_lea.vmem %s4, 56
  %923 = vst.msk [vmem:[%s922] sm:$0xff] %vm99, %v920
  // Predicated region
  $region18: #{_seq2seq_forward_jit.2} parent=0 // pred_check
    _
  $region19: #{_seq2seq_forward_jit.2} parent=0 // pred_check_branch
    %925 = sbr.rel (0) target = $region21
  $region20: #{_seq2seq_forward_jit.2} parent=0 // pred_region
    _
  $region21: #{_seq2seq_forward_jit.2} parent=0 // pred_fallthru
    _
  // Predicated region
  $region22: #{_seq2seq_forward_jit.2} parent=0 // pred_check
    _
  $region23: #{_seq2seq_forward_jit.2} parent=0 // pred_check_branch
    %927 = sbr.rel (0) target = $region25
  $region24: #{_seq2seq_forward_jit.2} parent=0 // pred_region
    _
  $region25: #{_seq2seq_forward_jit.2} parent=0 // pred_fallthru
    _

// kernel: _seq2seq_forward_jit.3
$region0: #{_seq2seq_forward_jit.3}
  #allocation0 [shape = 'u32[]', space=smem, size = 0x4, offset = 0x4, fixed_abs, tag = 'smem constant byte address 0x4 - core index']
  #allocation1 [shape = 'u32[144,128]{1,0:T(1,128)}', space=vmem, size = 0x12000, scoped, tag = 'internal scratch']
  %s0 = inlined_call_operand.vmem [shape: f32[8], index: 0, kind: input, shape index: {}]
  %s1 = inlined_call_operand.vmem [shape: f32[8,2,8], index: 1, kind: input, shape index: {}]
  %s2 = inlined_call_operand.vmem [shape: f32[2,32,32], index: 2, kind: input, shape index: {}]
  %s3 = inlined_call_operand.vmem [shape: f32[2,32], index: 3, kind: input, shape index: {}]
  %s4 = inlined_call_operand.vmem [shape: f32[32,32], index: 4, kind: input, shape index: {}]
  %s5 = inlined_call_operand.vmem [shape: f32[72,128], index: 5, kind: input, shape index: {}]
  %s6 = inlined_call_operand.vmem [shape: f32[1,128], index: 6, kind: input, shape index: {}]
  %s7 = inlined_call_operand.vmem [shape: f32[64,8], index: 7, kind: input, shape index: {}]
  %s8 = inlined_call_operand.vmem [shape: f32[1,8], index: 8, kind: input, shape index: {}]
  %s9 = inlined_call_operand.vmem [shape: f32[8,2,8], index: 9, kind: output, shape index: {}]
  %s10 = sld [smem:[#allocation0]]
  $region50: #{_seq2seq_forward_jit.3} parent=0
    _
  %s12 = ssub.s32 1, %s10
  %s13 = scalar_select 0, %s12, %s10
  $region1: #{_seq2seq_forward_jit.3} parent=0
    #allocation2 [shape = 'u8[512]{0}', space=smem, size = 0x200, scoped, tag = 'input window, operand 0, single buffered']
    #allocation3 [shape = 's32[1]{0}', space=sflag, size = 0x4, scoped, tag = 'scoped memory for _seq2seq_forward_jit.3']
    %14 = vsyncpa [#allocation3], 0
    // Predicated region
    $region2: #{_seq2seq_forward_jit.3} parent=1 // pred_check
      _
    $region3: #{_seq2seq_forward_jit.3} parent=1 // pred_check_branch
      %16 = sbr.rel (0) target = $region5
    $region4: #{_seq2seq_forward_jit.3} parent=1 // pred_region
      %s18 = ssub.s32 16, 16
      %19 = vsyncadd [#allocation3], %s18
      %s21 = sshll.u32 %s0, 4
      %s22 = int_to_ptr.vmem [resolvable:$true] %s21
      %24 = dma.vmem_to_smem %s22, 16, [#allocation2], [#allocation3]
    $region5: #{_seq2seq_forward_jit.3} parent=1 // pred_fallthru
      _
    // Predicated region
    $region6: #{_seq2seq_forward_jit.3} parent=1 // pred_check
      _
    $region7: #{_seq2seq_forward_jit.3} parent=1 // pred_check_branch
      %26 = sbr.rel (0) target = $region9
    $region8: #{_seq2seq_forward_jit.3} parent=1 // pred_region
      _
    $region9: #{_seq2seq_forward_jit.3} parent=1 // pred_fallthru
      _
    // Predicated region
    $region10: #{_seq2seq_forward_jit.3} parent=1 // pred_check
      _
    $region11: #{_seq2seq_forward_jit.3} parent=1 // pred_check_branch
      %28 = sbr.rel (0) target = $region13
    $region12: #{_seq2seq_forward_jit.3} parent=1 // pred_region
      _
    $region13: #{_seq2seq_forward_jit.3} parent=1 // pred_fallthru
      _
    // Predicated region
    $region14: #{_seq2seq_forward_jit.3} parent=1 // pred_check
      _
    $region15: #{_seq2seq_forward_jit.3} parent=1 // pred_check_branch
      %30 = sbr.rel (0) target = $region17
    $region16: #{_seq2seq_forward_jit.3} parent=1 // pred_region
      _
    $region17: #{_seq2seq_forward_jit.3} parent=1 // pred_fallthru
      _
    // Predicated region
    $region18: #{_seq2seq_forward_jit.3} parent=1 // pred_check
      _
    $region19: #{_seq2seq_forward_jit.3} parent=1 // pred_check_branch
      %32 = sbr.rel (0) target = $region21
    $region20: #{_seq2seq_forward_jit.3} parent=1 // pred_region
      _
    $region21: #{_seq2seq_forward_jit.3} parent=1 // pred_fallthru
      _
    // Predicated region
    $region22: #{_seq2seq_forward_jit.3} parent=1 // pred_check
      _
    $region23: #{_seq2seq_forward_jit.3} parent=1 // pred_check_branch
      %34 = sbr.rel (0) target = $region25
    $region24: #{_seq2seq_forward_jit.3} parent=1 // pred_region
      _
    $region25: #{_seq2seq_forward_jit.3} parent=1 // pred_fallthru
      _
    // Predicated region
    $region26: #{_seq2seq_forward_jit.3} parent=1 // pred_check
      _
    $region27: #{_seq2seq_forward_jit.3} parent=1 // pred_check_branch
      %36 = sbr.rel (0) target = $region29
    $region28: #{_seq2seq_forward_jit.3} parent=1 // pred_region
      _
    $region29: #{_seq2seq_forward_jit.3} parent=1 // pred_fallthru
      _
    // Predicated region
    $region30: #{_seq2seq_forward_jit.3} parent=1 // pred_check
      _
    $region31: #{_seq2seq_forward_jit.3} parent=1 // pred_check_branch
      %38 = sbr.rel (0) target = $region33
    $region32: #{_seq2seq_forward_jit.3} parent=1 // pred_region
      _
    $region33: #{_seq2seq_forward_jit.3} parent=1 // pred_fallthru
      _
    // Predicated region
    $region34: #{_seq2seq_forward_jit.3} parent=1 // pred_check
      _
    $region35: #{_seq2seq_forward_jit.3} parent=1 // pred_check_branch
      %40 = sbr.rel (0) target = $region37
    $region36: #{_seq2seq_forward_jit.3} parent=1 // pred_region
      _
    $region37: #{_seq2seq_forward_jit.3} parent=1 // pred_fallthru
      _
    // Predicated region
    $region38: #{_seq2seq_forward_jit.3} parent=1 // pred_check
      _
    $region39: #{_seq2seq_forward_jit.3} parent=1 // pred_check_branch
      %42 = sbr.rel (0) target = $region41
    $region40: #{_seq2seq_forward_jit.3} parent=1 // pred_region
      %43 = dma.done [#allocation3], 16
    $region41: #{_seq2seq_forward_jit.3} parent=1 // pred_fallthru
      _
    %44 = sfence
    %v45 = vld [vmem:[%s2] sm:$0xff]
    %v46 = vld [vmem:[%s2 + $0x8] sm:$0xff]
    %v47 = vld [vmem:[%s2 + $0x10] sm:$0xff]
    %v48 = vld [vmem:[%s2 + $0x18] sm:$0xff]
    %v49 = vld [vmem:[%s2 + $0x20] sm:$0xff]
    %v50 = vld [vmem:[%s2 + $0x28] sm:$0xff]
    %v51 = vld [vmem:[%s2 + $0x30] sm:$0xff]
    %v52 = vld [vmem:[%s2 + $0x38] sm:$0xff]
    %v53 = vld [vmem:[%s3] sm:$0x3]
    %v54 = vld [vmem:[%s4] sm:$0xff]
    %v55 = vld [vmem:[%s4 + $0x8] sm:$0xff]
    %v56 = vld [vmem:[%s4 + $0x10] sm:$0xff]
    %v57 = vld [vmem:[%s4 + $0x18] sm:$0xff]
    %v58 = vld [vmem:[%s5] sm:$0xff]
    %v59 = vld [vmem:[%s5 + $0x8] sm:$0xff]
    %v60 = vld [vmem:[%s5 + $0x10] sm:$0xff]
    %v61 = vld [vmem:[%s5 + $0x18] sm:$0xff]
    %v62 = vld [vmem:[%s5 + $0x20] sm:$0xff]
    %v63 = vld [vmem:[%s5 + $0x28] sm:$0xff]
    %v64 = vld [vmem:[%s5 + $0x30] sm:$0xff]
    %v65 = vld [vmem:[%s5 + $0x38] sm:$0xff]
    %v66 = vld [vmem:[%s5 + $0x40] sm:$0xff]
    %v67 = vld [vmem:[%s6] sm:$0x1]
    %v68 = vld [vmem:[%s7] sm:$0xff]
    %v69 = vld [vmem:[%s7 + $0x8] sm:$0xff]
    %v70 = vld [vmem:[%s7 + $0x10] sm:$0xff]
    %v71 = vld [vmem:[%s7 + $0x18] sm:$0xff]
    %v72 = vld [vmem:[%s7 + $0x20] sm:$0xff]
    %v73 = vld [vmem:[%s7 + $0x28] sm:$0xff]
    %v74 = vld [vmem:[%s7 + $0x30] sm:$0xff]
    %v75 = vld [vmem:[%s7 + $0x38] sm:$0xff]
    %v76 = vld [vmem:[%s8] sm:$0x1]
    %vm77 = vcmask 58368
    %78 = vst.msk [vmem:[%s9] sm:$0x3] %vm77, 0.0
    %v79 = vld [vmem:[%s1] sm:$0x3]
    %vm80 = vcmask 261120
    %v82 = vsel %vm80, 0.0, 0
    %84 = vmatprep.subr.mxu0 0.0
    %85 = vmatpush1.msra.mxu0 0.0
    %86 = vmatprep.subr.mxu0 0.0
    %87 = vmatpush1.msra.mxu0 0.0
    %88 = vmatprep.subr.mxu0 0.0
    %89 = vmatpush1.msra.mxu0 0.0
    %90 = vmatprep.subr.mxu0 0.0
    %91 = vmatpush1.msra.mxu0 0.0
    %92 = vmatprep.subr.mxu0 0.0
    %93 = vmatpush1.msra.mxu0 0.0
    %94 = vmatprep.subr.mxu0 0.0
    %95 = vmatpush1.msra.mxu0 0.0
    %96 = vmatprep.subr.mxu0 0.0
    %97 = vmatpush1.msra.mxu0 0.0
    %98 = vmatprep.subr.mxu0 0.0
    %99 = vmatpush1.msra.mxu0 0.0
    %100 = vmatprep.subr.mxu0 0.0
    %101 = vmatpush1.msra.mxu0 0.0
    %102 = vmatprep.subr.mxu0 0.0
    %103 = vmatpush1.msra.mxu0 0.0
    %104 = vmatprep.subr.mxu0 0.0
    %105 = vmatpush1.msra.mxu0 0.0
    %106 = vmatprep.subr.mxu0 0.0
    %107 = vmatpush1.msra.mxu0 0.0
    %108 = vmatprep.subr.mxu0 0.0
    %109 = vmatpush1.msra.mxu0 %v57
    %110 = vmatprep.subr.mxu0 0.0
    %111 = vmatpush1.msra.mxu0 %v56
    %112 = vmatprep.subr.mxu0 0.0
    %113 = vmatpush1.msra.mxu0 %v55
    %114 = vmatprep.subr.mxu0 0.0
    %115 = vmatpush1.msra.mxu0 %v54
    %116 = vmatprep.subr.mxu0 0.0
    %117 = vmatpush2.msra.mxu0 0.0
    %118 = vmatprep.subr.mxu0 0.0
    %119 = vmatpush2.msra.mxu0 0.0
    %120 = vmatprep.subr.mxu0 0.0
    %121 = vmatpush2.msra.mxu0 0.0
    %122 = vmatprep.subr.mxu0 0.0
    %123 = vmatpush2.msra.mxu0 0.0
    %124 = vmatprep.subr.mxu0 0.0
    %125 = vmatpush2.msra.mxu0 0.0
    %126 = vmatprep.subr.mxu0 0.0
    %127 = vmatpush2.msra.mxu0 0.0
    %128 = vmatprep.subr.mxu0 0.0
    %129 = vmatpush2.msra.mxu0 0.0
    %130 = vmatprep.subr.mxu0 0.0
    %131 = vmatpush2.msra.mxu0 0.0
    %132 = vmatprep.subr.mxu0 0.0
    %133 = vmatpush2.msra.mxu0 0.0
    %134 = vmatprep.subr.mxu0 0.0
    %135 = vmatpush2.msra.mxu0 0.0
    %136 = vmatprep.subr.mxu0 0.0
    %137 = vmatpush2.msra.mxu0 0.0
    %138 = vmatprep.subr.mxu0 0.0
    %139 = vmatpush2.msra.mxu0 0.0
    %140 = vmatprep.subr.mxu0 0.0
    %141 = vmatpush2.msra.mxu0 0.0
    %142 = vmatprep.subr.mxu0 0.0
    %143 = vmatpush2.msra.mxu0 0.0
    %144 = vmatprep.subr.mxu0 0.0
    %145 = vmatpush2.msra.mxu0 0.0
    %146 = vmatprep.subr.mxu0 0.0
    %147 = vmatpush2.msra.mxu0 0.0
    %148 = vmatprep.mubr.f32.mxu0 0.0
    %149 = vmatmul.mubr.f32.gmra.mxu0 %v82
    %v150 = vpop.f32.mrf.mxu0
    %v151 = vadd.f32 0.0, %v150
    %v152 = vpop.f32.mrf.mxu0
    %153 = vdwg.mxu0
    %v156 = vunpack.c.l.s4 1966171168
    %v157 = vunpack.c.0.s8 %v156
    %v158 = vlaneseq
    %v159 = vshrl.u32 %v158, 7
    %v160 = vsub.s32 %v157, %v159
    %v161 = vrot.slane %v151, %v160
    %v162 = vcombine.high %v161, %v161
    %v164 = vunpack.c.l.s4 1966171168
    %v165 = vunpack.c.0.s8 %v164
    %v166 = vlaneseq
    %v167 = vshrl.u32 %v166, 7
    %v168 = vsub.s32 %v165, %v167
    %v169 = vrot.slane %v161, %v168
    %v171 = vunpack.c.l.s4 1966171168
    %v172 = vunpack.c.0.s8 %v171
    %v173 = vlaneseq
    %v174 = vshrl.u32 %v173, 7
    %v175 = vsub.s32 %v172, %v174
    %v176 = vrot.slane %v162, %v175
    %v177 = vlaneseq
    %v178 = vshrl.u32 %v177, 7
    %v179 = vsub.s32 0, %v178
    %v180 = vrot.slane %v169, %v179
    %v181 = vlaneseq
    %v182 = vshrl.u32 %v181, 7
    %v183 = vsub.s32 0, %v182
    %v184 = vrot.slane %v176, %v183
    %v187 = vmul.f32 %v45, %v180
    %v188 = vmul.f32 %v46, %v180
    %v189 = vmul.f32 %v47, %v180
    %v190 = vmul.f32 %v48, %v180
    %v191 = vmul.f32 %v49, %v184
    %v192 = vmul.f32 %v50, %v184
    %v193 = vmul.f32 %v51, %v184
    %v194 = vmul.f32 %v52, %v184
    %v195 = vsel %vm80, %v187, 0.0
    %196 = vadd.xlane.f32.xlu0 %v195
    %v197 = vpop.xlane.xlu0 %196
    %v198 = vsel %vm80, %v188, 0.0
    %199 = vadd.xlane.f32.xlu0 %v198
    %v200 = vpop.xlane.xlu0 %199
    %v201 = vsel %vm80, %v189, 0.0
    %202 = vadd.xlane.f32.xlu0 %v201
    %v203 = vpop.xlane.xlu0 %202
    %v204 = vsel %vm80, %v190, 0.0
    %205 = vadd.xlane.f32.xlu0 %v204
    %v206 = vpop.xlane.xlu0 %205
    %v207 = vsel %vm80, %v191, 0.0
    %208 = vadd.xlane.f32.xlu0 %v207
    %v209 = vpop.xlane.xlu0 %208
    %v210 = vsel %vm80, %v192, 0.0
    %211 = vadd.xlane.f32.xlu0 %v210
    %v212 = vpop.xlane.xlu0 %211
    %v213 = vsel %vm80, %v193, 0.0
    %214 = vadd.xlane.f32.xlu0 %v213
    %v215 = vpop.xlane.xlu0 %214
    %v216 = vsel %vm80, %v194, 0.0
    %217 = vadd.xlane.f32.xlu0 %v216
    %v218 = vpop.xlane.xlu0 %217
    %v220 = vlaneseq
    %v221 = vshrl.u32 %v220, 7
    %v222 = vsub.s32 0, %v221
    %v223 = vrot.slane %v53, %v222
    %225 = vbcast.lane.b32.xlu0 %v223, 256
    %v226 = vpop.permute.xlu0 %225
    %s228 = sor.u32 256, 8
    %229 = vbcast.lane.b32.xlu0 %v223, %s228
    %v230 = vpop.permute.xlu0 %229
    %s232 = sor.u32 256, 16
    %233 = vbcast.lane.b32.xlu0 %v223, %s232
    %v234 = vpop.permute.xlu0 %233
    %s236 = sor.u32 256, 24
    %237 = vbcast.lane.b32.xlu0 %v223, %s236
    %v238 = vpop.permute.xlu0 %237
    %v239 = vlaneseq
    %v240 = vshrl.u32 %v239, 7
    %v241 = vsub.s32 1, %v240
    %v242 = vrot.slane %v53, %v241
    %244 = vbcast.lane.b32.xlu0 %v242, 256
    %v245 = vpop.permute.xlu0 %244
    %s247 = sor.u32 256, 8
    %248 = vbcast.lane.b32.xlu0 %v242, %s247
    %v249 = vpop.permute.xlu0 %248
    %s251 = sor.u32 256, 16
    %252 = vbcast.lane.b32.xlu0 %v242, %s251
    %v253 = vpop.permute.xlu0 %252
    %s255 = sor.u32 256, 24
    %256 = vbcast.lane.b32.xlu0 %v242, %s255
    %v257 = vpop.permute.xlu0 %256
    %v266 = vadd.f32 %v197, %v226
    %v267 = vadd.f32 %v200, %v230
    %v268 = vadd.f32 %v203, %v234
    %v269 = vadd.f32 %v206, %v238
    %v270 = vadd.f32 %v209, %v245
    %v271 = vadd.f32 %v212, %v249
    %v272 = vadd.f32 %v215, %v253
    %v273 = vadd.f32 %v218, %v257
    %282 = vset.pattern.permute.xlu0 0
    %283 = vperm.xlu0 %282, %v266
    %v284 = vpop.permute.xlu0 %283
    %285 = vset.pattern.permute.xlu0 0
    %286 = vperm.xlu0 %285, %v267
    %v287 = vpop.permute.xlu0 %286
    %288 = vset.pattern.permute.xlu0 0
    %289 = vperm.xlu0 %288, %v268
    %v290 = vpop.permute.xlu0 %289
    %291 = vset.pattern.permute.xlu0 0
    %292 = vperm.xlu0 %291, %v269
    %v293 = vpop.permute.xlu0 %292
    %294 = vset.pattern.permute.xlu0 0
    %295 = vperm.xlu0 %294, %v270
    %v296 = vpop.permute.xlu0 %295
    %297 = vset.pattern.permute.xlu0 0
    %298 = vperm.xlu0 %297, %v271
    %v299 = vpop.permute.xlu0 %298
    %300 = vset.pattern.permute.xlu0 0
    %301 = vperm.xlu0 %300, %v272
    %v302 = vpop.permute.xlu0 %301
    %303 = vset.pattern.permute.xlu0 0
    %304 = vperm.xlu0 %303, %v273
    %v305 = vpop.permute.xlu0 %304
    %v306 = vlaneseq
    %v307 = vand.u32 %v306, 127
    %v308 = vlaneseq
    %v309 = vshrl.u32 %v308, 7
    %v310 = vsub.s32 %v307, %v309
    %v311 = vrot.slane %v284, %v310
    %v312 = vadd.s32 %v307, 4294967288
    %v313 = vlaneseq
    %v314 = vshrl.u32 %v313, 7
    %v315 = vsub.s32 %v312, %v314
    %v316 = vrot.slane %v287, %v315
    %vm317 = vcmask 130112
    %v318 = vsel %vm317, %v316, %v311
    %v319 = vadd.s32 %v307, 4294967280
    %v320 = vlaneseq
    %v321 = vshrl.u32 %v320, 7
    %v322 = vsub.s32 %v319, %v321
    %v323 = vrot.slane %v290, %v322
    %vm324 = vcmask 195712
    %v325 = vsel %vm324, %v323, %v318
    %v326 = vadd.s32 %v307, 4294967272
    %v327 = vlaneseq
    %v328 = vshrl.u32 %v327, 7
    %v329 = vsub.s32 %v326, %v328
    %v330 = vrot.slane %v293, %v329
    %vm331 = vcmask 261312
    %v332 = vsel %vm331, %v330, %v325
    %v333 = vlaneseq
    %v334 = vshrl.u32 %v333, 7
    %v335 = vsub.s32 %v307, %v334
    %v336 = vrot.slane %v296, %v335
    %v337 = vlaneseq
    %v338 = vshrl.u32 %v337, 7
    %v339 = vsub.s32 %v312, %v338
    %v340 = vrot.slane %v299, %v339
    %v341 = vsel %vm317, %v340, %v336
    %v342 = vlaneseq
    %v343 = vshrl.u32 %v342, 7
    %v344 = vsub.s32 %v319, %v343
    %v345 = vrot.slane %v302, %v344
    %v346 = vsel %vm324, %v345, %v341
    %v347 = vlaneseq
    %v348 = vshrl.u32 %v347, 7
    %v349 = vsub.s32 %v326, %v348
    %v350 = vrot.slane %v305, %v349
    %v351 = vsel %vm331, %v350, %v346
    %vm352 = vcmask 1041409
    %v353 = vsel %vm352, %v351, %v332
    %vm355 = vcmask 254976
    %v356 = vsel %vm355, %v353, -inf
    %357 = vmax.xlane.f32.xlu0 %v356
    %v358 = vpop.xlane.xlu0 %357
    %v360 = vlaneseq
    %v361 = vshrl.u32 %v360, 7
    %v362 = vsub.s32 0, %v361
    %v363 = vrot.slane %v358, %v362
    %v364 = vlaneseq
    %v365 = vshrl.u32 %v364, 7
    %v366 = vsub.s32 1, %v365
    %v367 = vrot.slane %v358, %v366
    %v370 = vsub.f32 %v266, %v363
    %v371 = vsub.f32 %v267, %v363
    %v372 = vsub.f32 %v268, %v363
    %v373 = vsub.f32 %v269, %v363
    %v374 = vsub.f32 %v270, %v367
    %v375 = vsub.f32 %v271, %v367
    %v376 = vsub.f32 %v272, %v367
    %v377 = vsub.f32 %v273, %v367
    %v378 = vmul.f32 %v370, 1.442695
    %v379 = vpow.pop %v378
    %v380 = vmul.f32 %v371, 1.442695
    %v381 = vpow.pop %v380
    %v382 = vmul.f32 %v372, 1.442695
    %v383 = vpow.pop %v382
    %v384 = vmul.f32 %v373, 1.442695
    %v385 = vpow.pop %v384
    %v386 = vmul.f32 %v374, 1.442695
    %v387 = vpow.pop %v386
    %v388 = vmul.f32 %v375, 1.442695
    %v389 = vpow.pop %v388
    %v390 = vmul.f32 %v376, 1.442695
    %v391 = vpow.pop %v390
    %v392 = vmul.f32 %v377, 1.442695
    %v393 = vpow.pop %v392
    %402 = vset.pattern.permute.xlu0 0
    %403 = vperm.xlu0 %402, %v379
    %v404 = vpop.permute.xlu0 %403
    %405 = vset.pattern.permute.xlu0 0
    %406 = vperm.xlu0 %405, %v381
    %v407 = vpop.permute.xlu0 %406
    %408 = vset.pattern.permute.xlu0 0
    %409 = vperm.xlu0 %408, %v383
    %v410 = vpop.permute.xlu0 %409
    %411 = vset.pattern.permute.xlu0 0
    %412 = vperm.xlu0 %411, %v385
    %v413 = vpop.permute.xlu0 %412
    %414 = vset.pattern.permute.xlu0 0
    %415 = vperm.xlu0 %414, %v387
    %v416 = vpop.permute.xlu0 %415
    %417 = vset.pattern.permute.xlu0 0
    %418 = vperm.xlu0 %417, %v389
    %v419 = vpop.permute.xlu0 %418
    %420 = vset.pattern.permute.xlu0 0
    %421 = vperm.xlu0 %420, %v391
    %v422 = vpop.permute.xlu0 %421
    %423 = vset.pattern.permute.xlu0 0
    %424 = vperm.xlu0 %423, %v393
    %v425 = vpop.permute.xlu0 %424
    %v426 = vlaneseq
    %v427 = vshrl.u32 %v426, 7
    %v428 = vsub.s32 %v307, %v427
    %v429 = vrot.slane %v404, %v428
    %v430 = vlaneseq
    %v431 = vshrl.u32 %v430, 7
    %v432 = vsub.s32 %v312, %v431
    %v433 = vrot.slane %v407, %v432
    %v434 = vsel %vm317, %v433, %v429
    %v435 = vlaneseq
    %v436 = vshrl.u32 %v435, 7
    %v437 = vsub.s32 %v319, %v436
    %v438 = vrot.slane %v410, %v437
    %v439 = vsel %vm324, %v438, %v434
    %v440 = vlaneseq
    %v441 = vshrl.u32 %v440, 7
    %v442 = vsub.s32 %v326, %v441
    %v443 = vrot.slane %v413, %v442
    %v444 = vsel %vm331, %v443, %v439
    %v445 = vlaneseq
    %v446 = vshrl.u32 %v445, 7
    %v447 = vsub.s32 %v307, %v446
    %v448 = vrot.slane %v416, %v447
    %v449 = vlaneseq
    %v450 = vshrl.u32 %v449, 7
    %v451 = vsub.s32 %v312, %v450
    %v452 = vrot.slane %v419, %v451
    %v453 = vsel %vm317, %v452, %v448
    %v454 = vlaneseq
    %v455 = vshrl.u32 %v454, 7
    %v456 = vsub.s32 %v319, %v455
    %v457 = vrot.slane %v422, %v456
    %v458 = vsel %vm324, %v457, %v453
    %v459 = vlaneseq
    %v460 = vshrl.u32 %v459, 7
    %v461 = vsub.s32 %v326, %v460
    %v462 = vrot.slane %v425, %v461
    %v463 = vsel %vm331, %v462, %v458
    %v464 = vsel %vm352, %v463, %v444
    %v466 = vsel %vm355, %v464, 0.0
    %467 = vadd.xlane.f32.xlu0 %v466
    %v468 = vpop.xlane.xlu0 %467
    %v469 = vrcp.pop %v468
    %v471 = vlaneseq
    %v472 = vshrl.u32 %v471, 7
    %v473 = vsub.s32 0, %v472
    %v474 = vrot.slane %v469, %v473
    %v475 = vlaneseq
    %v476 = vshrl.u32 %v475, 7
    %v477 = vsub.s32 1, %v476
    %v478 = vrot.slane %v469, %v477
    %v481 = vmul.f32 %v379, %v474
    %v482 = vmul.f32 %v381, %v474
    %v483 = vmul.f32 %v383, %v474
    %v484 = vmul.f32 %v385, %v474
    %v485 = vmul.f32 %v387, %v478
    %v486 = vmul.f32 %v389, %v478
    %v487 = vmul.f32 %v391, %v478
    %v488 = vmul.f32 %v393, %v478
    %490 = vset.pattern.permute.xlu0 0
    %491 = vperm.xlu0 %490, %v481
    %v492 = vpop.permute.xlu0 %491
    %495 = vset.pattern.permute.xlu0 0
    %496 = vperm.xlu0 %495, %v482
    %v497 = vpop.permute.xlu0 %496
    %500 = vset.pattern.permute.xlu0 0
    %501 = vperm.xlu0 %500, %v483
    %v502 = vpop.permute.xlu0 %501
    %505 = vset.pattern.permute.xlu0 0
    %506 = vperm.xlu0 %505, %v484
    %v507 = vpop.permute.xlu0 %506
    %510 = vset.pattern.permute.xlu0 0
    %511 = vperm.xlu0 %510, %v485
    %v512 = vpop.permute.xlu0 %511
    %515 = vset.pattern.permute.xlu0 0
    %516 = vperm.xlu0 %515, %v486
    %v517 = vpop.permute.xlu0 %516
    %520 = vset.pattern.permute.xlu0 0
    %521 = vperm.xlu0 %520, %v487
    %v522 = vpop.permute.xlu0 %521
    %525 = vset.pattern.permute.xlu0 0
    %526 = vperm.xlu0 %525, %v488
    %v527 = vpop.permute.xlu0 %526
    %v529 = vmul.f32 %v492, %v45
    %v530 = vmul.f32 %v497, %v46
    %v531 = vmul.f32 %v502, %v47
    %v532 = vmul.f32 %v507, %v48
    %v533 = vmul.f32 %v512, %v49
    %v534 = vmul.f32 %v517, %v50
    %v535 = vmul.f32 %v522, %v51
    %v536 = vmul.f32 %v527, %v52
    %v537 = vsel %vm80, %v529, 0.0
    %v538 = vsel %vm80, %v530, 0.0
    %v539 = vadd.f32 %v537, %v538
    %v540 = vsel %vm80, %v531, 0.0
    %v541 = vadd.f32 %v539, %v540
    %v542 = vsel %vm80, %v532, 0.0
    %v543 = vadd.f32 %v541, %v542
    %v544 = vrot.slane %v543, 4
    %v545 = vadd.f32 %v543, %v544
    %v546 = vrot.slane %v545, 2
    %v547 = vadd.f32 %v545, %v546
    %v548 = vrot.slane %v547, 1
    %v549 = vadd.f32 %v547, %v548
    %v550 = vsel %vm80, %v533, 0.0
    %v551 = vsel %vm80, %v534, 0.0
    %v552 = vadd.f32 %v550, %v551
    %v553 = vsel %vm80, %v535, 0.0
    %v554 = vadd.f32 %v552, %v553
    %v555 = vsel %vm80, %v536, 0.0
    %v556 = vadd.f32 %v554, %v555
    %v557 = vrot.slane %v556, 4
    %v558 = vadd.f32 %v556, %v557
    %v559 = vrot.slane %v558, 2
    %v560 = vadd.f32 %v558, %v559
    %v561 = vrot.slane %v560, 1
    %v562 = vadd.f32 %v560, %v561
    %v565 = vsel %vm352, %v562, %v549
    %566 = vrot.lane.b32.xlu0 %v565, 8
    %v567 = vpop.permute.xlu0 %566
    %vm569 = vcmask 64512
    %v570 = vsel %vm569, %v79, %v567
    %vm571 = vcmask 326656
    %v572 = vsel %vm571, %v570, 0.0
    %v574 = vlaneseq
    %v575 = vshrl.u32 %v574, 7
    %v576 = vsub.s32 0, %v575
    %v577 = vrot.slane %v67, %v576
    %vm579 = vcmask 588800
    %v581 = vsel %vm579, %v572, 0
    %583 = vmatprep.subr.mxu0 0.0
    %584 = vmatpush1.msra.mxu0 0.0
    %585 = vmatprep.subr.mxu0 0.0
    %586 = vmatpush1.msra.mxu0 0.0
    %587 = vmatprep.subr.mxu0 0.0
    %588 = vmatpush1.msra.mxu0 0.0
    %589 = vmatprep.subr.mxu0 0.0
    %590 = vmatpush1.msra.mxu0 0.0
    %591 = vmatprep.subr.mxu0 0.0
    %592 = vmatpush1.msra.mxu0 0.0
    %593 = vmatprep.subr.mxu0 0.0
    %594 = vmatpush1.msra.mxu0 0.0
    %595 = vmatprep.subr.mxu0 0.0
    %596 = vmatpush1.msra.mxu0 0.0
    %597 = vmatprep.subr.mxu0 0.0
    %598 = vmatpush1.msra.mxu0 %v66
    %599 = vmatprep.subr.mxu0 0.0
    %600 = vmatpush1.msra.mxu0 %v65
    %601 = vmatprep.subr.mxu0 0.0
    %602 = vmatpush1.msra.mxu0 %v64
    %603 = vmatprep.subr.mxu0 0.0
    %604 = vmatpush1.msra.mxu0 %v63
    %605 = vmatprep.subr.mxu0 0.0
    %606 = vmatpush1.msra.mxu0 %v62
    %607 = vmatprep.subr.mxu0 0.0
    %608 = vmatpush1.msra.mxu0 %v61
    %609 = vmatprep.subr.mxu0 0.0
    %610 = vmatpush1.msra.mxu0 %v60
    %611 = vmatprep.subr.mxu0 0.0
    %612 = vmatpush1.msra.mxu0 %v59
    %613 = vmatprep.subr.mxu0 0.0
    %614 = vmatpush1.msra.mxu0 %v58
    %615 = vmatprep.subr.mxu0 0.0
    %616 = vmatpush2.msra.mxu0 0.0
    %617 = vmatprep.subr.mxu0 0.0
    %618 = vmatpush2.msra.mxu0 0.0
    %619 = vmatprep.subr.mxu0 0.0
    %620 = vmatpush2.msra.mxu0 0.0
    %621 = vmatprep.subr.mxu0 0.0
    %622 = vmatpush2.msra.mxu0 0.0
    %623 = vmatprep.subr.mxu0 0.0
    %624 = vmatpush2.msra.mxu0 0.0
    %625 = vmatprep.subr.mxu0 0.0
    %626 = vmatpush2.msra.mxu0 0.0
    %627 = vmatprep.subr.mxu0 0.0
    %628 = vmatpush2.msra.mxu0 0.0
    %629 = vmatprep.subr.mxu0 0.0
    %630 = vmatpush2.msra.mxu0 0.0
    %631 = vmatprep.subr.mxu0 0.0
    %632 = vmatpush2.msra.mxu0 0.0
    %633 = vmatprep.subr.mxu0 0.0
    %634 = vmatpush2.msra.mxu0 0.0
    %635 = vmatprep.subr.mxu0 0.0
    %636 = vmatpush2.msra.mxu0 0.0
    %637 = vmatprep.subr.mxu0 0.0
    %638 = vmatpush2.msra.mxu0 0.0
    %639 = vmatprep.subr.mxu0 0.0
    %640 = vmatpush2.msra.mxu0 0.0
    %641 = vmatprep.subr.mxu0 0.0
    %642 = vmatpush2.msra.mxu0 0.0
    %643 = vmatprep.subr.mxu0 0.0
    %644 = vmatpush2.msra.mxu0 0.0
    %645 = vmatprep.subr.mxu0 0.0
    %646 = vmatpush2.msra.mxu0 0.0
    %647 = vmatprep.mubr.f32.mxu0 0.0
    %648 = vmatmul.mubr.f32.gmra.mxu0 %v581
    %v649 = vpop.f32.mrf.mxu0
    %v650 = vadd.f32 %v577, %v649
    %v651 = vpop.f32.mrf.mxu0
    %652 = vdwg.mxu0
    %v653 = vxor.u32 %v650, 2147483648
    %v654 = vmul.f32 %v653, 1.442695
    %v655 = vpow.pop %v654
    %v656 = vadd.f32 %v655, 1.0
    %v657 = vrcp.pop %v656
    %v658 = vmul.f32 1.0, %v657
    %v659 = vtanh.pop %v650
    %v660 = vmul.f32 %v658, 0.0
    %662 = vrot.lane.b32.xlu0 %v659, 64
    %v663 = vpop.permute.xlu0 %662
    %v665 = vmul.f32 %v658, %v663
    %667 = vrot.lane.b32.xlu0 %v665, 32
    %v668 = vpop.permute.xlu0 %667
    %v670 = vadd.f32 %v660, %v668
    %v671 = vtanh.pop %v670
    %673 = vrot.lane.b32.xlu0 %v671, 64
    %v674 = vpop.permute.xlu0 %673
    %v676 = vmul.f32 %v658, %v674
    %678 = vrot.lane.b32.xlu0 %v676, 32
    %v679 = vpop.permute.xlu0 %678
    %681 = vrot.lane.b32.xlu0 %v565, 32
    %v682 = vpop.permute.xlu0 %681
    %v684 = vsel %vm80, %v679, %v682
    %v686 = vlaneseq
    %v687 = vshrl.u32 %v686, 7
    %v688 = vsub.s32 0, %v687
    %v689 = vrot.slane %v76, %v688
    %vm691 = vcmask 523264
    %v693 = vsel %vm691, %v684, 0
    %695 = vmatprep.subr.mxu0 0.0
    %696 = vmatpush1.msra.mxu0 0.0
    %697 = vmatprep.subr.mxu0 0.0
    %698 = vmatpush1.msra.mxu0 0.0
    %699 = vmatprep.subr.mxu0 0.0
    %700 = vmatpush1.msra.mxu0 0.0
    %701 = vmatprep.subr.mxu0 0.0
    %702 = vmatpush1.msra.mxu0 0.0
    %703 = vmatprep.subr.mxu0 0.0
    %704 = vmatpush1.msra.mxu0 0.0
    %705 = vmatprep.subr.mxu0 0.0
    %706 = vmatpush1.msra.mxu0 0.0
    %707 = vmatprep.subr.mxu0 0.0
    %708 = vmatpush1.msra.mxu0 0.0
    %709 = vmatprep.subr.mxu0 0.0
    %710 = vmatpush1.msra.mxu0 0.0
    %711 = vmatprep.subr.mxu0 0.0
    %712 = vmatpush1.msra.mxu0 %v75
    %713 = vmatprep.subr.mxu0 0.0
    %714 = vmatpush1.msra.mxu0 %v74
    %715 = vmatprep.subr.mxu0 0.0
    %716 = vmatpush1.msra.mxu0 %v73
    %717 = vmatprep.subr.mxu0 0.0
    %718 = vmatpush1.msra.mxu0 %v72
    %719 = vmatprep.subr.mxu0 0.0
    %720 = vmatpush1.msra.mxu0 %v71
    %721 = vmatprep.subr.mxu0 0.0
    %722 = vmatpush1.msra.mxu0 %v70
    %723 = vmatprep.subr.mxu0 0.0
    %724 = vmatpush1.msra.mxu0 %v69
    %725 = vmatprep.subr.mxu0 0.0
    %726 = vmatpush1.msra.mxu0 %v68
    %727 = vmatprep.subr.mxu0 0.0
    %728 = vmatpush2.msra.mxu0 0.0
    %729 = vmatprep.subr.mxu0 0.0
    %730 = vmatpush2.msra.mxu0 0.0
    %731 = vmatprep.subr.mxu0 0.0
    %732 = vmatpush2.msra.mxu0 0.0
    %733 = vmatprep.subr.mxu0 0.0
    %734 = vmatpush2.msra.mxu0 0.0
    %735 = vmatprep.subr.mxu0 0.0
    %736 = vmatpush2.msra.mxu0 0.0
    %737 = vmatprep.subr.mxu0 0.0
    %738 = vmatpush2.msra.mxu0 0.0
    %739 = vmatprep.subr.mxu0 0.0
    %740 = vmatpush2.msra.mxu0 0.0
    %741 = vmatprep.subr.mxu0 0.0
    %742 = vmatpush2.msra.mxu0 0.0
    %743 = vmatprep.subr.mxu0 0.0
    %744 = vmatpush2.msra.mxu0 0.0
    %745 = vmatprep.subr.mxu0 0.0
    %746 = vmatpush2.msra.mxu0 0.0
    %747 = vmatprep.subr.mxu0 0.0
    %748 = vmatpush2.msra.mxu0 0.0
    %749 = vmatprep.subr.mxu0 0.0
    %750 = vmatpush2.msra.mxu0 0.0
    %751 = vmatprep.subr.mxu0 0.0
    %752 = vmatpush2.msra.mxu0 0.0
    %753 = vmatprep.subr.mxu0 0.0
    %754 = vmatpush2.msra.mxu0 0.0
    %755 = vmatprep.subr.mxu0 0.0
    %756 = vmatpush2.msra.mxu0 0.0
    %757 = vmatprep.subr.mxu0 0.0
    %758 = vmatpush2.msra.mxu0 0.0
    %759 = vmatprep.mubr.f32.mxu0 0.0
    %760 = vmatmul.mubr.f32.gmra.mxu0 %v693
    %v761 = vpop.f32.mrf.mxu0
    %v762 = vadd.f32 %v689, %v761
    %v763 = vpop.f32.mrf.mxu0
    %764 = vdwg.mxu0
    %s765 = scalar_lea.vmem %s9, 2
    %766 = vst.msk [vmem:[%s765] sm:$0x3] %vm77, %v762
    %s767 = sld [smem:[#allocation2 + $0x1]]
    %s768 = scalar_lea.vmem %s1, 2
    %v769 = vld [vmem:[%s768] sm:$0x3]
    %v770 = vstv %s767
    %v771 = vmul.f32 %v770, %v769
    %s772 = ssub.f32 1.0, %s767
    %v773 = vstv %s772
    %v774 = vmul.f32 %v773, %v762
    %v775 = vadd.f32 %v771, %v774
    %v776 = vsel %vm80, %v679, 0
    %778 = vmatprep.subr.mxu0 0.0
    %779 = vmatpush1.msra.mxu0 0.0
    %780 = vmatprep.subr.mxu0 0.0
    %781 = vmatpush1.msra.mxu0 0.0
    %782 = vmatprep.subr.mxu0 0.0
    %783 = vmatpush1.msra.mxu0 0.0
    %784 = vmatprep.subr.mxu0 0.0
    %785 = vmatpush1.msra.mxu0 0.0
    %786 = vmatprep.subr.mxu0 0.0
    %787 = vmatpush1.msra.mxu0 0.0
    %788 = vmatprep.subr.mxu0 0.0
    %789 = vmatpush1.msra.mxu0 0.0
    %790 = vmatprep.subr.mxu0 0.0
    %791 = vmatpush1.msra.mxu0 0.0
    %792 = vmatprep.subr.mxu0 0.0
    %793 = vmatpush1.msra.mxu0 0.0
    %794 = vmatprep.subr.mxu0 0.0
    %795 = vmatpush1.msra.mxu0 0.0
    %796 = vmatprep.subr.mxu0 0.0
    %797 = vmatpush1.msra.mxu0 0.0
    %798 = vmatprep.subr.mxu0 0.0
    %799 = vmatpush1.msra.mxu0 0.0
    %800 = vmatprep.subr.mxu0 0.0
    %801 = vmatpush1.msra.mxu0 0.0
    %802 = vmatprep.subr.mxu0 0.0
    %803 = vmatpush1.msra.mxu0 %v57
    %804 = vmatprep.subr.mxu0 0.0
    %805 = vmatpush1.msra.mxu0 %v56
    %806 = vmatprep.subr.mxu0 0.0
    %807 = vmatpush1.msra.mxu0 %v55
    %808 = vmatprep.subr.mxu0 0.0
    %809 = vmatpush1.msra.mxu0 %v54
    %810 = vmatprep.subr.mxu0 0.0
    %811 = vmatpush2.msra.mxu0 0.0
    %812 = vmatprep.subr.mxu0 0.0
    %813 = vmatpush2.msra.mxu0 0.0
    %814 = vmatprep.subr.mxu0 0.0
    %815 = vmatpush2.msra.mxu0 0.0
    %816 = vmatprep.subr.mxu0 0.0
    %817 = vmatpush2.msra.mxu0 0.0
    %818 = vmatprep.subr.mxu0 0.0
    %819 = vmatpush2.msra.mxu0 0.0
    %820 = vmatprep.subr.mxu0 0.0
    %821 = vmatpush2.msra.mxu0 0.0
    %822 = vmatprep.subr.mxu0 0.0
    %823 = vmatpush2.msra.mxu0 0.0
    %824 = vmatprep.subr.mxu0 0.0
    %825 = vmatpush2.msra.mxu0 0.0
    %826 = vmatprep.subr.mxu0 0.0
    %827 = vmatpush2.msra.mxu0 0.0
    %828 = vmatprep.subr.mxu0 0.0
    %829 = vmatpush2.msra.mxu0 0.0
    %830 = vmatprep.subr.mxu0 0.0
    %831 = vmatpush2.msra.mxu0 0.0
    %832 = vmatprep.subr.mxu0 0.0
    %833 = vmatpush2.msra.mxu0 0.0
    %834 = vmatprep.subr.mxu0 0.0
    %835 = vmatpush2.msra.mxu0 0.0
    %836 = vmatprep.subr.mxu0 0.0
    %837 = vmatpush2.msra.mxu0 0.0
    %838 = vmatprep.subr.mxu0 0.0
    %839 = vmatpush2.msra.mxu0 0.0
    %840 = vmatprep.subr.mxu0 0.0
    %841 = vmatpush2.msra.mxu0 0.0
    %842 = vmatprep.mubr.f32.mxu0 0.0
    %843 = vmatmul.mubr.f32.gmra.mxu0 %v776
    %v844 = vpop.f32.mrf.mxu0
    %v845 = vadd.f32 0.0, %v844
    %v846 = vpop.f32.mrf.mxu0
    %847 = vdwg.mxu0
    %v850 = vunpack.c.l.s4 1966171168
    %v851 = vunpack.c.0.s8 %v850
    %v852 = vlaneseq
    %v853 = vshrl.u32 %v852, 7
    %v854 = vsub.s32 %v851, %v853
    %v855 = vrot.slane %v845, %v854
    %v856 = vcombine.high %v855, %v855
    %v858 = vunpack.c.l.s4 1966171168
    %v859 = vunpack.c.0.s8 %v858
    %v860 = vlaneseq
    %v861 = vshrl.u32 %v860, 7
    %v862 = vsub.s32 %v859, %v861
    %v863 = vrot.slane %v855, %v862
    %v865 = vunpack.c.l.s4 1966171168
    %v866 = vunpack.c.0.s8 %v865
    %v867 = vlaneseq
    %v868 = vshrl.u32 %v867, 7
    %v869 = vsub.s32 %v866, %v868
    %v870 = vrot.slane %v856, %v869
    %v871 = vlaneseq
    %v872 = vshrl.u32 %v871, 7
    %v873 = vsub.s32 0, %v872
    %v874 = vrot.slane %v863, %v873
    %v875 = vlaneseq
    %v876 = vshrl.u32 %v875, 7
    %v877 = vsub.s32 0, %v876
    %v878 = vrot.slane %v870, %v877
    %v881 = vmul.f32 %v45, %v874
    %v882 = vmul.f32 %v46, %v874
    %v883 = vmul.f32 %v47, %v874
    %v884 = vmul.f32 %v48, %v874
    %v885 = vmul.f32 %v49, %v878
    %v886 = vmul.f32 %v50, %v878
    %v887 = vmul.f32 %v51, %v878
    %v888 = vmul.f32 %v52, %v878
    %v889 = vsel %vm80, %v881, 0.0
    %890 = vadd.xlane.f32.xlu0 %v889
    %v891 = vpop.xlane.xlu0 %890
    %v892 = vsel %vm80, %v882, 0.0
    %893 = vadd.xlane.f32.xlu0 %v892
    %v894 = vpop.xlane.xlu0 %893
    %v895 = vsel %vm80, %v883, 0.0
    %896 = vadd.xlane.f32.xlu0 %v895
    %v897 = vpop.xlane.xlu0 %896
    %v898 = vsel %vm80, %v884, 0.0
    %899 = vadd.xlane.f32.xlu0 %v898
    %v900 = vpop.xlane.xlu0 %899
    %v901 = vsel %vm80, %v885, 0.0
    %902 = vadd.xlane.f32.xlu0 %v901
    %v903 = vpop.xlane.xlu0 %902
    %v904 = vsel %vm80, %v886, 0.0
    %905 = vadd.xlane.f32.xlu0 %v904
    %v906 = vpop.xlane.xlu0 %905
    %v907 = vsel %vm80, %v887, 0.0
    %908 = vadd.xlane.f32.xlu0 %v907
    %v909 = vpop.xlane.xlu0 %908
    %v910 = vsel %vm80, %v888, 0.0
    %911 = vadd.xlane.f32.xlu0 %v910
    %v912 = vpop.xlane.xlu0 %911
    %v913 = vadd.f32 %v891, %v226
    %v914 = vadd.f32 %v894, %v230
    %v915 = vadd.f32 %v897, %v234
    %v916 = vadd.f32 %v900, %v238
    %v917 = vadd.f32 %v903, %v245
    %v918 = vadd.f32 %v906, %v249
    %v919 = vadd.f32 %v909, %v253
    %v920 = vadd.f32 %v912, %v257
    %929 = vset.pattern.permute.xlu0 0
    %930 = vperm.xlu0 %929, %v913
    %v931 = vpop.permute.xlu0 %930
    %932 = vset.pattern.permute.xlu0 0
    %933 = vperm.xlu0 %932, %v914
    %v934 = vpop.permute.xlu0 %933
    %935 = vset.pattern.permute.xlu0 0
    %936 = vperm.xlu0 %935, %v915
    %v937 = vpop.permute.xlu0 %936
    %938 = vset.pattern.permute.xlu0 0
    %939 = vperm.xlu0 %938, %v916
    %v940 = vpop.permute.xlu0 %939
    %941 = vset.pattern.permute.xlu0 0
    %942 = vperm.xlu0 %941, %v917
    %v943 = vpop.permute.xlu0 %942
    %944 = vset.pattern.permute.xlu0 0
    %945 = vperm.xlu0 %944, %v918
    %v946 = vpop.permute.xlu0 %945
    %947 = vset.pattern.permute.xlu0 0
    %948 = vperm.xlu0 %947, %v919
    %v949 = vpop.permute.xlu0 %948
    %950 = vset.pattern.permute.xlu0 0
    %951 = vperm.xlu0 %950, %v920
    %v952 = vpop.permute.xlu0 %951
    %v953 = vlaneseq
    %v954 = vshrl.u32 %v953, 7
    %v955 = vsub.s32 %v307, %v954
    %v956 = vrot.slane %v931, %v955
    %v957 = vlaneseq
    %v958 = vshrl.u32 %v957, 7
    %v959 = vsub.s32 %v312, %v958
    %v960 = vrot.slane %v934, %v959
    %v961 = vsel %vm317, %v960, %v956
    %v962 = vlaneseq
    %v963 = vshrl.u32 %v962, 7
    %v964 = vsub.s32 %v319, %v963
    %v965 = vrot.slane %v937, %v964
    %v966 = vsel %vm324, %v965, %v961
    %v967 = vlaneseq
    %v968 = vshrl.u32 %v967, 7
    %v969 = vsub.s32 %v326, %v968
    %v970 = vrot.slane %v940, %v969
    %v971 = vsel %vm331, %v970, %v966
    %v972 = vlaneseq
    %v973 = vshrl.u32 %v972, 7
    %v974 = vsub.s32 %v307, %v973
    %v975 = vrot.slane %v943, %v974
    %v976 = vlaneseq
    %v977 = vshrl.u32 %v976, 7
    %v978 = vsub.s32 %v312, %v977
    %v979 = vrot.slane %v946, %v978
    %v980 = vsel %vm317, %v979, %v975
    %v981 = vlaneseq
    %v982 = vshrl.u32 %v981, 7
    %v983 = vsub.s32 %v319, %v982
    %v984 = vrot.slane %v949, %v983
    %v985 = vsel %vm324, %v984, %v980
    %v986 = vlaneseq
    %v987 = vshrl.u32 %v986, 7
    %v988 = vsub.s32 %v326, %v987
    %v989 = vrot.slane %v952, %v988
    %v990 = vsel %vm331, %v989, %v985
    %v991 = vsel %vm352, %v990, %v971
    %v993 = vsel %vm355, %v991, -inf
    %994 = vmax.xlane.f32.xlu0 %v993
    %v995 = vpop.xlane.xlu0 %994
    %v997 = vlaneseq
    %v998 = vshrl.u32 %v997, 7
    %v999 = vsub.s32 0, %v998
    %v1000 = vrot.slane %v995, %v999
    %v1001 = vlaneseq
    %v1002 = vshrl.u32 %v1001, 7
    %v1003 = vsub.s32 1, %v1002
    %v1004 = vrot.slane %v995, %v1003
    %v1007 = vsub.f32 %v913, %v1000
    %v1008 = vsub.f32 %v914, %v1000
    %v1009 = vsub.f32 %v915, %v1000
    %v1010 = vsub.f32 %v916, %v1000
    %v1011 = vsub.f32 %v917, %v1004
    %v1012 = vsub.f32 %v918, %v1004
    %v1013 = vsub.f32 %v919, %v1004
    %v1014 = vsub.f32 %v920, %v1004
    %v1015 = vmul.f32 %v1007, 1.442695
    %v1016 = vpow.pop %v1015
    %v1017 = vmul.f32 %v1008, 1.442695
    %v1018 = vpow.pop %v1017
    %v1019 = vmul.f32 %v1009, 1.442695
    %v1020 = vpow.pop %v1019
    %v1021 = vmul.f32 %v1010, 1.442695
    %v1022 = vpow.pop %v1021
    %v1023 = vmul.f32 %v1011, 1.442695
    %v1024 = vpow.pop %v1023
    %v1025 = vmul.f32 %v1012, 1.442695
    %v1026 = vpow.pop %v1025
    %v1027 = vmul.f32 %v1013, 1.442695
    %v1028 = vpow.pop %v1027
    %v1029 = vmul.f32 %v1014, 1.442695
    %v1030 = vpow.pop %v1029
    %1039 = vset.pattern.permute.xlu0 0
    %1040 = vperm.xlu0 %1039, %v1016
    %v1041 = vpop.permute.xlu0 %1040
    %1042 = vset.pattern.permute.xlu0 0
    %1043 = vperm.xlu0 %1042, %v1018
    %v1044 = vpop.permute.xlu0 %1043
    %1045 = vset.pattern.permute.xlu0 0
    %1046 = vperm.xlu0 %1045, %v1020
    %v1047 = vpop.permute.xlu0 %1046
    %1048 = vset.pattern.permute.xlu0 0
    %1049 = vperm.xlu0 %1048, %v1022
    %v1050 = vpop.permute.xlu0 %1049
    %1051 = vset.pattern.permute.xlu0 0
    %1052 = vperm.xlu0 %1051, %v1024
    %v1053 = vpop.permute.xlu0 %1052
    %1054 = vset.pattern.permute.xlu0 0
    %1055 = vperm.xlu0 %1054, %v1026
    %v1056 = vpop.permute.xlu0 %1055
    %1057 = vset.pattern.permute.xlu0 0
    %1058 = vperm.xlu0 %1057, %v1028
    %v1059 = vpop.permute.xlu0 %1058
    %1060 = vset.pattern.permute.xlu0 0
    %1061 = vperm.xlu0 %1060, %v1030
    %v1062 = vpop.permute.xlu0 %1061
    %v1063 = vlaneseq
    %v1064 = vshrl.u32 %v1063, 7
    %v1065 = vsub.s32 %v307, %v1064
    %v1066 = vrot.slane %v1041, %v1065
    %v1067 = vlaneseq
    %v1068 = vshrl.u32 %v1067, 7
    %v1069 = vsub.s32 %v312, %v1068
    %v1070 = vrot.slane %v1044, %v1069
    %v1071 = vsel %vm317, %v1070, %v1066
    %v1072 = vlaneseq
    %v1073 = vshrl.u32 %v1072, 7
    %v1074 = vsub.s32 %v319, %v1073
    %v1075 = vrot.slane %v1047, %v1074
    %v1076 = vsel %vm324, %v1075, %v1071
    %v1077 = vlaneseq
    %v1078 = vshrl.u32 %v1077, 7
    %v1079 = vsub.s32 %v326, %v1078
    %v1080 = vrot.slane %v1050, %v1079
    %v1081 = vsel %vm331, %v1080, %v1076
    %v1082 = vlaneseq
    %v1083 = vshrl.u32 %v1082, 7
    %v1084 = vsub.s32 %v307, %v1083
    %v1085 = vrot.slane %v1053, %v1084
    %v1086 = vlaneseq
    %v1087 = vshrl.u32 %v1086, 7
    %v1088 = vsub.s32 %v312, %v1087
    %v1089 = vrot.slane %v1056, %v1088
    %v1090 = vsel %vm317, %v1089, %v1085
    %v1091 = vlaneseq
    %v1092 = vshrl.u32 %v1091, 7
    %v1093 = vsub.s32 %v319, %v1092
    %v1094 = vrot.slane %v1059, %v1093
    %v1095 = vsel %vm324, %v1094, %v1090
    %v1096 = vlaneseq
    %v1097 = vshrl.u32 %v1096, 7
    %v1098 = vsub.s32 %v326, %v1097
    %v1099 = vrot.slane %v1062, %v1098
    %v1100 = vsel %vm331, %v1099, %v1095
    %v1101 = vsel %vm352, %v1100, %v1081
    %v1103 = vsel %vm355, %v1101, 0.0
    %1104 = vadd.xlane.f32.xlu0 %v1103
    %v1105 = vpop.xlane.xlu0 %1104
    %v1106 = vrcp.pop %v1105
    %v1108 = vlaneseq
    %v1109 = vshrl.u32 %v1108, 7
    %v1110 = vsub.s32 0, %v1109
    %v1111 = vrot.slane %v1106, %v1110
    %v1112 = vlaneseq
    %v1113 = vshrl.u32 %v1112, 7
    %v1114 = vsub.s32 1, %v1113
    %v1115 = vrot.slane %v1106, %v1114
    %v1118 = vmul.f32 %v1016, %v1111
    %v1119 = vmul.f32 %v1018, %v1111
    %v1120 = vmul.f32 %v1020, %v1111
    %v1121 = vmul.f32 %v1022, %v1111
    %v1122 = vmul.f32 %v1024, %v1115
    %v1123 = vmul.f32 %v1026, %v1115
    %v1124 = vmul.f32 %v1028, %v1115
    %v1125 = vmul.f32 %v1030, %v1115
    %1127 = vset.pattern.permute.xlu0 0
    %1128 = vperm.xlu0 %1127, %v1118
    %v1129 = vpop.permute.xlu0 %1128
    %1132 = vset.pattern.permute.xlu0 0
    %1133 = vperm.xlu0 %1132, %v1119
    %v1134 = vpop.permute.xlu0 %1133
    %1137 = vset.pattern.permute.xlu0 0
    %1138 = vperm.xlu0 %1137, %v1120
    %v1139 = vpop.permute.xlu0 %1138
    %1142 = vset.pattern.permute.xlu0 0
    %1143 = vperm.xlu0 %1142, %v1121
    %v1144 = vpop.permute.xlu0 %1143
    %1147 = vset.pattern.permute.xlu0 0
    %1148 = vperm.xlu0 %1147, %v1122
    %v1149 = vpop.permute.xlu0 %1148
    %1152 = vset.pattern.permute.xlu0 0
    %1153 = vperm.xlu0 %1152, %v1123
    %v1154 = vpop.permute.xlu0 %1153
    %1157 = vset.pattern.permute.xlu0 0
    %1158 = vperm.xlu0 %1157, %v1124
    %v1159 = vpop.permute.xlu0 %1158
    %1162 = vset.pattern.permute.xlu0 0
    %1163 = vperm.xlu0 %1162, %v1125
    %v1164 = vpop.permute.xlu0 %1163
    %v1166 = vmul.f32 %v1129, %v45
    %v1167 = vmul.f32 %v1134, %v46
    %v1168 = vmul.f32 %v1139, %v47
    %v1169 = vmul.f32 %v1144, %v48
    %v1170 = vmul.f32 %v1149, %v49
    %v1171 = vmul.f32 %v1154, %v50
    %v1172 = vmul.f32 %v1159, %v51
    %v1173 = vmul.f32 %v1164, %v52
    %v1174 = vsel %vm80, %v1166, 0.0
    %v1175 = vsel %vm80, %v1167, 0.0
    %v1176 = vadd.f32 %v1174, %v1175
    %v1177 = vsel %vm80, %v1168, 0.0
    %v1178 = vadd.f32 %v1176, %v1177
    %v1179 = vsel %vm80, %v1169, 0.0
    %v1180 = vadd.f32 %v1178, %v1179
    %v1181 = vrot.slane %v1180, 4
    %v1182 = vadd.f32 %v1180, %v1181
    %v1183 = vrot.slane %v1182, 2
    %v1184 = vadd.f32 %v1182, %v1183
    %v1185 = vrot.slane %v1184, 1
    %v1186 = vadd.f32 %v1184, %v1185
    %v1187 = vsel %vm80, %v1170, 0.0
    %v1188 = vsel %vm80, %v1171, 0.0
    %v1189 = vadd.f32 %v1187, %v1188
    %v1190 = vsel %vm80, %v1172, 0.0
    %v1191 = vadd.f32 %v1189, %v1190
    %v1192 = vsel %vm80, %v1173, 0.0
    %v1193 = vadd.f32 %v1191, %v1192
    %v1194 = vrot.slane %v1193, 4
    %v1195 = vadd.f32 %v1193, %v1194
    %v1196 = vrot.slane %v1195, 2
    %v1197 = vadd.f32 %v1195, %v1196
    %v1198 = vrot.slane %v1197, 1
    %v1199 = vadd.f32 %v1197, %v1198
    %v1202 = vsel %vm352, %v1199, %v1186
    %1203 = vrot.lane.b32.xlu0 %v1202, 8
    %v1204 = vpop.permute.xlu0 %1203
    %1206 = vrot.lane.b32.xlu0 %v676, 72
    %v1207 = vpop.permute.xlu0 %1206
    %v1209 = vsel %vm569, %v775, %v1204
    %v1210 = vsel %vm571, %v1209, %v1207
    %v1212 = vsel %vm579, %v1210, 0
    %1214 = vmatprep.subr.mxu0 0.0
    %1215 = vmatpush1.msra.mxu0 0.0
    %1216 = vmatprep.subr.mxu0 0.0
    %1217 = vmatpush1.msra.mxu0 0.0
    %1218 = vmatprep.subr.mxu0 0.0
    %1219 = vmatpush1.msra.mxu0 0.0
    %1220 = vmatprep.subr.mxu0 0.0
    %1221 = vmatpush1.msra.mxu0 0.0
    %1222 = vmatprep.subr.mxu0 0.0
    %1223 = vmatpush1.msra.mxu0 0.0
    %1224 = vmatprep.subr.mxu0 0.0
    %1225 = vmatpush1.msra.mxu0 0.0
    %1226 = vmatprep.subr.mxu0 0.0
    %1227 = vmatpush1.msra.mxu0 0.0
    %1228 = vmatprep.subr.mxu0 0.0
    %1229 = vmatpush1.msra.mxu0 %v66
    %1230 = vmatprep.subr.mxu0 0.0
    %1231 = vmatpush1.msra.mxu0 %v65
    %1232 = vmatprep.subr.mxu0 0.0
    %1233 = vmatpush1.msra.mxu0 %v64
    %1234 = vmatprep.subr.mxu0 0.0
    %1235 = vmatpush1.msra.mxu0 %v63
    %1236 = vmatprep.subr.mxu0 0.0
    %1237 = vmatpush1.msra.mxu0 %v62
    %1238 = vmatprep.subr.mxu0 0.0
    %1239 = vmatpush1.msra.mxu0 %v61
    %1240 = vmatprep.subr.mxu0 0.0
    %1241 = vmatpush1.msra.mxu0 %v60
    %1242 = vmatprep.subr.mxu0 0.0
    %1243 = vmatpush1.msra.mxu0 %v59
    %1244 = vmatprep.subr.mxu0 0.0
    %1245 = vmatpush1.msra.mxu0 %v58
    %1246 = vmatprep.subr.mxu0 0.0
    %1247 = vmatpush2.msra.mxu0 0.0
    %1248 = vmatprep.subr.mxu0 0.0
    %1249 = vmatpush2.msra.mxu0 0.0
    %1250 = vmatprep.subr.mxu0 0.0
    %1251 = vmatpush2.msra.mxu0 0.0
    %1252 = vmatprep.subr.mxu0 0.0
    %1253 = vmatpush2.msra.mxu0 0.0
    %1254 = vmatprep.subr.mxu0 0.0
    %1255 = vmatpush2.msra.mxu0 0.0
    %1256 = vmatprep.subr.mxu0 0.0
    %1257 = vmatpush2.msra.mxu0 0.0
    %1258 = vmatprep.subr.mxu0 0.0
    %1259 = vmatpush2.msra.mxu0 0.0
    %1260 = vmatprep.subr.mxu0 0.0
    %1261 = vmatpush2.msra.mxu0 0.0
    %1262 = vmatprep.subr.mxu0 0.0
    %1263 = vmatpush2.msra.mxu0 0.0
    %1264 = vmatprep.subr.mxu0 0.0
    %1265 = vmatpush2.msra.mxu0 0.0
    %1266 = vmatprep.subr.mxu0 0.0
    %1267 = vmatpush2.msra.mxu0 0.0
    %1268 = vmatprep.subr.mxu0 0.0
    %1269 = vmatpush2.msra.mxu0 0.0
    %1270 = vmatprep.subr.mxu0 0.0
    %1271 = vmatpush2.msra.mxu0 0.0
    %1272 = vmatprep.subr.mxu0 0.0
    %1273 = vmatpush2.msra.mxu0 0.0
    %1274 = vmatprep.subr.mxu0 0.0
    %1275 = vmatpush2.msra.mxu0 0.0
    %1276 = vmatprep.subr.mxu0 0.0
    %1277 = vmatpush2.msra.mxu0 0.0
    %1278 = vmatprep.mubr.f32.mxu0 0.0
    %1279 = vmatmul.mubr.f32.gmra.mxu0 %v1212
    %v1280 = vpop.f32.mrf.mxu0
    %v1281 = vadd.f32 %v577, %v1280
    %v1282 = vpop.f32.mrf.mxu0
    %1283 = vdwg.mxu0
    %v1284 = vxor.u32 %v1281, 2147483648
    %v1285 = vmul.f32 %v1284, 1.442695
    %v1286 = vpow.pop %v1285
    %v1287 = vadd.f32 %v1286, 1.0
    %v1288 = vrcp.pop %v1287
    %v1289 = vmul.f32 1.0, %v1288
    %v1290 = vtanh.pop %v1281
    %v1291 = vmul.f32 %v1289, %v670
    %1293 = vrot.lane.b32.xlu0 %v1290, 64
    %v1294 = vpop.permute.xlu0 %1293
    %v1296 = vmul.f32 %v1289, %v1294
    %1298 = vrot.lane.b32.xlu0 %v1296, 32
    %v1299 = vpop.permute.xlu0 %1298
    %v1301 = vadd.f32 %v1291, %v1299
    %v1302 = vtanh.pop %v1301
    %1304 = vrot.lane.b32.xlu0 %v1302, 64
    %v1305 = vpop.permute.xlu0 %1304
    %v1307 = vmul.f32 %v1289, %v1305
    %1309 = vrot.lane.b32.xlu0 %v1307, 32
    %v1310 = vpop.permute.xlu0 %1309
    %1312 = vrot.lane.b32.xlu0 %v1202, 32
    %v1313 = vpop.permute.xlu0 %1312
    %v1315 = vsel %vm80, %v1310, %v1313
    %v1317 = vsel %vm691, %v1315, 0
    %1319 = vmatprep.subr.mxu0 0.0
    %1320 = vmatpush1.msra.mxu0 0.0
    %1321 = vmatprep.subr.mxu0 0.0
    %1322 = vmatpush1.msra.mxu0 0.0
    %1323 = vmatprep.subr.mxu0 0.0
    %1324 = vmatpush1.msra.mxu0 0.0
    %1325 = vmatprep.subr.mxu0 0.0
    %1326 = vmatpush1.msra.mxu0 0.0
    %1327 = vmatprep.subr.mxu0 0.0
    %1328 = vmatpush1.msra.mxu0 0.0
    %1329 = vmatprep.subr.mxu0 0.0
    %1330 = vmatpush1.msra.mxu0 0.0
    %1331 = vmatprep.subr.mxu0 0.0
    %1332 = vmatpush1.msra.mxu0 0.0
    %1333 = vmatprep.subr.mxu0 0.0
    %1334 = vmatpush1.msra.mxu0 0.0
    %1335 = vmatprep.subr.mxu0 0.0
    %1336 = vmatpush1.msra.mxu0 %v75
    %1337 = vmatprep.subr.mxu0 0.0
    %1338 = vmatpush1.msra.mxu0 %v74
    %1339 = vmatprep.subr.mxu0 0.0
    %1340 = vmatpush1.msra.mxu0 %v73
    %1341 = vmatprep.subr.mxu0 0.0
    %1342 = vmatpush1.msra.mxu0 %v72
    %1343 = vmatprep.subr.mxu0 0.0
    %1344 = vmatpush1.msra.mxu0 %v71
    %1345 = vmatprep.subr.mxu0 0.0
    %1346 = vmatpush1.msra.mxu0 %v70
    %1347 = vmatprep.subr.mxu0 0.0
    %1348 = vmatpush1.msra.mxu0 %v69
    %1349 = vmatprep.subr.mxu0 0.0
    %1350 = vmatpush1.msra.mxu0 %v68
    %1351 = vmatprep.subr.mxu0 0.0
    %1352 = vmatpush2.msra.mxu0 0.0
    %1353 = vmatprep.subr.mxu0 0.0
    %1354 = vmatpush2.msra.mxu0 0.0
    %1355 = vmatprep.subr.mxu0 0.0
    %1356 = vmatpush2.msra.mxu0 0.0
    %1357 = vmatprep.subr.mxu0 0.0
    %1358 = vmatpush2.msra.mxu0 0.0
    %1359 = vmatprep.subr.mxu0 0.0
    %1360 = vmatpush2.msra.mxu0 0.0
    %1361 = vmatprep.subr.mxu0 0.0
    %1362 = vmatpush2.msra.mxu0 0.0
    %1363 = vmatprep.subr.mxu0 0.0
    %1364 = vmatpush2.msra.mxu0 0.0
    %1365 = vmatprep.subr.mxu0 0.0
    %1366 = vmatpush2.msra.mxu0 0.0
    %1367 = vmatprep.subr.mxu0 0.0
    %1368 = vmatpush2.msra.mxu0 0.0
    %1369 = vmatprep.subr.mxu0 0.0
    %1370 = vmatpush2.msra.mxu0 0.0
    %1371 = vmatprep.subr.mxu0 0.0
    %1372 = vmatpush2.msra.mxu0 0.0
    %1373 = vmatprep.subr.mxu0 0.0
    %1374 = vmatpush2.msra.mxu0 0.0
    %1375 = vmatprep.subr.mxu0 0.0
    %1376 = vmatpush2.msra.mxu0 0.0
    %1377 = vmatprep.subr.mxu0 0.0
    %1378 = vmatpush2.msra.mxu0 0.0
    %1379 = vmatprep.subr.mxu0 0.0
    %1380 = vmatpush2.msra.mxu0 0.0
    %1381 = vmatprep.subr.mxu0 0.0
    %1382 = vmatpush2.msra.mxu0 0.0
    %1383 = vmatprep.mubr.f32.mxu0 0.0
    %1384 = vmatmul.mubr.f32.gmra.mxu0 %v1317
    %v1385 = vpop.f32.mrf.mxu0
    %v1386 = vadd.f32 %v689, %v1385
    %v1387 = vpop.f32.mrf.mxu0
    %1388 = vdwg.mxu0
    %s1389 = scalar_lea.vmem %s9, 4
    %1390 = vst.msk [vmem:[%s1389] sm:$0x3] %vm77, %v1386
    %s1391 = sld [smem:[#allocation2 + $0x2]]
    %s1392 = scalar_lea.vmem %s1, 4
    %v1393 = vld [vmem:[%s1392] sm:$0x3]
    %v1394 = vstv %s1391
    %v1395 = vmul.f32 %v1394, %v1393
    %s1396 = ssub.f32 1.0, %s1391
    %v1397 = vstv %s1396
    %v1398 = vmul.f32 %v1397, %v1386
    %v1399 = vadd.f32 %v1395, %v1398
    %v1400 = vsel %vm80, %v1310, 0
    %1402 = vmatprep.subr.mxu0 0.0
    %1403 = vmatpush1.msra.mxu0 0.0
    %1404 = vmatprep.subr.mxu0 0.0
    %1405 = vmatpush1.msra.mxu0 0.0
    %1406 = vmatprep.subr.mxu0 0.0
    %1407 = vmatpush1.msra.mxu0 0.0
    %1408 = vmatprep.subr.mxu0 0.0
    %1409 = vmatpush1.msra.mxu0 0.0
    %1410 = vmatprep.subr.mxu0 0.0
    %1411 = vmatpush1.msra.mxu0 0.0
    %1412 = vmatprep.subr.mxu0 0.0
    %1413 = vmatpush1.msra.mxu0 0.0
    %1414 = vmatprep.subr.mxu0 0.0
    %1415 = vmatpush1.msra.mxu0 0.0
    %1416 = vmatprep.subr.mxu0 0.0
    %1417 = vmatpush1.msra.mxu0 0.0
    %1418 = vmatprep.subr.mxu0 0.0
    %1419 = vmatpush1.msra.mxu0 0.0
    %1420 = vmatprep.subr.mxu0 0.0
    %1421 = vmatpush1.msra.mxu0 0.0
    %1422 = vmatprep.subr.mxu0 0.0
    %1423 = vmatpush1.msra.mxu0 0.0
    %1424 = vmatprep.subr.mxu0 0.0
    %1425 = vmatpush1.msra.mxu0 0.0
    %1426 = vmatprep.subr.mxu0 0.0
    %1427 = vmatpush1.msra.mxu0 %v57
    %1428 = vmatprep.subr.mxu0 0.0
    %1429 = vmatpush1.msra.mxu0 %v56
    %1430 = vmatprep.subr.mxu0 0.0
    %1431 = vmatpush1.msra.mxu0 %v55
    %1432 = vmatprep.subr.mxu0 0.0
    %1433 = vmatpush1.msra.mxu0 %v54
    %1434 = vmatprep.subr.mxu0 0.0
    %1435 = vmatpush2.msra.mxu0 0.0
    %1436 = vmatprep.subr.mxu0 0.0
    %1437 = vmatpush2.msra.mxu0 0.0
    %1438 = vmatprep.subr.mxu0 0.0
    %1439 = vmatpush2.msra.mxu0 0.0
    %1440 = vmatprep.subr.mxu0 0.0
    %1441 = vmatpush2.msra.mxu0 0.0
    %1442 = vmatprep.subr.mxu0 0.0
    %1443 = vmatpush2.msra.mxu0 0.0
    %1444 = vmatprep.subr.mxu0 0.0
    %1445 = vmatpush2.msra.mxu0 0.0
    %1446 = vmatprep.subr.mxu0 0.0
    %1447 = vmatpush2.msra.mxu0 0.0
    %1448 = vmatprep.subr.mxu0 0.0
    %1449 = vmatpush2.msra.mxu0 0.0
    %1450 = vmatprep.subr.mxu0 0.0
    %1451 = vmatpush2.msra.mxu0 0.0
    %1452 = vmatprep.subr.mxu0 0.0
    %1453 = vmatpush2.msra.mxu0 0.0
    %1454 = vmatprep.subr.mxu0 0.0
    %1455 = vmatpush2.msra.mxu0 0.0
    %1456 = vmatprep.subr.mxu0 0.0
    %1457 = vmatpush2.msra.mxu0 0.0
    %1458 = vmatprep.subr.mxu0 0.0
    %1459 = vmatpush2.msra.mxu0 0.0
    %1460 = vmatprep.subr.mxu0 0.0
    %1461 = vmatpush2.msra.mxu0 0.0
    %1462 = vmatprep.subr.mxu0 0.0
    %1463 = vmatpush2.msra.mxu0 0.0
    %1464 = vmatprep.subr.mxu0 0.0
    %1465 = vmatpush2.msra.mxu0 0.0
    %1466 = vmatprep.mubr.f32.mxu0 0.0
    %1467 = vmatmul.mubr.f32.gmra.mxu0 %v1400
    %v1468 = vpop.f32.mrf.mxu0
    %v1469 = vadd.f32 0.0, %v1468
    %v1470 = vpop.f32.mrf.mxu0
    %1471 = vdwg.mxu0
    %v1474 = vunpack.c.l.s4 1966171168
    %v1475 = vunpack.c.0.s8 %v1474
    %v1476 = vlaneseq
    %v1477 = vshrl.u32 %v1476, 7
    %v1478 = vsub.s32 %v1475, %v1477
    %v1479 = vrot.slane %v1469, %v1478
    %v1480 = vcombine.high %v1479, %v1479
    %v1482 = vunpack.c.l.s4 1966171168
    %v1483 = vunpack.c.0.s8 %v1482
    %v1484 = vlaneseq
    %v1485 = vshrl.u32 %v1484, 7
    %v1486 = vsub.s32 %v1483, %v1485
    %v1487 = vrot.slane %v1479, %v1486
    %v1489 = vunpack.c.l.s4 1966171168
    %v1490 = vunpack.c.0.s8 %v1489
    %v1491 = vlaneseq
    %v1492 = vshrl.u32 %v1491, 7
    %v1493 = vsub.s32 %v1490, %v1492
    %v1494 = vrot.slane %v1480, %v1493
    %v1495 = vlaneseq
    %v1496 = vshrl.u32 %v1495, 7
    %v1497 = vsub.s32 0, %v1496
    %v1498 = vrot.slane %v1487, %v1497
    %v1499 = vlaneseq
    %v1500 = vshrl.u32 %v1499, 7
    %v1501 = vsub.s32 0, %v1500
    %v1502 = vrot.slane %v1494, %v1501
    %v1505 = vmul.f32 %v45, %v1498
    %v1506 = vmul.f32 %v46, %v1498
    %v1507 = vmul.f32 %v47, %v1498
    %v1508 = vmul.f32 %v48, %v1498
    %v1509 = vmul.f32 %v49, %v1502
    %v1510 = vmul.f32 %v50, %v1502
    %v1511 = vmul.f32 %v51, %v1502
    %v1512 = vmul.f32 %v52, %v1502
    %v1513 = vsel %vm80, %v1505, 0.0
    %1514 = vadd.xlane.f32.xlu0 %v1513
    %v1515 = vpop.xlane.xlu0 %1514
    %v1516 = vsel %vm80, %v1506, 0.0
    %1517 = vadd.xlane.f32.xlu0 %v1516
    %v1518 = vpop.xlane.xlu0 %1517
    %v1519 = vsel %vm80, %v1507, 0.0
    %1520 = vadd.xlane.f32.xlu0 %v1519
    %v1521 = vpop.xlane.xlu0 %1520
    %v1522 = vsel %vm80, %v1508, 0.0
    %1523 = vadd.xlane.f32.xlu0 %v1522
    %v1524 = vpop.xlane.xlu0 %1523
    %v1525 = vsel %vm80, %v1509, 0.0
    %1526 = vadd.xlane.f32.xlu0 %v1525
    %v1527 = vpop.xlane.xlu0 %1526
    %v1528 = vsel %vm80, %v1510, 0.0
    %1529 = vadd.xlane.f32.xlu0 %v1528
    %v1530 = vpop.xlane.xlu0 %1529
    %v1531 = vsel %vm80, %v1511, 0.0
    %1532 = vadd.xlane.f32.xlu0 %v1531
    %v1533 = vpop.xlane.xlu0 %1532
    %v1534 = vsel %vm80, %v1512, 0.0
    %1535 = vadd.xlane.f32.xlu0 %v1534
    %v1536 = vpop.xlane.xlu0 %1535
    %v1537 = vadd.f32 %v1515, %v226
    %v1538 = vadd.f32 %v1518, %v230
    %v1539 = vadd.f32 %v1521, %v234
    %v1540 = vadd.f32 %v1524, %v238
    %v1541 = vadd.f32 %v1527, %v245
    %v1542 = vadd.f32 %v1530, %v249
    %v1543 = vadd.f32 %v1533, %v253
    %v1544 = vadd.f32 %v1536, %v257
    %1553 = vset.pattern.permute.xlu0 0
    %1554 = vperm.xlu0 %1553, %v1537
    %v1555 = vpop.permute.xlu0 %1554
    %1556 = vset.pattern.permute.xlu0 0
    %1557 = vperm.xlu0 %1556, %v1538
    %v1558 = vpop.permute.xlu0 %1557
    %1559 = vset.pattern.permute.xlu0 0
    %1560 = vperm.xlu0 %1559, %v1539
    %v1561 = vpop.permute.xlu0 %1560
    %1562 = vset.pattern.permute.xlu0 0
    %1563 = vperm.xlu0 %1562, %v1540
    %v1564 = vpop.permute.xlu0 %1563
    %1565 = vset.pattern.permute.xlu0 0
    %1566 = vperm.xlu0 %1565, %v1541
    %v1567 = vpop.permute.xlu0 %1566
    %1568 = vset.pattern.permute.xlu0 0
    %1569 = vperm.xlu0 %1568, %v1542
    %v1570 = vpop.permute.xlu0 %1569
    %1571 = vset.pattern.permute.xlu0 0
    %1572 = vperm.xlu0 %1571, %v1543
    %v1573 = vpop.permute.xlu0 %1572
    %1574 = vset.pattern.permute.xlu0 0
    %1575 = vperm.xlu0 %1574, %v1544
    %v1576 = vpop.permute.xlu0 %1575
    %v1577 = vlaneseq
    %v1578 = vshrl.u32 %v1577, 7
    %v1579 = vsub.s32 %v307, %v1578
    %v1580 = vrot.slane %v1555, %v1579
    %v1581 = vlaneseq
    %v1582 = vshrl.u32 %v1581, 7
    %v1583 = vsub.s32 %v312, %v1582
    %v1584 = vrot.slane %v1558, %v1583
    %v1585 = vsel %vm317, %v1584, %v1580
    %v1586 = vlaneseq
    %v1587 = vshrl.u32 %v1586, 7
    %v1588 = vsub.s32 %v319, %v1587
    %v1589 = vrot.slane %v1561, %v1588
    %v1590 = vsel %vm324, %v1589, %v1585
    %v1591 = vlaneseq
    %v1592 = vshrl.u32 %v1591, 7
    %v1593 = vsub.s32 %v326, %v1592
    %v1594 = vrot.slane %v1564, %v1593
    %v1595 = vsel %vm331, %v1594, %v1590
    %v1596 = vlaneseq
    %v1597 = vshrl.u32 %v1596, 7
    %v1598 = vsub.s32 %v307, %v1597
    %v1599 = vrot.slane %v1567, %v1598
    %v1600 = vlaneseq
    %v1601 = vshrl.u32 %v1600, 7
    %v1602 = vsub.s32 %v312, %v1601
    %v1603 = vrot.slane %v1570, %v1602
    %v1604 = vsel %vm317, %v1603, %v1599
    %v1605 = vlaneseq
    %v1606 = vshrl.u32 %v1605, 7
    %v1607 = vsub.s32 %v319, %v1606
    %v1608 = vrot.slane %v1573, %v1607
    %v1609 = vsel %vm324, %v1608, %v1604
    %v1610 = vlaneseq
    %v1611 = vshrl.u32 %v1610, 7
    %v1612 = vsub.s32 %v326, %v1611
    %v1613 = vrot.slane %v1576, %v1612
    %v1614 = vsel %vm331, %v1613, %v1609
    %v1615 = vsel %vm352, %v1614, %v1595
    %v1617 = vsel %vm355, %v1615, -inf
    %1618 = vmax.xlane.f32.xlu0 %v1617
    %v1619 = vpop.xlane.xlu0 %1618
    %v1621 = vlaneseq
    %v1622 = vshrl.u32 %v1621, 7
    %v1623 = vsub.s32 0, %v1622
    %v1624 = vrot.slane %v1619, %v1623
    %v1625 = vlaneseq
    %v1626 = vshrl.u32 %v1625, 7
    %v1627 = vsub.s32 1, %v1626
    %v1628 = vrot.slane %v1619, %v1627
    %v1631 = vsub.f32 %v1537, %v1624
    %v1632 = vsub.f32 %v1538, %v1624
    %v1633 = vsub.f32 %v1539, %v1624
    %v1634 = vsub.f32 %v1540, %v1624
    %v1635 = vsub.f32 %v1541, %v1628
    %v1636 = vsub.f32 %v1542, %v1628
    %v1637 = vsub.f32 %v1543, %v1628
    %v1638 = vsub.f32 %v1544, %v1628
    %v1639 = vmul.f32 %v1631, 1.442695
    %v1640 = vpow.pop %v1639
    %v1641 = vmul.f32 %v1632, 1.442695
    %v1642 = vpow.pop %v1641
    %v1643 = vmul.f32 %v1633, 1.442695
    %v1644 = vpow.pop %v1643
    %v1645 = vmul.f32 %v1634, 1.442695
    %v1646 = vpow.pop %v1645
    %v1647 = vmul.f32 %v1635, 1.442695
    %v1648 = vpow.pop %v1647
    %v1649 = vmul.f32 %v1636, 1.442695
    %v1650 = vpow.pop %v1649
    %v1651 = vmul.f32 %v1637, 1.442695
    %v1652 = vpow.pop %v1651
    %v1653 = vmul.f32 %v1638, 1.442695
    %v1654 = vpow.pop %v1653
    %1663 = vset.pattern.permute.xlu0 0
    %1664 = vperm.xlu0 %1663, %v1640
    %v1665 = vpop.permute.xlu0 %1664
    %1666 = vset.pattern.permute.xlu0 0
    %1667 = vperm.xlu0 %1666, %v1642
    %v1668 = vpop.permute.xlu0 %1667
    %1669 = vset.pattern.permute.xlu0 0
    %1670 = vperm.xlu0 %1669, %v1644
    %v1671 = vpop.permute.xlu0 %1670
    %1672 = vset.pattern.permute.xlu0 0
    %1673 = vperm.xlu0 %1672, %v1646
    %v1674 = vpop.permute.xlu0 %1673
    %1675 = vset.pattern.permute.xlu0 0
    %1676 = vperm.xlu0 %1675, %v1648
    %v1677 = vpop.permute.xlu0 %1676
    %1678 = vset.pattern.permute.xlu0 0
    %1679 = vperm.xlu0 %1678, %v1650
    %v1680 = vpop.permute.xlu0 %1679
    %1681 = vset.pattern.permute.xlu0 0
    %1682 = vperm.xlu0 %1681, %v1652
    %v1683 = vpop.permute.xlu0 %1682
    %1684 = vset.pattern.permute.xlu0 0
    %1685 = vperm.xlu0 %1684, %v1654
    %v1686 = vpop.permute.xlu0 %1685
    %v1687 = vlaneseq
    %v1688 = vshrl.u32 %v1687, 7
    %v1689 = vsub.s32 %v307, %v1688
    %v1690 = vrot.slane %v1665, %v1689
    %v1691 = vlaneseq
    %v1692 = vshrl.u32 %v1691, 7
    %v1693 = vsub.s32 %v312, %v1692
    %v1694 = vrot.slane %v1668, %v1693
    %v1695 = vsel %vm317, %v1694, %v1690
    %v1696 = vlaneseq
    %v1697 = vshrl.u32 %v1696, 7
    %v1698 = vsub.s32 %v319, %v1697
    %v1699 = vrot.slane %v1671, %v1698
    %v1700 = vsel %vm324, %v1699, %v1695
    %v1701 = vlaneseq
    %v1702 = vshrl.u32 %v1701, 7
    %v1703 = vsub.s32 %v326, %v1702
    %v1704 = vrot.slane %v1674, %v1703
    %v1705 = vsel %vm331, %v1704, %v1700
    %v1706 = vlaneseq
    %v1707 = vshrl.u32 %v1706, 7
    %v1708 = vsub.s32 %v307, %v1707
    %v1709 = vrot.slane %v1677, %v1708
    %v1710 = vlaneseq
    %v1711 = vshrl.u32 %v1710, 7
    %v1712 = vsub.s32 %v312, %v1711
    %v1713 = vrot.slane %v1680, %v1712
    %v1714 = vsel %vm317, %v1713, %v1709
    %v1715 = vlaneseq
    %v1716 = vshrl.u32 %v1715, 7
    %v1717 = vsub.s32 %v319, %v1716
    %v1718 = vrot.slane %v1683, %v1717
    %v1719 = vsel %vm324, %v1718, %v1714
    %v1720 = vlaneseq
    %v1721 = vshrl.u32 %v1720, 7
    %v1722 = vsub.s32 %v326, %v1721
    %v1723 = vrot.slane %v1686, %v1722
    %v1724 = vsel %vm331, %v1723, %v1719
    %v1725 = vsel %vm352, %v1724, %v1705
    %v1727 = vsel %vm355, %v1725, 0.0
    %1728 = vadd.xlane.f32.xlu0 %v1727
    %v1729 = vpop.xlane.xlu0 %1728
    %v1730 = vrcp.pop %v1729
    %v1732 = vlaneseq
    %v1733 = vshrl.u32 %v1732, 7
    %v1734 = vsub.s32 0, %v1733
    %v1735 = vrot.slane %v1730, %v1734
    %v1736 = vlaneseq
    %v1737 = vshrl.u32 %v1736, 7
    %v1738 = vsub.s32 1, %v1737
    %v1739 = vrot.slane %v1730, %v1738
    %v1742 = vmul.f32 %v1640, %v1735
    %v1743 = vmul.f32 %v1642, %v1735
    %v1744 = vmul.f32 %v1644, %v1735
    %v1745 = vmul.f32 %v1646, %v1735
    %v1746 = vmul.f32 %v1648, %v1739
    %v1747 = vmul.f32 %v1650, %v1739
    %v1748 = vmul.f32 %v1652, %v1739
    %v1749 = vmul.f32 %v1654, %v1739
    %1751 = vset.pattern.permute.xlu0 0
    %1752 = vperm.xlu0 %1751, %v1742
    %v1753 = vpop.permute.xlu0 %1752
    %1756 = vset.pattern.permute.xlu0 0
    %1757 = vperm.xlu0 %1756, %v1743
    %v1758 = vpop.permute.xlu0 %1757
    %1761 = vset.pattern.permute.xlu0 0
    %1762 = vperm.xlu0 %1761, %v1744
    %v1763 = vpop.permute.xlu0 %1762
    %1766 = vset.pattern.permute.xlu0 0
    %1767 = vperm.xlu0 %1766, %v1745
    %v1768 = vpop.permute.xlu0 %1767
    %1771 = vset.pattern.permute.xlu0 0
    %1772 = vperm.xlu0 %1771, %v1746
    %v1773 = vpop.permute.xlu0 %1772
    %1776 = vset.pattern.permute.xlu0 0
    %1777 = vperm.xlu0 %1776, %v1747
    %v1778 = vpop.permute.xlu0 %1777
    %1781 = vset.pattern.permute.xlu0 0
    %1782 = vperm.xlu0 %1781, %v1748
    %v1783 = vpop.permute.xlu0 %1782
    %1786 = vset.pattern.permute.xlu0 0
    %1787 = vperm.xlu0 %1786, %v1749
    %v1788 = vpop.permute.xlu0 %1787
    %v1790 = vmul.f32 %v1753, %v45
    %v1791 = vmul.f32 %v1758, %v46
    %v1792 = vmul.f32 %v1763, %v47
    %v1793 = vmul.f32 %v1768, %v48
    %v1794 = vmul.f32 %v1773, %v49
    %v1795 = vmul.f32 %v1778, %v50
    %v1796 = vmul.f32 %v1783, %v51
    %v1797 = vmul.f32 %v1788, %v52
    %v1798 = vsel %vm80, %v1790, 0.0
    %v1799 = vsel %vm80, %v1791, 0.0
    %v1800 = vadd.f32 %v1798, %v1799
    %v1801 = vsel %vm80, %v1792, 0.0
    %v1802 = vadd.f32 %v1800, %v1801
    %v1803 = vsel %vm80, %v1793, 0.0
    %v1804 = vadd.f32 %v1802, %v1803
    %v1805 = vrot.slane %v1804, 4
    %v1806 = vadd.f32 %v1804, %v1805
    %v1807 = vrot.slane %v1806, 2
    %v1808 = vadd.f32 %v1806, %v1807
    %v1809 = vrot.slane %v1808, 1
    %v1810 = vadd.f32 %v1808, %v1809
    %v1811 = vsel %vm80, %v1794, 0.0
    %v1812 = vsel %vm80, %v1795, 0.0
    %v1813 = vadd.f32 %v1811, %v1812
    %v1814 = vsel %vm80, %v1796, 0.0
    %v1815 = vadd.f32 %v1813, %v1814
    %v1816 = vsel %vm80, %v1797, 0.0
    %v1817 = vadd.f32 %v1815, %v1816
    %v1818 = vrot.slane %v1817, 4
    %v1819 = vadd.f32 %v1817, %v1818
    %v1820 = vrot.slane %v1819, 2
    %v1821 = vadd.f32 %v1819, %v1820
    %v1822 = vrot.slane %v1821, 1
    %v1823 = vadd.f32 %v1821, %v1822
    %v1826 = vsel %vm352, %v1823, %v1810
    %1827 = vrot.lane.b32.xlu0 %v1826, 8
    %v1828 = vpop.permute.xlu0 %1827
    %1830 = vrot.lane.b32.xlu0 %v1307, 72
    %v1831 = vpop.permute.xlu0 %1830
    %v1833 = vsel %vm569, %v1399, %v1828
    %v1834 = vsel %vm571, %v1833, %v1831
    %v1836 = vsel %vm579, %v1834, 0
    %1838 = vmatprep.subr.mxu0 0.0
    %1839 = vmatpush1.msra.mxu0 0.0
    %1840 = vmatprep.subr.mxu0 0.0
    %1841 = vmatpush1.msra.mxu0 0.0
    %1842 = vmatprep.subr.mxu0 0.0
    %1843 = vmatpush1.msra.mxu0 0.0
    %1844 = vmatprep.subr.mxu0 0.0
    %1845 = vmatpush1.msra.mxu0 0.0
    %1846 = vmatprep.subr.mxu0 0.0
    %1847 = vmatpush1.msra.mxu0 0.0
    %1848 = vmatprep.subr.mxu0 0.0
    %1849 = vmatpush1.msra.mxu0 0.0
    %1850 = vmatprep.subr.mxu0 0.0
    %1851 = vmatpush1.msra.mxu0 0.0
    %1852 = vmatprep.subr.mxu0 0.0
    %1853 = vmatpush1.msra.mxu0 %v66
    %1854 = vmatprep.subr.mxu0 0.0
    %1855 = vmatpush1.msra.mxu0 %v65
    %1856 = vmatprep.subr.mxu0 0.0
    %1857 = vmatpush1.msra.mxu0 %v64
    %1858 = vmatprep.subr.mxu0 0.0
    %1859 = vmatpush1.msra.mxu0 %v63
    %1860 = vmatprep.subr.mxu0 0.0
    %1861 = vmatpush1.msra.mxu0 %v62
    %1862 = vmatprep.subr.mxu0 0.0
    %1863 = vmatpush1.msra.mxu0 %v61
    %1864 = vmatprep.subr.mxu0 0.0
    %1865 = vmatpush1.msra.mxu0 %v60
    %1866 = vmatprep.subr.mxu0 0.0
    %1867 = vmatpush1.msra.mxu0 %v59
    %1868 = vmatprep.subr.mxu0 0.0
    %1869 = vmatpush1.msra.mxu0 %v58
    %1870 = vmatprep.subr.mxu0 0.0
    %1871 = vmatpush2.msra.mxu0 0.0
    %1872 = vmatprep.subr.mxu0 0.0
    %1873 = vmatpush2.msra.mxu0 0.0
    %1874 = vmatprep.subr.mxu0 0.0
    %1875 = vmatpush2.msra.mxu0 0.0
    %1876 = vmatprep.subr.mxu0 0.0
    %1877 = vmatpush2.msra.mxu0 0.0
    %1878 = vmatprep.subr.mxu0 0.0
    %1879 = vmatpush2.msra.mxu0 0.0
    %1880 = vmatprep.subr.mxu0 0.0
    %1881 = vmatpush2.msra.mxu0 0.0
    %1882 = vmatprep.subr.mxu0 0.0
    %1883 = vmatpush2.msra.mxu0 0.0
    %1884 = vmatprep.subr.mxu0 0.0
    %1885 = vmatpush2.msra.mxu0 0.0
    %1886 = vmatprep.subr.mxu0 0.0
    %1887 = vmatpush2.msra.mxu0 0.0
    %1888 = vmatprep.subr.mxu0 0.0
    %1889 = vmatpush2.msra.mxu0 0.0
    %1890 = vmatprep.subr.mxu0 0.0
    %1891 = vmatpush2.msra.mxu0 0.0
    %1892 = vmatprep.subr.mxu0 0.0
    %1893 = vmatpush2.msra.mxu0 0.0
    %1894 = vmatprep.subr.mxu0 0.0
    %1895 = vmatpush2.msra.mxu0 0.0
    %1896 = vmatprep.subr.mxu0 0.0
    %1897 = vmatpush2.msra.mxu0 0.0
    %1898 = vmatprep.subr.mxu0 0.0
    %1899 = vmatpush2.msra.mxu0 0.0
    %1900 = vmatprep.subr.mxu0 0.0
    %1901 = vmatpush2.msra.mxu0 0.0
    %1902 = vmatprep.mubr.f32.mxu0 0.0
    %1903 = vmatmul.mubr.f32.gmra.mxu0 %v1836
    %v1904 = vpop.f32.mrf.mxu0
    %v1905 = vadd.f32 %v577, %v1904
    %v1906 = vpop.f32.mrf.mxu0
    %1907 = vdwg.mxu0
    %v1908 = vxor.u32 %v1905, 2147483648
    %v1909 = vmul.f32 %v1908, 1.442695
    %v1910 = vpow.pop %v1909
    %v1911 = vadd.f32 %v1910, 1.0
    %v1912 = vrcp.pop %v1911
    %v1913 = vmul.f32 1.0, %v1912
    %v1914 = vtanh.pop %v1905
    %v1915 = vmul.f32 %v1913, %v1301
    %1917 = vrot.lane.b32.xlu0 %v1914, 64
    %v1918 = vpop.permute.xlu0 %1917
    %v1920 = vmul.f32 %v1913, %v1918
    %1922 = vrot.lane.b32.xlu0 %v1920, 32
    %v1923 = vpop.permute.xlu0 %1922
    %v1925 = vadd.f32 %v1915, %v1923
    %v1926 = vtanh.pop %v1925
    %1928 = vrot.lane.b32.xlu0 %v1926, 64
    %v1929 = vpop.permute.xlu0 %1928
    %v1931 = vmul.f32 %v1913, %v1929
    %1933 = vrot.lane.b32.xlu0 %v1931, 32
    %v1934 = vpop.permute.xlu0 %1933
    %1936 = vrot.lane.b32.xlu0 %v1826, 32
    %v1937 = vpop.permute.xlu0 %1936
    %v1939 = vsel %vm80, %v1934, %v1937
    %v1941 = vsel %vm691, %v1939, 0
    %1943 = vmatprep.subr.mxu0 0.0
    %1944 = vmatpush1.msra.mxu0 0.0
    %1945 = vmatprep.subr.mxu0 0.0
    %1946 = vmatpush1.msra.mxu0 0.0
    %1947 = vmatprep.subr.mxu0 0.0
    %1948 = vmatpush1.msra.mxu0 0.0
    %1949 = vmatprep.subr.mxu0 0.0
    %1950 = vmatpush1.msra.mxu0 0.0
    %1951 = vmatprep.subr.mxu0 0.0
    %1952 = vmatpush1.msra.mxu0 0.0
    %1953 = vmatprep.subr.mxu0 0.0
    %1954 = vmatpush1.msra.mxu0 0.0
    %1955 = vmatprep.subr.mxu0 0.0
    %1956 = vmatpush1.msra.mxu0 0.0
    %1957 = vmatprep.subr.mxu0 0.0
    %1958 = vmatpush1.msra.mxu0 0.0
    %1959 = vmatprep.subr.mxu0 0.0
    %1960 = vmatpush1.msra.mxu0 %v75
    %1961 = vmatprep.subr.mxu0 0.0
    %1962 = vmatpush1.msra.mxu0 %v74
    %1963 = vmatprep.subr.mxu0 0.0
    %1964 = vmatpush1.msra.mxu0 %v73
    %1965 = vmatprep.subr.mxu0 0.0
    %1966 = vmatpush1.msra.mxu0 %v72
    %1967 = vmatprep.subr.mxu0 0.0
    %1968 = vmatpush1.msra.mxu0 %v71
    %1969 = vmatprep.subr.mxu0 0.0
    %1970 = vmatpush1.msra.mxu0 %v70
    %1971 = vmatprep.subr.mxu0 0.0
    %1972 = vmatpush1.msra.mxu0 %v69
    %1973 = vmatprep.subr.mxu0 0.0
    %1974 = vmatpush1.msra.mxu0 %v68
    %1975 = vmatprep.subr.mxu0 0.0
    %1976 = vmatpush2.msra.mxu0 0.0
    %1977 = vmatprep.subr.mxu0 0.0
    %1978 = vmatpush2.msra.mxu0 0.0
    %1979 = vmatprep.subr.mxu0 0.0
    %1980 = vmatpush2.msra.mxu0 0.0
    %1981 = vmatprep.subr.mxu0 0.0
    %1982 = vmatpush2.msra.mxu0 0.0
    %1983 = vmatprep.subr.mxu0 0.0
    %1984 = vmatpush2.msra.mxu0 0.0
    %1985 = vmatprep.subr.mxu0 0.0
    %1986 = vmatpush2.msra.mxu0 0.0
    %1987 = vmatprep.subr.mxu0 0.0
    %1988 = vmatpush2.msra.mxu0 0.0
    %1989 = vmatprep.subr.mxu0 0.0
    %1990 = vmatpush2.msra.mxu0 0.0
    %1991 = vmatprep.subr.mxu0 0.0
    %1992 = vmatpush2.msra.mxu0 0.0
    %1993 = vmatprep.subr.mxu0 0.0
    %1994 = vmatpush2.msra.mxu0 0.0
    %1995 = vmatprep.subr.mxu0 0.0
    %1996 = vmatpush2.msra.mxu0 0.0
    %1997 = vmatprep.subr.mxu0 0.0
    %1998 = vmatpush2.msra.mxu0 0.0
    %1999 = vmatprep.subr.mxu0 0.0
    %2000 = vmatpush2.msra.mxu0 0.0
    %2001 = vmatprep.subr.mxu0 0.0
    %2002 = vmatpush2.msra.mxu0 0.0
    %2003 = vmatprep.subr.mxu0 0.0
    %2004 = vmatpush2.msra.mxu0 0.0
    %2005 = vmatprep.subr.mxu0 0.0
    %2006 = vmatpush2.msra.mxu0 0.0
    %2007 = vmatprep.mubr.f32.mxu0 0.0
    %2008 = vmatmul.mubr.f32.gmra.mxu0 %v1941
    %v2009 = vpop.f32.mrf.mxu0
    %v2010 = vadd.f32 %v689, %v2009
    %v2011 = vpop.f32.mrf.mxu0
    %2012 = vdwg.mxu0
    %s2013 = scalar_lea.vmem %s9, 6
    %2014 = vst.msk [vmem:[%s2013] sm:$0x3] %vm77, %v2010
    %s2015 = sld [smem:[#allocation2 + $0x3]]
    %s2016 = scalar_lea.vmem %s1, 6
    %v2017 = vld [vmem:[%s2016] sm:$0x3]
    %v2018 = vstv %s2015
    %v2019 = vmul.f32 %v2018, %v2017
    %s2020 = ssub.f32 1.0, %s2015
    %v2021 = vstv %s2020
    %v2022 = vmul.f32 %v2021, %v2010
    %v2023 = vadd.f32 %v2019, %v2022
    %v2024 = vsel %vm80, %v1934, 0
    %2026 = vmatprep.subr.mxu0 0.0
    %2027 = vmatpush1.msra.mxu0 0.0
    %2028 = vmatprep.subr.mxu0 0.0
    %2029 = vmatpush1.msra.mxu0 0.0
    %2030 = vmatprep.subr.mxu0 0.0
    %2031 = vmatpush1.msra.mxu0 0.0
    %2032 = vmatprep.subr.mxu0 0.0
    %2033 = vmatpush1.msra.mxu0 0.0
    %2034 = vmatprep.subr.mxu0 0.0
    %2035 = vmatpush1.msra.mxu0 0.0
    %2036 = vmatprep.subr.mxu0 0.0
    %2037 = vmatpush1.msra.mxu0 0.0
    %2038 = vmatprep.subr.mxu0 0.0
    %2039 = vmatpush1.msra.mxu0 0.0
    %2040 = vmatprep.subr.mxu0 0.0
    %2041 = vmatpush1.msra.mxu0 0.0
    %2042 = vmatprep.subr.mxu0 0.0
    %2043 = vmatpush1.msra.mxu0 0.0
    %2044 = vmatprep.subr.mxu0 0.0
    %2045 = vmatpush1.msra.mxu0 0.0
    %2046 = vmatprep.subr.mxu0 0.0
    %2047 = vmatpush1.msra.mxu0 0.0
    %2048 = vmatprep.subr.mxu0 0.0
    %2049 = vmatpush1.msra.mxu0 0.0
    %2050 = vmatprep.subr.mxu0 0.0
    %2051 = vmatpush1.msra.mxu0 %v57
    %2052 = vmatprep.subr.mxu0 0.0
    %2053 = vmatpush1.msra.mxu0 %v56
    %2054 = vmatprep.subr.mxu0 0.0
    %2055 = vmatpush1.msra.mxu0 %v55
    %2056 = vmatprep.subr.mxu0 0.0
    %2057 = vmatpush1.msra.mxu0 %v54
    %2058 = vmatprep.subr.mxu0 0.0
    %2059 = vmatpush2.msra.mxu0 0.0
    %2060 = vmatprep.subr.mxu0 0.0
    %2061 = vmatpush2.msra.mxu0 0.0
    %2062 = vmatprep.subr.mxu0 0.0
    %2063 = vmatpush2.msra.mxu0 0.0
    %2064 = vmatprep.subr.mxu0 0.0
    %2065 = vmatpush2.msra.mxu0 0.0
    %2066 = vmatprep.subr.mxu0 0.0
    %2067 = vmatpush2.msra.mxu0 0.0
    %2068 = vmatprep.subr.mxu0 0.0
    %2069 = vmatpush2.msra.mxu0 0.0
    %2070 = vmatprep.subr.mxu0 0.0
    %2071 = vmatpush2.msra.mxu0 0.0
    %2072 = vmatprep.subr.mxu0 0.0
    %2073 = vmatpush2.msra.mxu0 0.0
    %2074 = vmatprep.subr.mxu0 0.0
    %2075 = vmatpush2.msra.mxu0 0.0
    %2076 = vmatprep.subr.mxu0 0.0
    %2077 = vmatpush2.msra.mxu0 0.0
    %2078 = vmatprep.subr.mxu0 0.0
    %2079 = vmatpush2.msra.mxu0 0.0
    %2080 = vmatprep.subr.mxu0 0.0
    %2081 = vmatpush2.msra.mxu0 0.0
    %2082 = vmatprep.subr.mxu0 0.0
    %2083 = vmatpush2.msra.mxu0 0.0
    %2084 = vmatprep.subr.mxu0 0.0
    %2085 = vmatpush2.msra.mxu0 0.0
    %2086 = vmatprep.subr.mxu0 0.0
    %2087 = vmatpush2.msra.mxu0 0.0
    %2088 = vmatprep.subr.mxu0 0.0
    %2089 = vmatpush2.msra.mxu0 0.0
    %2090 = vmatprep.mubr.f32.mxu0 0.0
    %2091 = vmatmul.mubr.f32.gmra.mxu0 %v2024
    %v2092 = vpop.f32.mrf.mxu0
    %v2093 = vadd.f32 0.0, %v2092
    %v2094 = vpop.f32.mrf.mxu0
    %2095 = vdwg.mxu0
    %v2098 = vunpack.c.l.s4 1966171168
    %v2099 = vunpack.c.0.s8 %v2098
    %v2100 = vlaneseq
    %v2101 = vshrl.u32 %v2100, 7
    %v2102 = vsub.s32 %v2099, %v2101
    %v2103 = vrot.slane %v2093, %v2102
    %v2104 = vcombine.high %v2103, %v2103
    %v2106 = vunpack.c.l.s4 1966171168
    %v2107 = vunpack.c.0.s8 %v2106
    %v2108 = vlaneseq
    %v2109 = vshrl.u32 %v2108, 7
    %v2110 = vsub.s32 %v2107, %v2109
    %v2111 = vrot.slane %v2103, %v2110
    %v2113 = vunpack.c.l.s4 1966171168
    %v2114 = vunpack.c.0.s8 %v2113
    %v2115 = vlaneseq
    %v2116 = vshrl.u32 %v2115, 7
    %v2117 = vsub.s32 %v2114, %v2116
    %v2118 = vrot.slane %v2104, %v2117
    %v2119 = vlaneseq
    %v2120 = vshrl.u32 %v2119, 7
    %v2121 = vsub.s32 0, %v2120
    %v2122 = vrot.slane %v2111, %v2121
    %v2123 = vlaneseq
    %v2124 = vshrl.u32 %v2123, 7
    %v2125 = vsub.s32 0, %v2124
    %v2126 = vrot.slane %v2118, %v2125
    %v2129 = vmul.f32 %v45, %v2122
    %v2130 = vmul.f32 %v46, %v2122
    %v2131 = vmul.f32 %v47, %v2122
    %v2132 = vmul.f32 %v48, %v2122
    %v2133 = vmul.f32 %v49, %v2126
    %v2134 = vmul.f32 %v50, %v2126
    %v2135 = vmul.f32 %v51, %v2126
    %v2136 = vmul.f32 %v52, %v2126
    %v2137 = vsel %vm80, %v2129, 0.0
    %2138 = vadd.xlane.f32.xlu0 %v2137
    %v2139 = vpop.xlane.xlu0 %2138
    %v2140 = vsel %vm80, %v2130, 0.0
    %2141 = vadd.xlane.f32.xlu0 %v2140
    %v2142 = vpop.xlane.xlu0 %2141
    %v2143 = vsel %vm80, %v2131, 0.0
    %2144 = vadd.xlane.f32.xlu0 %v2143
    %v2145 = vpop.xlane.xlu0 %2144
    %v2146 = vsel %vm80, %v2132, 0.0
    %2147 = vadd.xlane.f32.xlu0 %v2146
    %v2148 = vpop.xlane.xlu0 %2147
    %v2149 = vsel %vm80, %v2133, 0.0
    %2150 = vadd.xlane.f32.xlu0 %v2149
    %v2151 = vpop.xlane.xlu0 %2150
    %v2152 = vsel %vm80, %v2134, 0.0
    %2153 = vadd.xlane.f32.xlu0 %v2152
    %v2154 = vpop.xlane.xlu0 %2153
    %v2155 = vsel %vm80, %v2135, 0.0
    %2156 = vadd.xlane.f32.xlu0 %v2155
    %v2157 = vpop.xlane.xlu0 %2156
    %v2158 = vsel %vm80, %v2136, 0.0
    %2159 = vadd.xlane.f32.xlu0 %v2158
    %v2160 = vpop.xlane.xlu0 %2159
    %v2161 = vadd.f32 %v2139, %v226
    %v2162 = vadd.f32 %v2142, %v230
    %v2163 = vadd.f32 %v2145, %v234
    %v2164 = vadd.f32 %v2148, %v238
    %v2165 = vadd.f32 %v2151, %v245
    %v2166 = vadd.f32 %v2154, %v249
    %v2167 = vadd.f32 %v2157, %v253
    %v2168 = vadd.f32 %v2160, %v257
    %2177 = vset.pattern.permute.xlu0 0
    %2178 = vperm.xlu0 %2177, %v2161
    %v2179 = vpop.permute.xlu0 %2178
    %2180 = vset.pattern.permute.xlu0 0
    %2181 = vperm.xlu0 %2180, %v2162
    %v2182 = vpop.permute.xlu0 %2181
    %2183 = vset.pattern.permute.xlu0 0
    %2184 = vperm.xlu0 %2183, %v2163
    %v2185 = vpop.permute.xlu0 %2184
    %2186 = vset.pattern.permute.xlu0 0
    %2187 = vperm.xlu0 %2186, %v2164
    %v2188 = vpop.permute.xlu0 %2187
    %2189 = vset.pattern.permute.xlu0 0
    %2190 = vperm.xlu0 %2189, %v2165
    %v2191 = vpop.permute.xlu0 %2190
    %2192 = vset.pattern.permute.xlu0 0
    %2193 = vperm.xlu0 %2192, %v2166
    %v2194 = vpop.permute.xlu0 %2193
    %2195 = vset.pattern.permute.xlu0 0
    %2196 = vperm.xlu0 %2195, %v2167
    %v2197 = vpop.permute.xlu0 %2196
    %2198 = vset.pattern.permute.xlu0 0
    %2199 = vperm.xlu0 %2198, %v2168
    %v2200 = vpop.permute.xlu0 %2199
    %v2201 = vlaneseq
    %v2202 = vshrl.u32 %v2201, 7
    %v2203 = vsub.s32 %v307, %v2202
    %v2204 = vrot.slane %v2179, %v2203
    %v2205 = vlaneseq
    %v2206 = vshrl.u32 %v2205, 7
    %v2207 = vsub.s32 %v312, %v2206
    %v2208 = vrot.slane %v2182, %v2207
    %v2209 = vsel %vm317, %v2208, %v2204
    %v2210 = vlaneseq
    %v2211 = vshrl.u32 %v2210, 7
    %v2212 = vsub.s32 %v319, %v2211
    %v2213 = vrot.slane %v2185, %v2212
    %v2214 = vsel %vm324, %v2213, %v2209
    %v2215 = vlaneseq
    %v2216 = vshrl.u32 %v2215, 7
    %v2217 = vsub.s32 %v326, %v2216
    %v2218 = vrot.slane %v2188, %v2217
    %v2219 = vsel %vm331, %v2218, %v2214
    %v2220 = vlaneseq
    %v2221 = vshrl.u32 %v2220, 7
    %v2222 = vsub.s32 %v307, %v2221
    %v2223 = vrot.slane %v2191, %v2222
    %v2224 = vlaneseq
    %v2225 = vshrl.u32 %v2224, 7
    %v2226 = vsub.s32 %v312, %v2225
    %v2227 = vrot.slane %v2194, %v2226
    %v2228 = vsel %vm317, %v2227, %v2223
    %v2229 = vlaneseq
    %v2230 = vshrl.u32 %v2229, 7
    %v2231 = vsub.s32 %v319, %v2230
    %v2232 = vrot.slane %v2197, %v2231
    %v2233 = vsel %vm324, %v2232, %v2228
    %v2234 = vlaneseq
    %v2235 = vshrl.u32 %v2234, 7
    %v2236 = vsub.s32 %v326, %v2235
    %v2237 = vrot.slane %v2200, %v2236
    %v2238 = vsel %vm331, %v2237, %v2233
    %v2239 = vsel %vm352, %v2238, %v2219
    %v2241 = vsel %vm355, %v2239, -inf
    %2242 = vmax.xlane.f32.xlu0 %v2241
    %v2243 = vpop.xlane.xlu0 %2242
    %v2245 = vlaneseq
    %v2246 = vshrl.u32 %v2245, 7
    %v2247 = vsub.s32 0, %v2246
    %v2248 = vrot.slane %v2243, %v2247
    %v2249 = vlaneseq
    %v2250 = vshrl.u32 %v2249, 7
    %v2251 = vsub.s32 1, %v2250
    %v2252 = vrot.slane %v2243, %v2251
    %v2255 = vsub.f32 %v2161, %v2248
    %v2256 = vsub.f32 %v2162, %v2248
    %v2257 = vsub.f32 %v2163, %v2248
    %v2258 = vsub.f32 %v2164, %v2248
    %v2259 = vsub.f32 %v2165, %v2252
    %v2260 = vsub.f32 %v2166, %v2252
    %v2261 = vsub.f32 %v2167, %v2252
    %v2262 = vsub.f32 %v2168, %v2252
    %v2263 = vmul.f32 %v2255, 1.442695
    %v2264 = vpow.pop %v2263
    %v2265 = vmul.f32 %v2256, 1.442695
    %v2266 = vpow.pop %v2265
    %v2267 = vmul.f32 %v2257, 1.442695
    %v2268 = vpow.pop %v2267
    %v2269 = vmul.f32 %v2258, 1.442695
    %v2270 = vpow.pop %v2269
    %v2271 = vmul.f32 %v2259, 1.442695
    %v2272 = vpow.pop %v2271
    %v2273 = vmul.f32 %v2260, 1.442695
    %v2274 = vpow.pop %v2273
    %v2275 = vmul.f32 %v2261, 1.442695
    %v2276 = vpow.pop %v2275
    %v2277 = vmul.f32 %v2262, 1.442695
    %v2278 = vpow.pop %v2277
    %2287 = vset.pattern.permute.xlu0 0
    %2288 = vperm.xlu0 %2287, %v2264
    %v2289 = vpop.permute.xlu0 %2288
    %2290 = vset.pattern.permute.xlu0 0
    %2291 = vperm.xlu0 %2290, %v2266
    %v2292 = vpop.permute.xlu0 %2291
    %2293 = vset.pattern.permute.xlu0 0
    %2294 = vperm.xlu0 %2293, %v2268
    %v2295 = vpop.permute.xlu0 %2294
    %2296 = vset.pattern.permute.xlu0 0
    %2297 = vperm.xlu0 %2296, %v2270
    %v2298 = vpop.permute.xlu0 %2297
    %2299 = vset.pattern.permute.xlu0 0
    %2300 = vperm.xlu0 %2299, %v2272
    %v2301 = vpop.permute.xlu0 %2300
    %2302 = vset.pattern.permute.xlu0 0
    %2303 = vperm.xlu0 %2302, %v2274
    %v2304 = vpop.permute.xlu0 %2303
    %2305 = vset.pattern.permute.xlu0 0
    %2306 = vperm.xlu0 %2305, %v2276
    %v2307 = vpop.permute.xlu0 %2306
    %2308 = vset.pattern.permute.xlu0 0
    %2309 = vperm.xlu0 %2308, %v2278
    %v2310 = vpop.permute.xlu0 %2309
    %v2311 = vlaneseq
    %v2312 = vshrl.u32 %v2311, 7
    %v2313 = vsub.s32 %v307, %v2312
    %v2314 = vrot.slane %v2289, %v2313
    %v2315 = vlaneseq
    %v2316 = vshrl.u32 %v2315, 7
    %v2317 = vsub.s32 %v312, %v2316
    %v2318 = vrot.slane %v2292, %v2317
    %v2319 = vsel %vm317, %v2318, %v2314
    %v2320 = vlaneseq
    %v2321 = vshrl.u32 %v2320, 7
    %v2322 = vsub.s32 %v319, %v2321
    %v2323 = vrot.slane %v2295, %v2322
    %v2324 = vsel %vm324, %v2323, %v2319
    %v2325 = vlaneseq
    %v2326 = vshrl.u32 %v2325, 7
    %v2327 = vsub.s32 %v326, %v2326
    %v2328 = vrot.slane %v2298, %v2327
    %v2329 = vsel %vm331, %v2328, %v2324
    %v2330 = vlaneseq
    %v2331 = vshrl.u32 %v2330, 7
    %v2332 = vsub.s32 %v307, %v2331
    %v2333 = vrot.slane %v2301, %v2332
    %v2334 = vlaneseq
    %v2335 = vshrl.u32 %v2334, 7
    %v2336 = vsub.s32 %v312, %v2335
    %v2337 = vrot.slane %v2304, %v2336
    %v2338 = vsel %vm317, %v2337, %v2333
    %v2339 = vlaneseq
    %v2340 = vshrl.u32 %v2339, 7
    %v2341 = vsub.s32 %v319, %v2340
    %v2342 = vrot.slane %v2307, %v2341
    %v2343 = vsel %vm324, %v2342, %v2338
    %v2344 = vlaneseq
    %v2345 = vshrl.u32 %v2344, 7
    %v2346 = vsub.s32 %v326, %v2345
    %v2347 = vrot.slane %v2310, %v2346
    %v2348 = vsel %vm331, %v2347, %v2343
    %v2349 = vsel %vm352, %v2348, %v2329
    %v2351 = vsel %vm355, %v2349, 0.0
    %2352 = vadd.xlane.f32.xlu0 %v2351
    %v2353 = vpop.xlane.xlu0 %2352
    %v2354 = vrcp.pop %v2353
    %v2356 = vlaneseq
    %v2357 = vshrl.u32 %v2356, 7
    %v2358 = vsub.s32 0, %v2357
    %v2359 = vrot.slane %v2354, %v2358
    %v2360 = vlaneseq
    %v2361 = vshrl.u32 %v2360, 7
    %v2362 = vsub.s32 1, %v2361
    %v2363 = vrot.slane %v2354, %v2362
    %v2366 = vmul.f32 %v2264, %v2359
    %v2367 = vmul.f32 %v2266, %v2359
    %v2368 = vmul.f32 %v2268, %v2359
    %v2369 = vmul.f32 %v2270, %v2359
    %v2370 = vmul.f32 %v2272, %v2363
    %v2371 = vmul.f32 %v2274, %v2363
    %v2372 = vmul.f32 %v2276, %v2363
    %v2373 = vmul.f32 %v2278, %v2363
    %2375 = vset.pattern.permute.xlu0 0
    %2376 = vperm.xlu0 %2375, %v2366
    %v2377 = vpop.permute.xlu0 %2376
    %2380 = vset.pattern.permute.xlu0 0
    %2381 = vperm.xlu0 %2380, %v2367
    %v2382 = vpop.permute.xlu0 %2381
    %2385 = vset.pattern.permute.xlu0 0
    %2386 = vperm.xlu0 %2385, %v2368
    %v2387 = vpop.permute.xlu0 %2386
    %2390 = vset.pattern.permute.xlu0 0
    %2391 = vperm.xlu0 %2390, %v2369
    %v2392 = vpop.permute.xlu0 %2391
    %2395 = vset.pattern.permute.xlu0 0
    %2396 = vperm.xlu0 %2395, %v2370
    %v2397 = vpop.permute.xlu0 %2396
    %2400 = vset.pattern.permute.xlu0 0
    %2401 = vperm.xlu0 %2400, %v2371
    %v2402 = vpop.permute.xlu0 %2401
    %2405 = vset.pattern.permute.xlu0 0
    %2406 = vperm.xlu0 %2405, %v2372
    %v2407 = vpop.permute.xlu0 %2406
    %2410 = vset.pattern.permute.xlu0 0
    %2411 = vperm.xlu0 %2410, %v2373
    %v2412 = vpop.permute.xlu0 %2411
    %v2414 = vmul.f32 %v2377, %v45
    %v2415 = vmul.f32 %v2382, %v46
    %v2416 = vmul.f32 %v2387, %v47
    %v2417 = vmul.f32 %v2392, %v48
    %v2418 = vmul.f32 %v2397, %v49
    %v2419 = vmul.f32 %v2402, %v50
    %v2420 = vmul.f32 %v2407, %v51
    %v2421 = vmul.f32 %v2412, %v52
    %v2422 = vsel %vm80, %v2414, 0.0
    %v2423 = vsel %vm80, %v2415, 0.0
    %v2424 = vadd.f32 %v2422, %v2423
    %v2425 = vsel %vm80, %v2416, 0.0
    %v2426 = vadd.f32 %v2424, %v2425
    %v2427 = vsel %vm80, %v2417, 0.0
    %v2428 = vadd.f32 %v2426, %v2427
    %v2429 = vrot.slane %v2428, 4
    %v2430 = vadd.f32 %v2428, %v2429
    %v2431 = vrot.slane %v2430, 2
    %v2432 = vadd.f32 %v2430, %v2431
    %v2433 = vrot.slane %v2432, 1
    %v2434 = vadd.f32 %v2432, %v2433
    %v2435 = vsel %vm80, %v2418, 0.0
    %v2436 = vsel %vm80, %v2419, 0.0
    %v2437 = vadd.f32 %v2435, %v2436
    %v2438 = vsel %vm80, %v2420, 0.0
    %v2439 = vadd.f32 %v2437, %v2438
    %v2440 = vsel %vm80, %v2421, 0.0
    %v2441 = vadd.f32 %v2439, %v2440
    %v2442 = vrot.slane %v2441, 4
    %v2443 = vadd.f32 %v2441, %v2442
    %v2444 = vrot.slane %v2443, 2
    %v2445 = vadd.f32 %v2443, %v2444
    %v2446 = vrot.slane %v2445, 1
    %v2447 = vadd.f32 %v2445, %v2446
    %v2450 = vsel %vm352, %v2447, %v2434
    %2451 = vrot.lane.b32.xlu0 %v2450, 8
    %v2452 = vpop.permute.xlu0 %2451
    %2454 = vrot.lane.b32.xlu0 %v1931, 72
    %v2455 = vpop.permute.xlu0 %2454
    %v2457 = vsel %vm569, %v2023, %v2452
    %v2458 = vsel %vm571, %v2457, %v2455
    %v2460 = vsel %vm579, %v2458, 0
    %2462 = vmatprep.subr.mxu0 0.0
    %2463 = vmatpush1.msra.mxu0 0.0
    %2464 = vmatprep.subr.mxu0 0.0
    %2465 = vmatpush1.msra.mxu0 0.0
    %2466 = vmatprep.subr.mxu0 0.0
    %2467 = vmatpush1.msra.mxu0 0.0
    %2468 = vmatprep.subr.mxu0 0.0
    %2469 = vmatpush1.msra.mxu0 0.0
    %2470 = vmatprep.subr.mxu0 0.0
    %2471 = vmatpush1.msra.mxu0 0.0
    %2472 = vmatprep.subr.mxu0 0.0
    %2473 = vmatpush1.msra.mxu0 0.0
    %2474 = vmatprep.subr.mxu0 0.0
    %2475 = vmatpush1.msra.mxu0 0.0
    %2476 = vmatprep.subr.mxu0 0.0
    %2477 = vmatpush1.msra.mxu0 %v66
    %2478 = vmatprep.subr.mxu0 0.0
    %2479 = vmatpush1.msra.mxu0 %v65
    %2480 = vmatprep.subr.mxu0 0.0
    %2481 = vmatpush1.msra.mxu0 %v64
    %2482 = vmatprep.subr.mxu0 0.0
    %2483 = vmatpush1.msra.mxu0 %v63
    %2484 = vmatprep.subr.mxu0 0.0
    %2485 = vmatpush1.msra.mxu0 %v62
    %2486 = vmatprep.subr.mxu0 0.0
    %2487 = vmatpush1.msra.mxu0 %v61
    %2488 = vmatprep.subr.mxu0 0.0
    %2489 = vmatpush1.msra.mxu0 %v60
    %2490 = vmatprep.subr.mxu0 0.0
    %2491 = vmatpush1.msra.mxu0 %v59
    %2492 = vmatprep.subr.mxu0 0.0
    %2493 = vmatpush1.msra.mxu0 %v58
    %2494 = vmatprep.subr.mxu0 0.0
    %2495 = vmatpush2.msra.mxu0 0.0
    %2496 = vmatprep.subr.mxu0 0.0
    %2497 = vmatpush2.msra.mxu0 0.0
    %2498 = vmatprep.subr.mxu0 0.0
    %2499 = vmatpush2.msra.mxu0 0.0
    %2500 = vmatprep.subr.mxu0 0.0
    %2501 = vmatpush2.msra.mxu0 0.0
    %2502 = vmatprep.subr.mxu0 0.0
    %2503 = vmatpush2.msra.mxu0 0.0
    %2504 = vmatprep.subr.mxu0 0.0
    %2505 = vmatpush2.msra.mxu0 0.0
    %2506 = vmatprep.subr.mxu0 0.0
    %2507 = vmatpush2.msra.mxu0 0.0
    %2508 = vmatprep.subr.mxu0 0.0
    %2509 = vmatpush2.msra.mxu0 0.0
    %2510 = vmatprep.subr.mxu0 0.0
    %2511 = vmatpush2.msra.mxu0 0.0
    %2512 = vmatprep.subr.mxu0 0.0
    %2513 = vmatpush2.msra.mxu0 0.0
    %2514 = vmatprep.subr.mxu0 0.0
    %2515 = vmatpush2.msra.mxu0 0.0
    %2516 = vmatprep.subr.mxu0 0.0
    %2517 = vmatpush2.msra.mxu0 0.0
    %2518 = vmatprep.subr.mxu0 0.0
    %2519 = vmatpush2.msra.mxu0 0.0
    %2520 = vmatprep.subr.mxu0 0.0
    %2521 = vmatpush2.msra.mxu0 0.0
    %2522 = vmatprep.subr.mxu0 0.0
    %2523 = vmatpush2.msra.mxu0 0.0
    %2524 = vmatprep.subr.mxu0 0.0
    %2525 = vmatpush2.msra.mxu0 0.0
    %2526 = vmatprep.mubr.f32.mxu0 0.0
    %2527 = vmatmul.mubr.f32.gmra.mxu0 %v2460
    %v2528 = vpop.f32.mrf.mxu0
    %v2529 = vadd.f32 %v577, %v2528
    %v2530 = vpop.f32.mrf.mxu0
    %2531 = vdwg.mxu0
    %v2532 = vxor.u32 %v2529, 2147483648
    %v2533 = vmul.f32 %v2532, 1.442695
    %v2534 = vpow.pop %v2533
    %v2535 = vadd.f32 %v2534, 1.0
    %v2536 = vrcp.pop %v2535
    %v2537 = vmul.f32 1.0, %v2536
    %v2538 = vtanh.pop %v2529
    %v2539 = vmul.f32 %v2537, %v1925
    %2541 = vrot.lane.b32.xlu0 %v2538, 64
    %v2542 = vpop.permute.xlu0 %2541
    %v2544 = vmul.f32 %v2537, %v2542
    %2546 = vrot.lane.b32.xlu0 %v2544, 32
    %v2547 = vpop.permute.xlu0 %2546
    %v2549 = vadd.f32 %v2539, %v2547
    %v2550 = vtanh.pop %v2549
    %2552 = vrot.lane.b32.xlu0 %v2550, 64
    %v2553 = vpop.permute.xlu0 %2552
    %v2555 = vmul.f32 %v2537, %v2553
    %2557 = vrot.lane.b32.xlu0 %v2555, 32
    %v2558 = vpop.permute.xlu0 %2557
    %2560 = vrot.lane.b32.xlu0 %v2450, 32
    %v2561 = vpop.permute.xlu0 %2560
    %v2563 = vsel %vm80, %v2558, %v2561
    %v2565 = vsel %vm691, %v2563, 0
    %2567 = vmatprep.subr.mxu0 0.0
    %2568 = vmatpush1.msra.mxu0 0.0
    %2569 = vmatprep.subr.mxu0 0.0
    %2570 = vmatpush1.msra.mxu0 0.0
    %2571 = vmatprep.subr.mxu0 0.0
    %2572 = vmatpush1.msra.mxu0 0.0
    %2573 = vmatprep.subr.mxu0 0.0
    %2574 = vmatpush1.msra.mxu0 0.0
    %2575 = vmatprep.subr.mxu0 0.0
    %2576 = vmatpush1.msra.mxu0 0.0
    %2577 = vmatprep.subr.mxu0 0.0
    %2578 = vmatpush1.msra.mxu0 0.0
    %2579 = vmatprep.subr.mxu0 0.0
    %2580 = vmatpush1.msra.mxu0 0.0
    %2581 = vmatprep.subr.mxu0 0.0
    %2582 = vmatpush1.msra.mxu0 0.0
    %2583 = vmatprep.subr.mxu0 0.0
    %2584 = vmatpush1.msra.mxu0 %v75
    %2585 = vmatprep.subr.mxu0 0.0
    %2586 = vmatpush1.msra.mxu0 %v74
    %2587 = vmatprep.subr.mxu0 0.0
    %2588 = vmatpush1.msra.mxu0 %v73
    %2589 = vmatprep.subr.mxu0 0.0
    %2590 = vmatpush1.msra.mxu0 %v72
    %2591 = vmatprep.subr.mxu0 0.0
    %2592 = vmatpush1.msra.mxu0 %v71
    %2593 = vmatprep.subr.mxu0 0.0
    %2594 = vmatpush1.msra.mxu0 %v70
    %2595 = vmatprep.subr.mxu0 0.0
    %2596 = vmatpush1.msra.mxu0 %v69
    %2597 = vmatprep.subr.mxu0 0.0
    %2598 = vmatpush1.msra.mxu0 %v68
    %2599 = vmatprep.subr.mxu0 0.0
    %2600 = vmatpush2.msra.mxu0 0.0
    %2601 = vmatprep.subr.mxu0 0.0
    %2602 = vmatpush2.msra.mxu0 0.0
    %2603 = vmatprep.subr.mxu0 0.0
    %2604 = vmatpush2.msra.mxu0 0.0
    %2605 = vmatprep.subr.mxu0 0.0
    %2606 = vmatpush2.msra.mxu0 0.0
    %2607 = vmatprep.subr.mxu0 0.0
    %2608 = vmatpush2.msra.mxu0 0.0
    %2609 = vmatprep.subr.mxu0 0.0
    %2610 = vmatpush2.msra.mxu0 0.0
    %2611 = vmatprep.subr.mxu0 0.0
    %2612 = vmatpush2.msra.mxu0 0.0
    %2613 = vmatprep.subr.mxu0 0.0
    %2614 = vmatpush2.msra.mxu0 0.0
    %2615 = vmatprep.subr.mxu0 0.0
    %2616 = vmatpush2.msra.mxu0 0.0
    %2617 = vmatprep.subr.mxu0 0.0
    %2618 = vmatpush2.msra.mxu0 0.0
    %2619 = vmatprep.subr.mxu0 0.0
    %2620 = vmatpush2.msra.mxu0 0.0
    %2621 = vmatprep.subr.mxu0 0.0
    %2622 = vmatpush2.msra.mxu0 0.0
    %2623 = vmatprep.subr.mxu0 0.0
    %2624 = vmatpush2.msra.mxu0 0.0
    %2625 = vmatprep.subr.mxu0 0.0
    %2626 = vmatpush2.msra.mxu0 0.0
    %2627 = vmatprep.subr.mxu0 0.0
    %2628 = vmatpush2.msra.mxu0 0.0
    %2629 = vmatprep.subr.mxu0 0.0
    %2630 = vmatpush2.msra.mxu0 0.0
    %2631 = vmatprep.mubr.f32.mxu0 0.0
    %2632 = vmatmul.mubr.f32.gmra.mxu0 %v2565
    %v2633 = vpop.f32.mrf.mxu0
    %v2634 = vadd.f32 %v689, %v2633
    %v2635 = vpop.f32.mrf.mxu0
    %2636 = vdwg.mxu0
    %s2637 = scalar_lea.vmem %s9, 8
    %2638 = vst.msk [vmem:[%s2637] sm:$0x3] %vm77, %v2634
    %s2639 = sld [smem:[#allocation2 + $0x4]]
    %s2640 = scalar_lea.vmem %s1, 8
    %v2641 = vld [vmem:[%s2640] sm:$0x3]
    %v2642 = vstv %s2639
    %v2643 = vmul.f32 %v2642, %v2641
    %s2644 = ssub.f32 1.0, %s2639
    %v2645 = vstv %s2644
    %v2646 = vmul.f32 %v2645, %v2634
    %v2647 = vadd.f32 %v2643, %v2646
    %v2648 = vsel %vm80, %v2558, 0
    %2650 = vmatprep.subr.mxu0 0.0
    %2651 = vmatpush1.msra.mxu0 0.0
    %2652 = vmatprep.subr.mxu0 0.0
    %2653 = vmatpush1.msra.mxu0 0.0
    %2654 = vmatprep.subr.mxu0 0.0
    %2655 = vmatpush1.msra.mxu0 0.0
    %2656 = vmatprep.subr.mxu0 0.0
    %2657 = vmatpush1.msra.mxu0 0.0
    %2658 = vmatprep.subr.mxu0 0.0
    %2659 = vmatpush1.msra.mxu0 0.0
    %2660 = vmatprep.subr.mxu0 0.0
    %2661 = vmatpush1.msra.mxu0 0.0
    %2662 = vmatprep.subr.mxu0 0.0
    %2663 = vmatpush1.msra.mxu0 0.0
    %2664 = vmatprep.subr.mxu0 0.0
    %2665 = vmatpush1.msra.mxu0 0.0
    %2666 = vmatprep.subr.mxu0 0.0
    %2667 = vmatpush1.msra.mxu0 0.0
    %2668 = vmatprep.subr.mxu0 0.0
    %2669 = vmatpush1.msra.mxu0 0.0
    %2670 = vmatprep.subr.mxu0 0.0
    %2671 = vmatpush1.msra.mxu0 0.0
    %2672 = vmatprep.subr.mxu0 0.0
    %2673 = vmatpush1.msra.mxu0 0.0
    %2674 = vmatprep.subr.mxu0 0.0
    %2675 = vmatpush1.msra.mxu0 %v57
    %2676 = vmatprep.subr.mxu0 0.0
    %2677 = vmatpush1.msra.mxu0 %v56
    %2678 = vmatprep.subr.mxu0 0.0
    %2679 = vmatpush1.msra.mxu0 %v55
    %2680 = vmatprep.subr.mxu0 0.0
    %2681 = vmatpush1.msra.mxu0 %v54
    %2682 = vmatprep.subr.mxu0 0.0
    %2683 = vmatpush2.msra.mxu0 0.0
    %2684 = vmatprep.subr.mxu0 0.0
    %2685 = vmatpush2.msra.mxu0 0.0
    %2686 = vmatprep.subr.mxu0 0.0
    %2687 = vmatpush2.msra.mxu0 0.0
    %2688 = vmatprep.subr.mxu0 0.0
    %2689 = vmatpush2.msra.mxu0 0.0
    %2690 = vmatprep.subr.mxu0 0.0
    %2691 = vmatpush2.msra.mxu0 0.0
    %2692 = vmatprep.subr.mxu0 0.0
    %2693 = vmatpush2.msra.mxu0 0.0
    %2694 = vmatprep.subr.mxu0 0.0
    %2695 = vmatpush2.msra.mxu0 0.0
    %2696 = vmatprep.subr.mxu0 0.0
    %2697 = vmatpush2.msra.mxu0 0.0
    %2698 = vmatprep.subr.mxu0 0.0
    %2699 = vmatpush2.msra.mxu0 0.0
    %2700 = vmatprep.subr.mxu0 0.0
    %2701 = vmatpush2.msra.mxu0 0.0
    %2702 = vmatprep.subr.mxu0 0.0
    %2703 = vmatpush2.msra.mxu0 0.0
    %2704 = vmatprep.subr.mxu0 0.0
    %2705 = vmatpush2.msra.mxu0 0.0
    %2706 = vmatprep.subr.mxu0 0.0
    %2707 = vmatpush2.msra.mxu0 0.0
    %2708 = vmatprep.subr.mxu0 0.0
    %2709 = vmatpush2.msra.mxu0 0.0
    %2710 = vmatprep.subr.mxu0 0.0
    %2711 = vmatpush2.msra.mxu0 0.0
    %2712 = vmatprep.subr.mxu0 0.0
    %2713 = vmatpush2.msra.mxu0 0.0
    %2714 = vmatprep.mubr.f32.mxu0 0.0
    %2715 = vmatmul.mubr.f32.gmra.mxu0 %v2648
    %v2716 = vpop.f32.mrf.mxu0
    %v2717 = vadd.f32 0.0, %v2716
    %v2718 = vpop.f32.mrf.mxu0
    %2719 = vdwg.mxu0
    %v2722 = vunpack.c.l.s4 1966171168
    %v2723 = vunpack.c.0.s8 %v2722
    %v2724 = vlaneseq
    %v2725 = vshrl.u32 %v2724, 7
    %v2726 = vsub.s32 %v2723, %v2725
    %v2727 = vrot.slane %v2717, %v2726
    %v2728 = vcombine.high %v2727, %v2727
    %v2730 = vunpack.c.l.s4 1966171168
    %v2731 = vunpack.c.0.s8 %v2730
    %v2732 = vlaneseq
    %v2733 = vshrl.u32 %v2732, 7
    %v2734 = vsub.s32 %v2731, %v2733
    %v2735 = vrot.slane %v2727, %v2734
    %v2737 = vunpack.c.l.s4 1966171168
    %v2738 = vunpack.c.0.s8 %v2737
    %v2739 = vlaneseq
    %v2740 = vshrl.u32 %v2739, 7
    %v2741 = vsub.s32 %v2738, %v2740
    %v2742 = vrot.slane %v2728, %v2741
    %v2743 = vlaneseq
    %v2744 = vshrl.u32 %v2743, 7
    %v2745 = vsub.s32 0, %v2744
    %v2746 = vrot.slane %v2735, %v2745
    %v2747 = vlaneseq
    %v2748 = vshrl.u32 %v2747, 7
    %v2749 = vsub.s32 0, %v2748
    %v2750 = vrot.slane %v2742, %v2749
    %v2753 = vmul.f32 %v45, %v2746
    %v2754 = vmul.f32 %v46, %v2746
    %v2755 = vmul.f32 %v47, %v2746
    %v2756 = vmul.f32 %v48, %v2746
    %v2757 = vmul.f32 %v49, %v2750
    %v2758 = vmul.f32 %v50, %v2750
    %v2759 = vmul.f32 %v51, %v2750
    %v2760 = vmul.f32 %v52, %v2750
    %v2761 = vsel %vm80, %v2753, 0.0
    %2762 = vadd.xlane.f32.xlu0 %v2761
    %v2763 = vpop.xlane.xlu0 %2762
    %v2764 = vsel %vm80, %v2754, 0.0
    %2765 = vadd.xlane.f32.xlu0 %v2764
    %v2766 = vpop.xlane.xlu0 %2765
    %v2767 = vsel %vm80, %v2755, 0.0
    %2768 = vadd.xlane.f32.xlu0 %v2767
    %v2769 = vpop.xlane.xlu0 %2768
    %v2770 = vsel %vm80, %v2756, 0.0
    %2771 = vadd.xlane.f32.xlu0 %v2770
    %v2772 = vpop.xlane.xlu0 %2771
    %v2773 = vsel %vm80, %v2757, 0.0
    %2774 = vadd.xlane.f32.xlu0 %v2773
    %v2775 = vpop.xlane.xlu0 %2774
    %v2776 = vsel %vm80, %v2758, 0.0
    %2777 = vadd.xlane.f32.xlu0 %v2776
    %v2778 = vpop.xlane.xlu0 %2777
    %v2779 = vsel %vm80, %v2759, 0.0
    %2780 = vadd.xlane.f32.xlu0 %v2779
    %v2781 = vpop.xlane.xlu0 %2780
    %v2782 = vsel %vm80, %v2760, 0.0
    %2783 = vadd.xlane.f32.xlu0 %v2782
    %v2784 = vpop.xlane.xlu0 %2783
    %v2785 = vadd.f32 %v2763, %v226
    %v2786 = vadd.f32 %v2766, %v230
    %v2787 = vadd.f32 %v2769, %v234
    %v2788 = vadd.f32 %v2772, %v238
    %v2789 = vadd.f32 %v2775, %v245
    %v2790 = vadd.f32 %v2778, %v249
    %v2791 = vadd.f32 %v2781, %v253
    %v2792 = vadd.f32 %v2784, %v257
    %2801 = vset.pattern.permute.xlu0 0
    %2802 = vperm.xlu0 %2801, %v2785
    %v2803 = vpop.permute.xlu0 %2802
    %2804 = vset.pattern.permute.xlu0 0
    %2805 = vperm.xlu0 %2804, %v2786
    %v2806 = vpop.permute.xlu0 %2805
    %2807 = vset.pattern.permute.xlu0 0
    %2808 = vperm.xlu0 %2807, %v2787
    %v2809 = vpop.permute.xlu0 %2808
    %2810 = vset.pattern.permute.xlu0 0
    %2811 = vperm.xlu0 %2810, %v2788
    %v2812 = vpop.permute.xlu0 %2811
    %2813 = vset.pattern.permute.xlu0 0
    %2814 = vperm.xlu0 %2813, %v2789
    %v2815 = vpop.permute.xlu0 %2814
    %2816 = vset.pattern.permute.xlu0 0
    %2817 = vperm.xlu0 %2816, %v2790
    %v2818 = vpop.permute.xlu0 %2817
    %2819 = vset.pattern.permute.xlu0 0
    %2820 = vperm.xlu0 %2819, %v2791
    %v2821 = vpop.permute.xlu0 %2820
    %2822 = vset.pattern.permute.xlu0 0
    %2823 = vperm.xlu0 %2822, %v2792
    %v2824 = vpop.permute.xlu0 %2823
    %v2825 = vlaneseq
    %v2826 = vshrl.u32 %v2825, 7
    %v2827 = vsub.s32 %v307, %v2826
    %v2828 = vrot.slane %v2803, %v2827
    %v2829 = vlaneseq
    %v2830 = vshrl.u32 %v2829, 7
    %v2831 = vsub.s32 %v312, %v2830
    %v2832 = vrot.slane %v2806, %v2831
    %v2833 = vsel %vm317, %v2832, %v2828
    %v2834 = vlaneseq
    %v2835 = vshrl.u32 %v2834, 7
    %v2836 = vsub.s32 %v319, %v2835
    %v2837 = vrot.slane %v2809, %v2836
    %v2838 = vsel %vm324, %v2837, %v2833
    %v2839 = vlaneseq
    %v2840 = vshrl.u32 %v2839, 7
    %v2841 = vsub.s32 %v326, %v2840
    %v2842 = vrot.slane %v2812, %v2841
    %v2843 = vsel %vm331, %v2842, %v2838
    %v2844 = vlaneseq
    %v2845 = vshrl.u32 %v2844, 7
    %v2846 = vsub.s32 %v307, %v2845
    %v2847 = vrot.slane %v2815, %v2846
    %v2848 = vlaneseq
    %v2849 = vshrl.u32 %v2848, 7
    %v2850 = vsub.s32 %v312, %v2849
    %v2851 = vrot.slane %v2818, %v2850
    %v2852 = vsel %vm317, %v2851, %v2847
    %v2853 = vlaneseq
    %v2854 = vshrl.u32 %v2853, 7
    %v2855 = vsub.s32 %v319, %v2854
    %v2856 = vrot.slane %v2821, %v2855
    %v2857 = vsel %vm324, %v2856, %v2852
    %v2858 = vlaneseq
    %v2859 = vshrl.u32 %v2858, 7
    %v2860 = vsub.s32 %v326, %v2859
    %v2861 = vrot.slane %v2824, %v2860
    %v2862 = vsel %vm331, %v2861, %v2857
    %v2863 = vsel %vm352, %v2862, %v2843
    %v2865 = vsel %vm355, %v2863, -inf
    %2866 = vmax.xlane.f32.xlu0 %v2865
    %v2867 = vpop.xlane.xlu0 %2866
    %v2869 = vlaneseq
    %v2870 = vshrl.u32 %v2869, 7
    %v2871 = vsub.s32 0, %v2870
    %v2872 = vrot.slane %v2867, %v2871
    %v2873 = vlaneseq
    %v2874 = vshrl.u32 %v2873, 7
    %v2875 = vsub.s32 1, %v2874
    %v2876 = vrot.slane %v2867, %v2875
    %v2879 = vsub.f32 %v2785, %v2872
    %v2880 = vsub.f32 %v2786, %v2872
    %v2881 = vsub.f32 %v2787, %v2872
    %v2882 = vsub.f32 %v2788, %v2872
    %v2883 = vsub.f32 %v2789, %v2876
    %v2884 = vsub.f32 %v2790, %v2876
    %v2885 = vsub.f32 %v2791, %v2876
    %v2886 = vsub.f32 %v2792, %v2876
    %v2887 = vmul.f32 %v2879, 1.442695
    %v2888 = vpow.pop %v2887
    %v2889 = vmul.f32 %v2880, 1.442695
    %v2890 = vpow.pop %v2889
    %v2891 = vmul.f32 %v2881, 1.442695
    %v2892 = vpow.pop %v2891
    %v2893 = vmul.f32 %v2882, 1.442695
    %v2894 = vpow.pop %v2893
    %v2895 = vmul.f32 %v2883, 1.442695
    %v2896 = vpow.pop %v2895
    %v2897 = vmul.f32 %v2884, 1.442695
    %v2898 = vpow.pop %v2897
    %v2899 = vmul.f32 %v2885, 1.442695
    %v2900 = vpow.pop %v2899
    %v2901 = vmul.f32 %v2886, 1.442695
    %v2902 = vpow.pop %v2901
    %2911 = vset.pattern.permute.xlu0 0
    %2912 = vperm.xlu0 %2911, %v2888
    %v2913 = vpop.permute.xlu0 %2912
    %2914 = vset.pattern.permute.xlu0 0
    %2915 = vperm.xlu0 %2914, %v2890
    %v2916 = vpop.permute.xlu0 %2915
    %2917 = vset.pattern.permute.xlu0 0
    %2918 = vperm.xlu0 %2917, %v2892
    %v2919 = vpop.permute.xlu0 %2918
    %2920 = vset.pattern.permute.xlu0 0
    %2921 = vperm.xlu0 %2920, %v2894
    %v2922 = vpop.permute.xlu0 %2921
    %2923 = vset.pattern.permute.xlu0 0
    %2924 = vperm.xlu0 %2923, %v2896
    %v2925 = vpop.permute.xlu0 %2924
    %2926 = vset.pattern.permute.xlu0 0
    %2927 = vperm.xlu0 %2926, %v2898
    %v2928 = vpop.permute.xlu0 %2927
    %2929 = vset.pattern.permute.xlu0 0
    %2930 = vperm.xlu0 %2929, %v2900
    %v2931 = vpop.permute.xlu0 %2930
    %2932 = vset.pattern.permute.xlu0 0
    %2933 = vperm.xlu0 %2932, %v2902
    %v2934 = vpop.permute.xlu0 %2933
    %v2935 = vlaneseq
    %v2936 = vshrl.u32 %v2935, 7
    %v2937 = vsub.s32 %v307, %v2936
    %v2938 = vrot.slane %v2913, %v2937
    %v2939 = vlaneseq
    %v2940 = vshrl.u32 %v2939, 7
    %v2941 = vsub.s32 %v312, %v2940
    %v2942 = vrot.slane %v2916, %v2941
    %v2943 = vsel %vm317, %v2942, %v2938
    %v2944 = vlaneseq
    %v2945 = vshrl.u32 %v2944, 7
    %v2946 = vsub.s32 %v319, %v2945
    %v2947 = vrot.slane %v2919, %v2946
    %v2948 = vsel %vm324, %v2947, %v2943
    %v2949 = vlaneseq
    %v2950 = vshrl.u32 %v2949, 7
    %v2951 = vsub.s32 %v326, %v2950
    %v2952 = vrot.slane %v2922, %v2951
    %v2953 = vsel %vm331, %v2952, %v2948
    %v2954 = vlaneseq
    %v2955 = vshrl.u32 %v2954, 7
    %v2956 = vsub.s32 %v307, %v2955
    %v2957 = vrot.slane %v2925, %v2956
    %v2958 = vlaneseq
    %v2959 = vshrl.u32 %v2958, 7
    %v2960 = vsub.s32 %v312, %v2959
    %v2961 = vrot.slane %v2928, %v2960
    %v2962 = vsel %vm317, %v2961, %v2957
    %v2963 = vlaneseq
    %v2964 = vshrl.u32 %v2963, 7
    %v2965 = vsub.s32 %v319, %v2964
    %v2966 = vrot.slane %v2931, %v2965
    %v2967 = vsel %vm324, %v2966, %v2962
    %v2968 = vlaneseq
    %v2969 = vshrl.u32 %v2968, 7
    %v2970 = vsub.s32 %v326, %v2969
    %v2971 = vrot.slane %v2934, %v2970
    %v2972 = vsel %vm331, %v2971, %v2967
    %v2973 = vsel %vm352, %v2972, %v2953
    %v2975 = vsel %vm355, %v2973, 0.0
    %2976 = vadd.xlane.f32.xlu0 %v2975
    %v2977 = vpop.xlane.xlu0 %2976
    %v2978 = vrcp.pop %v2977
    %v2980 = vlaneseq
    %v2981 = vshrl.u32 %v2980, 7
    %v2982 = vsub.s32 0, %v2981
    %v2983 = vrot.slane %v2978, %v2982
    %v2984 = vlaneseq
    %v2985 = vshrl.u32 %v2984, 7
    %v2986 = vsub.s32 1, %v2985
    %v2987 = vrot.slane %v2978, %v2986
    %v2990 = vmul.f32 %v2888, %v2983
    %v2991 = vmul.f32 %v2890, %v2983
    %v2992 = vmul.f32 %v2892, %v2983
    %v2993 = vmul.f32 %v2894, %v2983
    %v2994 = vmul.f32 %v2896, %v2987
    %v2995 = vmul.f32 %v2898, %v2987
    %v2996 = vmul.f32 %v2900, %v2987
    %v2997 = vmul.f32 %v2902, %v2987
    %2999 = vset.pattern.permute.xlu0 0
    %3000 = vperm.xlu0 %2999, %v2990
    %v3001 = vpop.permute.xlu0 %3000
    %3004 = vset.pattern.permute.xlu0 0
    %3005 = vperm.xlu0 %3004, %v2991
    %v3006 = vpop.permute.xlu0 %3005
    %3009 = vset.pattern.permute.xlu0 0
    %3010 = vperm.xlu0 %3009, %v2992
    %v3011 = vpop.permute.xlu0 %3010
    %3014 = vset.pattern.permute.xlu0 0
    %3015 = vperm.xlu0 %3014, %v2993
    %v3016 = vpop.permute.xlu0 %3015
    %3019 = vset.pattern.permute.xlu0 0
    %3020 = vperm.xlu0 %3019, %v2994
    %v3021 = vpop.permute.xlu0 %3020
    %3024 = vset.pattern.permute.xlu0 0
    %3025 = vperm.xlu0 %3024, %v2995
    %v3026 = vpop.permute.xlu0 %3025
    %3029 = vset.pattern.permute.xlu0 0
    %3030 = vperm.xlu0 %3029, %v2996
    %v3031 = vpop.permute.xlu0 %3030
    %3034 = vset.pattern.permute.xlu0 0
    %3035 = vperm.xlu0 %3034, %v2997
    %v3036 = vpop.permute.xlu0 %3035
    %v3038 = vmul.f32 %v3001, %v45
    %v3039 = vmul.f32 %v3006, %v46
    %v3040 = vmul.f32 %v3011, %v47
    %v3041 = vmul.f32 %v3016, %v48
    %v3042 = vmul.f32 %v3021, %v49
    %v3043 = vmul.f32 %v3026, %v50
    %v3044 = vmul.f32 %v3031, %v51
    %v3045 = vmul.f32 %v3036, %v52
    %v3046 = vsel %vm80, %v3038, 0.0
    %v3047 = vsel %vm80, %v3039, 0.0
    %v3048 = vadd.f32 %v3046, %v3047
    %v3049 = vsel %vm80, %v3040, 0.0
    %v3050 = vadd.f32 %v3048, %v3049
    %v3051 = vsel %vm80, %v3041, 0.0
    %v3052 = vadd.f32 %v3050, %v3051
    %v3053 = vrot.slane %v3052, 4
    %v3054 = vadd.f32 %v3052, %v3053
    %v3055 = vrot.slane %v3054, 2
    %v3056 = vadd.f32 %v3054, %v3055
    %v3057 = vrot.slane %v3056, 1
    %v3058 = vadd.f32 %v3056, %v3057
    %v3059 = vsel %vm80, %v3042, 0.0
    %v3060 = vsel %vm80, %v3043, 0.0
    %v3061 = vadd.f32 %v3059, %v3060
    %v3062 = vsel %vm80, %v3044, 0.0
    %v3063 = vadd.f32 %v3061, %v3062
    %v3064 = vsel %vm80, %v3045, 0.0
    %v3065 = vadd.f32 %v3063, %v3064
    %v3066 = vrot.slane %v3065, 4
    %v3067 = vadd.f32 %v3065, %v3066
    %v3068 = vrot.slane %v3067, 2
    %v3069 = vadd.f32 %v3067, %v3068
    %v3070 = vrot.slane %v3069, 1
    %v3071 = vadd.f32 %v3069, %v3070
    %v3074 = vsel %vm352, %v3071, %v3058
    %3075 = vrot.lane.b32.xlu0 %v3074, 8
    %v3076 = vpop.permute.xlu0 %3075
    %3078 = vrot.lane.b32.xlu0 %v2555, 72
    %v3079 = vpop.permute.xlu0 %3078
    %v3081 = vsel %vm569, %v2647, %v3076
    %v3082 = vsel %vm571, %v3081, %v3079
    %v3084 = vsel %vm579, %v3082, 0
    %3086 = vmatprep.subr.mxu0 0.0
    %3087 = vmatpush1.msra.mxu0 0.0
    %3088 = vmatprep.subr.mxu0 0.0
    %3089 = vmatpush1.msra.mxu0 0.0
    %3090 = vmatprep.subr.mxu0 0.0
    %3091 = vmatpush1.msra.mxu0 0.0
    %3092 = vmatprep.subr.mxu0 0.0
    %3093 = vmatpush1.msra.mxu0 0.0
    %3094 = vmatprep.subr.mxu0 0.0
    %3095 = vmatpush1.msra.mxu0 0.0
    %3096 = vmatprep.subr.mxu0 0.0
    %3097 = vmatpush1.msra.mxu0 0.0
    %3098 = vmatprep.subr.mxu0 0.0
    %3099 = vmatpush1.msra.mxu0 0.0
    %3100 = vmatprep.subr.mxu0 0.0
    %3101 = vmatpush1.msra.mxu0 %v66
    %3102 = vmatprep.subr.mxu0 0.0
    %3103 = vmatpush1.msra.mxu0 %v65
    %3104 = vmatprep.subr.mxu0 0.0
    %3105 = vmatpush1.msra.mxu0 %v64
    %3106 = vmatprep.subr.mxu0 0.0
    %3107 = vmatpush1.msra.mxu0 %v63
    %3108 = vmatprep.subr.mxu0 0.0
    %3109 = vmatpush1.msra.mxu0 %v62
    %3110 = vmatprep.subr.mxu0 0.0
    %3111 = vmatpush1.msra.mxu0 %v61
    %3112 = vmatprep.subr.mxu0 0.0
    %3113 = vmatpush1.msra.mxu0 %v60
    %3114 = vmatprep.subr.mxu0 0.0
    %3115 = vmatpush1.msra.mxu0 %v59
    %3116 = vmatprep.subr.mxu0 0.0
    %3117 = vmatpush1.msra.mxu0 %v58
    %3118 = vmatprep.subr.mxu0 0.0
    %3119 = vmatpush2.msra.mxu0 0.0
    %3120 = vmatprep.subr.mxu0 0.0
    %3121 = vmatpush2.msra.mxu0 0.0
    %3122 = vmatprep.subr.mxu0 0.0
    %3123 = vmatpush2.msra.mxu0 0.0
    %3124 = vmatprep.subr.mxu0 0.0
    %3125 = vmatpush2.msra.mxu0 0.0
    %3126 = vmatprep.subr.mxu0 0.0
    %3127 = vmatpush2.msra.mxu0 0.0
    %3128 = vmatprep.subr.mxu0 0.0
    %3129 = vmatpush2.msra.mxu0 0.0
    %3130 = vmatprep.subr.mxu0 0.0
    %3131 = vmatpush2.msra.mxu0 0.0
    %3132 = vmatprep.subr.mxu0 0.0
    %3133 = vmatpush2.msra.mxu0 0.0
    %3134 = vmatprep.subr.mxu0 0.0
    %3135 = vmatpush2.msra.mxu0 0.0
    %3136 = vmatprep.subr.mxu0 0.0
    %3137 = vmatpush2.msra.mxu0 0.0
    %3138 = vmatprep.subr.mxu0 0.0
    %3139 = vmatpush2.msra.mxu0 0.0
    %3140 = vmatprep.subr.mxu0 0.0
    %3141 = vmatpush2.msra.mxu0 0.0
    %3142 = vmatprep.subr.mxu0 0.0
    %3143 = vmatpush2.msra.mxu0 0.0
    %3144 = vmatprep.subr.mxu0 0.0
    %3145 = vmatpush2.msra.mxu0 0.0
    %3146 = vmatprep.subr.mxu0 0.0
    %3147 = vmatpush2.msra.mxu0 0.0
    %3148 = vmatprep.subr.mxu0 0.0
    %3149 = vmatpush2.msra.mxu0 0.0
    %3150 = vmatprep.mubr.f32.mxu0 0.0
    %3151 = vmatmul.mubr.f32.gmra.mxu0 %v3084
    %v3152 = vpop.f32.mrf.mxu0
    %v3153 = vadd.f32 %v577, %v3152
    %v3154 = vpop.f32.mrf.mxu0
    %3155 = vdwg.mxu0
    %v3156 = vxor.u32 %v3153, 2147483648
    %v3157 = vmul.f32 %v3156, 1.442695
    %v3158 = vpow.pop %v3157
    %v3159 = vadd.f32 %v3158, 1.0
    %v3160 = vrcp.pop %v3159
    %v3161 = vmul.f32 1.0, %v3160
    %v3162 = vtanh.pop %v3153
    %v3163 = vmul.f32 %v3161, %v2549
    %3165 = vrot.lane.b32.xlu0 %v3162, 64
    %v3166 = vpop.permute.xlu0 %3165
    %v3168 = vmul.f32 %v3161, %v3166
    %3170 = vrot.lane.b32.xlu0 %v3168, 32
    %v3171 = vpop.permute.xlu0 %3170
    %v3173 = vadd.f32 %v3163, %v3171
    %v3174 = vtanh.pop %v3173
    %3176 = vrot.lane.b32.xlu0 %v3174, 64
    %v3177 = vpop.permute.xlu0 %3176
    %v3179 = vmul.f32 %v3161, %v3177
    %3181 = vrot.lane.b32.xlu0 %v3179, 32
    %v3182 = vpop.permute.xlu0 %3181
    %3184 = vrot.lane.b32.xlu0 %v3074, 32
    %v3185 = vpop.permute.xlu0 %3184
    %v3187 = vsel %vm80, %v3182, %v3185
    %v3189 = vsel %vm691, %v3187, 0
    %3191 = vmatprep.subr.mxu0 0.0
    %3192 = vmatpush1.msra.mxu0 0.0
    %3193 = vmatprep.subr.mxu0 0.0
    %3194 = vmatpush1.msra.mxu0 0.0
    %3195 = vmatprep.subr.mxu0 0.0
    %3196 = vmatpush1.msra.mxu0 0.0
    %3197 = vmatprep.subr.mxu0 0.0
    %3198 = vmatpush1.msra.mxu0 0.0
    %3199 = vmatprep.subr.mxu0 0.0
    %3200 = vmatpush1.msra.mxu0 0.0
    %3201 = vmatprep.subr.mxu0 0.0
    %3202 = vmatpush1.msra.mxu0 0.0
    %3203 = vmatprep.subr.mxu0 0.0
    %3204 = vmatpush1.msra.mxu0 0.0
    %3205 = vmatprep.subr.mxu0 0.0
    %3206 = vmatpush1.msra.mxu0 0.0
    %3207 = vmatprep.subr.mxu0 0.0
    %3208 = vmatpush1.msra.mxu0 %v75
    %3209 = vmatprep.subr.mxu0 0.0
    %3210 = vmatpush1.msra.mxu0 %v74
    %3211 = vmatprep.subr.mxu0 0.0
    %3212 = vmatpush1.msra.mxu0 %v73
    %3213 = vmatprep.subr.mxu0 0.0
    %3214 = vmatpush1.msra.mxu0 %v72
    %3215 = vmatprep.subr.mxu0 0.0
    %3216 = vmatpush1.msra.mxu0 %v71
    %3217 = vmatprep.subr.mxu0 0.0
    %3218 = vmatpush1.msra.mxu0 %v70
    %3219 = vmatprep.subr.mxu0 0.0
    %3220 = vmatpush1.msra.mxu0 %v69
    %3221 = vmatprep.subr.mxu0 0.0
    %3222 = vmatpush1.msra.mxu0 %v68
    %3223 = vmatprep.subr.mxu0 0.0
    %3224 = vmatpush2.msra.mxu0 0.0
    %3225 = vmatprep.subr.mxu0 0.0
    %3226 = vmatpush2.msra.mxu0 0.0
    %3227 = vmatprep.subr.mxu0 0.0
    %3228 = vmatpush2.msra.mxu0 0.0
    %3229 = vmatprep.subr.mxu0 0.0
    %3230 = vmatpush2.msra.mxu0 0.0
    %3231 = vmatprep.subr.mxu0 0.0
    %3232 = vmatpush2.msra.mxu0 0.0
    %3233 = vmatprep.subr.mxu0 0.0
    %3234 = vmatpush2.msra.mxu0 0.0
    %3235 = vmatprep.subr.mxu0 0.0
    %3236 = vmatpush2.msra.mxu0 0.0
    %3237 = vmatprep.subr.mxu0 0.0
    %3238 = vmatpush2.msra.mxu0 0.0
    %3239 = vmatprep.subr.mxu0 0.0
    %3240 = vmatpush2.msra.mxu0 0.0
    %3241 = vmatprep.subr.mxu0 0.0
    %3242 = vmatpush2.msra.mxu0 0.0
    %3243 = vmatprep.subr.mxu0 0.0
    %3244 = vmatpush2.msra.mxu0 0.0
    %3245 = vmatprep.subr.mxu0 0.0
    %3246 = vmatpush2.msra.mxu0 0.0
    %3247 = vmatprep.subr.mxu0 0.0
    %3248 = vmatpush2.msra.mxu0 0.0
    %3249 = vmatprep.subr.mxu0 0.0
    %3250 = vmatpush2.msra.mxu0 0.0
    %3251 = vmatprep.subr.mxu0 0.0
    %3252 = vmatpush2.msra.mxu0 0.0
    %3253 = vmatprep.subr.mxu0 0.0
    %3254 = vmatpush2.msra.mxu0 0.0
    %3255 = vmatprep.mubr.f32.mxu0 0.0
    %3256 = vmatmul.mubr.f32.gmra.mxu0 %v3189
    %v3257 = vpop.f32.mrf.mxu0
    %v3258 = vadd.f32 %v689, %v3257
    %v3259 = vpop.f32.mrf.mxu0
    %3260 = vdwg.mxu0
    %s3261 = scalar_lea.vmem %s9, 10
    %3262 = vst.msk [vmem:[%s3261] sm:$0x3] %vm77, %v3258
    %s3263 = sld [smem:[#allocation2 + $0x5]]
    %s3264 = scalar_lea.vmem %s1, 10
    %v3265 = vld [vmem:[%s3264] sm:$0x3]
    %v3266 = vstv %s3263
    %v3267 = vmul.f32 %v3266, %v3265
    %s3268 = ssub.f32 1.0, %s3263
    %v3269 = vstv %s3268
    %v3270 = vmul.f32 %v3269, %v3258
    %v3271 = vadd.f32 %v3267, %v3270
    %v3272 = vsel %vm80, %v3182, 0
    %3274 = vmatprep.subr.mxu0 0.0
    %3275 = vmatpush1.msra.mxu0 0.0
    %3276 = vmatprep.subr.mxu0 0.0
    %3277 = vmatpush1.msra.mxu0 0.0
    %3278 = vmatprep.subr.mxu0 0.0
    %3279 = vmatpush1.msra.mxu0 0.0
    %3280 = vmatprep.subr.mxu0 0.0
    %3281 = vmatpush1.msra.mxu0 0.0
    %3282 = vmatprep.subr.mxu0 0.0
    %3283 = vmatpush1.msra.mxu0 0.0
    %3284 = vmatprep.subr.mxu0 0.0
    %3285 = vmatpush1.msra.mxu0 0.0
    %3286 = vmatprep.subr.mxu0 0.0
    %3287 = vmatpush1.msra.mxu0 0.0
    %3288 = vmatprep.subr.mxu0 0.0
    %3289 = vmatpush1.msra.mxu0 0.0
    %3290 = vmatprep.subr.mxu0 0.0
    %3291 = vmatpush1.msra.mxu0 0.0
    %3292 = vmatprep.subr.mxu0 0.0
    %3293 = vmatpush1.msra.mxu0 0.0
    %3294 = vmatprep.subr.mxu0 0.0
    %3295 = vmatpush1.msra.mxu0 0.0
    %3296 = vmatprep.subr.mxu0 0.0
    %3297 = vmatpush1.msra.mxu0 0.0
    %3298 = vmatprep.subr.mxu0 0.0
    %3299 = vmatpush1.msra.mxu0 %v57
    %3300 = vmatprep.subr.mxu0 0.0
    %3301 = vmatpush1.msra.mxu0 %v56
    %3302 = vmatprep.subr.mxu0 0.0
    %3303 = vmatpush1.msra.mxu0 %v55
    %3304 = vmatprep.subr.mxu0 0.0
    %3305 = vmatpush1.msra.mxu0 %v54
    %3306 = vmatprep.subr.mxu0 0.0
    %3307 = vmatpush2.msra.mxu0 0.0
    %3308 = vmatprep.subr.mxu0 0.0
    %3309 = vmatpush2.msra.mxu0 0.0
    %3310 = vmatprep.subr.mxu0 0.0
    %3311 = vmatpush2.msra.mxu0 0.0
    %3312 = vmatprep.subr.mxu0 0.0
    %3313 = vmatpush2.msra.mxu0 0.0
    %3314 = vmatprep.subr.mxu0 0.0
    %3315 = vmatpush2.msra.mxu0 0.0
    %3316 = vmatprep.subr.mxu0 0.0
    %3317 = vmatpush2.msra.mxu0 0.0
    %3318 = vmatprep.subr.mxu0 0.0
    %3319 = vmatpush2.msra.mxu0 0.0
    %3320 = vmatprep.subr.mxu0 0.0
    %3321 = vmatpush2.msra.mxu0 0.0
    %3322 = vmatprep.subr.mxu0 0.0
    %3323 = vmatpush2.msra.mxu0 0.0
    %3324 = vmatprep.subr.mxu0 0.0
    %3325 = vmatpush2.msra.mxu0 0.0
    %3326 = vmatprep.subr.mxu0 0.0
    %3327 = vmatpush2.msra.mxu0 0.0
    %3328 = vmatprep.subr.mxu0 0.0
    %3329 = vmatpush2.msra.mxu0 0.0
    %3330 = vmatprep.subr.mxu0 0.0
    %3331 = vmatpush2.msra.mxu0 0.0
    %3332 = vmatprep.subr.mxu0 0.0
    %3333 = vmatpush2.msra.mxu0 0.0
    %3334 = vmatprep.subr.mxu0 0.0
    %3335 = vmatpush2.msra.mxu0 0.0
    %3336 = vmatprep.subr.mxu0 0.0
    %3337 = vmatpush2.msra.mxu0 0.0
    %3338 = vmatprep.mubr.f32.mxu0 0.0
    %3339 = vmatmul.mubr.f32.gmra.mxu0 %v3272
    %v3340 = vpop.f32.mrf.mxu0
    %v3341 = vadd.f32 0.0, %v3340
    %v3342 = vpop.f32.mrf.mxu0
    %3343 = vdwg.mxu0
    %v3346 = vunpack.c.l.s4 1966171168
    %v3347 = vunpack.c.0.s8 %v3346
    %v3348 = vlaneseq
    %v3349 = vshrl.u32 %v3348, 7
    %v3350 = vsub.s32 %v3347, %v3349
    %v3351 = vrot.slane %v3341, %v3350
    %v3352 = vcombine.high %v3351, %v3351
    %v3354 = vunpack.c.l.s4 1966171168
    %v3355 = vunpack.c.0.s8 %v3354
    %v3356 = vlaneseq
    %v3357 = vshrl.u32 %v3356, 7
    %v3358 = vsub.s32 %v3355, %v3357
    %v3359 = vrot.slane %v3351, %v3358
    %v3361 = vunpack.c.l.s4 1966171168
    %v3362 = vunpack.c.0.s8 %v3361
    %v3363 = vlaneseq
    %v3364 = vshrl.u32 %v3363, 7
    %v3365 = vsub.s32 %v3362, %v3364
    %v3366 = vrot.slane %v3352, %v3365
    %v3367 = vlaneseq
    %v3368 = vshrl.u32 %v3367, 7
    %v3369 = vsub.s32 0, %v3368
    %v3370 = vrot.slane %v3359, %v3369
    %v3371 = vlaneseq
    %v3372 = vshrl.u32 %v3371, 7
    %v3373 = vsub.s32 0, %v3372
    %v3374 = vrot.slane %v3366, %v3373
    %v3377 = vmul.f32 %v45, %v3370
    %v3378 = vmul.f32 %v46, %v3370
    %v3379 = vmul.f32 %v47, %v3370
    %v3380 = vmul.f32 %v48, %v3370
    %v3381 = vmul.f32 %v49, %v3374
    %v3382 = vmul.f32 %v50, %v3374
    %v3383 = vmul.f32 %v51, %v3374
    %v3384 = vmul.f32 %v52, %v3374
    %v3385 = vsel %vm80, %v3377, 0.0
    %3386 = vadd.xlane.f32.xlu0 %v3385
    %v3387 = vpop.xlane.xlu0 %3386
    %v3388 = vsel %vm80, %v3378, 0.0
    %3389 = vadd.xlane.f32.xlu0 %v3388
    %v3390 = vpop.xlane.xlu0 %3389
    %v3391 = vsel %vm80, %v3379, 0.0
    %3392 = vadd.xlane.f32.xlu0 %v3391
    %v3393 = vpop.xlane.xlu0 %3392
    %v3394 = vsel %vm80, %v3380, 0.0
    %3395 = vadd.xlane.f32.xlu0 %v3394
    %v3396 = vpop.xlane.xlu0 %3395
    %v3397 = vsel %vm80, %v3381, 0.0
    %3398 = vadd.xlane.f32.xlu0 %v3397
    %v3399 = vpop.xlane.xlu0 %3398
    %v3400 = vsel %vm80, %v3382, 0.0
    %3401 = vadd.xlane.f32.xlu0 %v3400
    %v3402 = vpop.xlane.xlu0 %3401
    %v3403 = vsel %vm80, %v3383, 0.0
    %3404 = vadd.xlane.f32.xlu0 %v3403
    %v3405 = vpop.xlane.xlu0 %3404
    %v3406 = vsel %vm80, %v3384, 0.0
    %3407 = vadd.xlane.f32.xlu0 %v3406
    %v3408 = vpop.xlane.xlu0 %3407
    %v3409 = vadd.f32 %v3387, %v226
    %v3410 = vadd.f32 %v3390, %v230
    %v3411 = vadd.f32 %v3393, %v234
    %v3412 = vadd.f32 %v3396, %v238
    %v3413 = vadd.f32 %v3399, %v245
    %v3414 = vadd.f32 %v3402, %v249
    %v3415 = vadd.f32 %v3405, %v253
    %v3416 = vadd.f32 %v3408, %v257
    %3425 = vset.pattern.permute.xlu0 0
    %3426 = vperm.xlu0 %3425, %v3409
    %v3427 = vpop.permute.xlu0 %3426
    %3428 = vset.pattern.permute.xlu0 0
    %3429 = vperm.xlu0 %3428, %v3410
    %v3430 = vpop.permute.xlu0 %3429
    %3431 = vset.pattern.permute.xlu0 0
    %3432 = vperm.xlu0 %3431, %v3411
    %v3433 = vpop.permute.xlu0 %3432
    %3434 = vset.pattern.permute.xlu0 0
    %3435 = vperm.xlu0 %3434, %v3412
    %v3436 = vpop.permute.xlu0 %3435
    %3437 = vset.pattern.permute.xlu0 0
    %3438 = vperm.xlu0 %3437, %v3413
    %v3439 = vpop.permute.xlu0 %3438
    %3440 = vset.pattern.permute.xlu0 0
    %3441 = vperm.xlu0 %3440, %v3414
    %v3442 = vpop.permute.xlu0 %3441
    %3443 = vset.pattern.permute.xlu0 0
    %3444 = vperm.xlu0 %3443, %v3415
    %v3445 = vpop.permute.xlu0 %3444
    %3446 = vset.pattern.permute.xlu0 0
    %3447 = vperm.xlu0 %3446, %v3416
    %v3448 = vpop.permute.xlu0 %3447
    %v3449 = vlaneseq
    %v3450 = vshrl.u32 %v3449, 7
    %v3451 = vsub.s32 %v307, %v3450
    %v3452 = vrot.slane %v3427, %v3451
    %v3453 = vlaneseq
    %v3454 = vshrl.u32 %v3453, 7
    %v3455 = vsub.s32 %v312, %v3454
    %v3456 = vrot.slane %v3430, %v3455
    %v3457 = vsel %vm317, %v3456, %v3452
    %v3458 = vlaneseq
    %v3459 = vshrl.u32 %v3458, 7
    %v3460 = vsub.s32 %v319, %v3459
    %v3461 = vrot.slane %v3433, %v3460
    %v3462 = vsel %vm324, %v3461, %v3457
    %v3463 = vlaneseq
    %v3464 = vshrl.u32 %v3463, 7
    %v3465 = vsub.s32 %v326, %v3464
    %v3466 = vrot.slane %v3436, %v3465
    %v3467 = vsel %vm331, %v3466, %v3462
    %v3468 = vlaneseq
    %v3469 = vshrl.u32 %v3468, 7
    %v3470 = vsub.s32 %v307, %v3469
    %v3471 = vrot.slane %v3439, %v3470
    %v3472 = vlaneseq
    %v3473 = vshrl.u32 %v3472, 7
    %v3474 = vsub.s32 %v312, %v3473
    %v3475 = vrot.slane %v3442, %v3474
    %v3476 = vsel %vm317, %v3475, %v3471
    %v3477 = vlaneseq
    %v3478 = vshrl.u32 %v3477, 7
    %v3479 = vsub.s32 %v319, %v3478
    %v3480 = vrot.slane %v3445, %v3479
    %v3481 = vsel %vm324, %v3480, %v3476
    %v3482 = vlaneseq
    %v3483 = vshrl.u32 %v3482, 7
    %v3484 = vsub.s32 %v326, %v3483
    %v3485 = vrot.slane %v3448, %v3484
    %v3486 = vsel %vm331, %v3485, %v3481
    %v3487 = vsel %vm352, %v3486, %v3467
    %v3489 = vsel %vm355, %v3487, -inf
    %3490 = vmax.xlane.f32.xlu0 %v3489
    %v3491 = vpop.xlane.xlu0 %3490
    %v3493 = vlaneseq
    %v3494 = vshrl.u32 %v3493, 7
    %v3495 = vsub.s32 0, %v3494
    %v3496 = vrot.slane %v3491, %v3495
    %v3497 = vlaneseq
    %v3498 = vshrl.u32 %v3497, 7
    %v3499 = vsub.s32 1, %v3498
    %v3500 = vrot.slane %v3491, %v3499
    %v3503 = vsub.f32 %v3409, %v3496
    %v3504 = vsub.f32 %v3410, %v3496
    %v3505 = vsub.f32 %v3411, %v3496
    %v3506 = vsub.f32 %v3412, %v3496
    %v3507 = vsub.f32 %v3413, %v3500
    %v3508 = vsub.f32 %v3414, %v3500
    %v3509 = vsub.f32 %v3415, %v3500
    %v3510 = vsub.f32 %v3416, %v3500
    %v3511 = vmul.f32 %v3503, 1.442695
    %v3512 = vpow.pop %v3511
    %v3513 = vmul.f32 %v3504, 1.442695
    %v3514 = vpow.pop %v3513
    %v3515 = vmul.f32 %v3505, 1.442695
    %v3516 = vpow.pop %v3515
    %v3517 = vmul.f32 %v3506, 1.442695
    %v3518 = vpow.pop %v3517
    %v3519 = vmul.f32 %v3507, 1.442695
    %v3520 = vpow.pop %v3519
    %v3521 = vmul.f32 %v3508, 1.442695
    %v3522 = vpow.pop %v3521
    %v3523 = vmul.f32 %v3509, 1.442695
    %v3524 = vpow.pop %v3523
    %v3525 = vmul.f32 %v3510, 1.442695
    %v3526 = vpow.pop %v3525
    %3535 = vset.pattern.permute.xlu0 0
    %3536 = vperm.xlu0 %3535, %v3512
    %v3537 = vpop.permute.xlu0 %3536
    %3538 = vset.pattern.permute.xlu0 0
    %3539 = vperm.xlu0 %3538, %v3514
    %v3540 = vpop.permute.xlu0 %3539
    %3541 = vset.pattern.permute.xlu0 0
    %3542 = vperm.xlu0 %3541, %v3516
    %v3543 = vpop.permute.xlu0 %3542
    %3544 = vset.pattern.permute.xlu0 0
    %3545 = vperm.xlu0 %3544, %v3518
    %v3546 = vpop.permute.xlu0 %3545
    %3547 = vset.pattern.permute.xlu0 0
    %3548 = vperm.xlu0 %3547, %v3520
    %v3549 = vpop.permute.xlu0 %3548
    %3550 = vset.pattern.permute.xlu0 0
    %3551 = vperm.xlu0 %3550, %v3522
    %v3552 = vpop.permute.xlu0 %3551
    %3553 = vset.pattern.permute.xlu0 0
    %3554 = vperm.xlu0 %3553, %v3524
    %v3555 = vpop.permute.xlu0 %3554
    %3556 = vset.pattern.permute.xlu0 0
    %3557 = vperm.xlu0 %3556, %v3526
    %v3558 = vpop.permute.xlu0 %3557
    %v3559 = vlaneseq
    %v3560 = vshrl.u32 %v3559, 7
    %v3561 = vsub.s32 %v307, %v3560
    %v3562 = vrot.slane %v3537, %v3561
    %v3563 = vlaneseq
    %v3564 = vshrl.u32 %v3563, 7
    %v3565 = vsub.s32 %v312, %v3564
    %v3566 = vrot.slane %v3540, %v3565
    %v3567 = vsel %vm317, %v3566, %v3562
    %v3568 = vlaneseq
    %v3569 = vshrl.u32 %v3568, 7
    %v3570 = vsub.s32 %v319, %v3569
    %v3571 = vrot.slane %v3543, %v3570
    %v3572 = vsel %vm324, %v3571, %v3567
    %v3573 = vlaneseq
    %v3574 = vshrl.u32 %v3573, 7
    %v3575 = vsub.s32 %v326, %v3574
    %v3576 = vrot.slane %v3546, %v3575
    %v3577 = vsel %vm331, %v3576, %v3572
    %v3578 = vlaneseq
    %v3579 = vshrl.u32 %v3578, 7
    %v3580 = vsub.s32 %v307, %v3579
    %v3581 = vrot.slane %v3549, %v3580
    %v3582 = vlaneseq
    %v3583 = vshrl.u32 %v3582, 7
    %v3584 = vsub.s32 %v312, %v3583
    %v3585 = vrot.slane %v3552, %v3584
    %v3586 = vsel %vm317, %v3585, %v3581
    %v3587 = vlaneseq
    %v3588 = vshrl.u32 %v3587, 7
    %v3589 = vsub.s32 %v319, %v3588
    %v3590 = vrot.slane %v3555, %v3589
    %v3591 = vsel %vm324, %v3590, %v3586
    %v3592 = vlaneseq
    %v3593 = vshrl.u32 %v3592, 7
    %v3594 = vsub.s32 %v326, %v3593
    %v3595 = vrot.slane %v3558, %v3594
    %v3596 = vsel %vm331, %v3595, %v3591
    %v3597 = vsel %vm352, %v3596, %v3577
    %v3599 = vsel %vm355, %v3597, 0.0
    %3600 = vadd.xlane.f32.xlu0 %v3599
    %v3601 = vpop.xlane.xlu0 %3600
    %v3602 = vrcp.pop %v3601
    %v3604 = vlaneseq
    %v3605 = vshrl.u32 %v3604, 7
    %v3606 = vsub.s32 0, %v3605
    %v3607 = vrot.slane %v3602, %v3606
    %v3608 = vlaneseq
    %v3609 = vshrl.u32 %v3608, 7
    %v3610 = vsub.s32 1, %v3609
    %v3611 = vrot.slane %v3602, %v3610
    %v3614 = vmul.f32 %v3512, %v3607
    %v3615 = vmul.f32 %v3514, %v3607
    %v3616 = vmul.f32 %v3516, %v3607
    %v3617 = vmul.f32 %v3518, %v3607
    %v3618 = vmul.f32 %v3520, %v3611
    %v3619 = vmul.f32 %v3522, %v3611
    %v3620 = vmul.f32 %v3524, %v3611
    %v3621 = vmul.f32 %v3526, %v3611
    %3623 = vset.pattern.permute.xlu0 0
    %3624 = vperm.xlu0 %3623, %v3614
    %v3625 = vpop.permute.xlu0 %3624
    %3628 = vset.pattern.permute.xlu0 0
    %3629 = vperm.xlu0 %3628, %v3615
    %v3630 = vpop.permute.xlu0 %3629
    %3633 = vset.pattern.permute.xlu0 0
    %3634 = vperm.xlu0 %3633, %v3616
    %v3635 = vpop.permute.xlu0 %3634
    %3638 = vset.pattern.permute.xlu0 0
    %3639 = vperm.xlu0 %3638, %v3617
    %v3640 = vpop.permute.xlu0 %3639
    %3643 = vset.pattern.permute.xlu0 0
    %3644 = vperm.xlu0 %3643, %v3618
    %v3645 = vpop.permute.xlu0 %3644
    %3648 = vset.pattern.permute.xlu0 0
    %3649 = vperm.xlu0 %3648, %v3619
    %v3650 = vpop.permute.xlu0 %3649
    %3653 = vset.pattern.permute.xlu0 0
    %3654 = vperm.xlu0 %3653, %v3620
    %v3655 = vpop.permute.xlu0 %3654
    %3658 = vset.pattern.permute.xlu0 0
    %3659 = vperm.xlu0 %3658, %v3621
    %v3660 = vpop.permute.xlu0 %3659
    %v3662 = vmul.f32 %v3625, %v45
    %v3663 = vmul.f32 %v3630, %v46
    %v3664 = vmul.f32 %v3635, %v47
    %v3665 = vmul.f32 %v3640, %v48
    %v3666 = vmul.f32 %v3645, %v49
    %v3667 = vmul.f32 %v3650, %v50
    %v3668 = vmul.f32 %v3655, %v51
    %v3669 = vmul.f32 %v3660, %v52
    %v3670 = vsel %vm80, %v3662, 0.0
    %v3671 = vsel %vm80, %v3663, 0.0
    %v3672 = vadd.f32 %v3670, %v3671
    %v3673 = vsel %vm80, %v3664, 0.0
    %v3674 = vadd.f32 %v3672, %v3673
    %v3675 = vsel %vm80, %v3665, 0.0
    %v3676 = vadd.f32 %v3674, %v3675
    %v3677 = vrot.slane %v3676, 4
    %v3678 = vadd.f32 %v3676, %v3677
    %v3679 = vrot.slane %v3678, 2
    %v3680 = vadd.f32 %v3678, %v3679
    %v3681 = vrot.slane %v3680, 1
    %v3682 = vadd.f32 %v3680, %v3681
    %v3683 = vsel %vm80, %v3666, 0.0
    %v3684 = vsel %vm80, %v3667, 0.0
    %v3685 = vadd.f32 %v3683, %v3684
    %v3686 = vsel %vm80, %v3668, 0.0
    %v3687 = vadd.f32 %v3685, %v3686
    %v3688 = vsel %vm80, %v3669, 0.0
    %v3689 = vadd.f32 %v3687, %v3688
    %v3690 = vrot.slane %v3689, 4
    %v3691 = vadd.f32 %v3689, %v3690
    %v3692 = vrot.slane %v3691, 2
    %v3693 = vadd.f32 %v3691, %v3692
    %v3694 = vrot.slane %v3693, 1
    %v3695 = vadd.f32 %v3693, %v3694
    %v3698 = vsel %vm352, %v3695, %v3682
    %3699 = vrot.lane.b32.xlu0 %v3698, 8
    %v3700 = vpop.permute.xlu0 %3699
    %3702 = vrot.lane.b32.xlu0 %v3179, 72
    %v3703 = vpop.permute.xlu0 %3702
    %v3705 = vsel %vm569, %v3271, %v3700
    %v3706 = vsel %vm571, %v3705, %v3703
    %v3708 = vsel %vm579, %v3706, 0
    %3710 = vmatprep.subr.mxu0 0.0
    %3711 = vmatpush1.msra.mxu0 0.0
    %3712 = vmatprep.subr.mxu0 0.0
    %3713 = vmatpush1.msra.mxu0 0.0
    %3714 = vmatprep.subr.mxu0 0.0
    %3715 = vmatpush1.msra.mxu0 0.0
    %3716 = vmatprep.subr.mxu0 0.0
    %3717 = vmatpush1.msra.mxu0 0.0
    %3718 = vmatprep.subr.mxu0 0.0
    %3719 = vmatpush1.msra.mxu0 0.0
    %3720 = vmatprep.subr.mxu0 0.0
    %3721 = vmatpush1.msra.mxu0 0.0
    %3722 = vmatprep.subr.mxu0 0.0
    %3723 = vmatpush1.msra.mxu0 0.0
    %3724 = vmatprep.subr.mxu0 0.0
    %3725 = vmatpush1.msra.mxu0 %v66
    %3726 = vmatprep.subr.mxu0 0.0
    %3727 = vmatpush1.msra.mxu0 %v65
    %3728 = vmatprep.subr.mxu0 0.0
    %3729 = vmatpush1.msra.mxu0 %v64
    %3730 = vmatprep.subr.mxu0 0.0
    %3731 = vmatpush1.msra.mxu0 %v63
    %3732 = vmatprep.subr.mxu0 0.0
    %3733 = vmatpush1.msra.mxu0 %v62
    %3734 = vmatprep.subr.mxu0 0.0
    %3735 = vmatpush1.msra.mxu0 %v61
    %3736 = vmatprep.subr.mxu0 0.0
    %3737 = vmatpush1.msra.mxu0 %v60
    %3738 = vmatprep.subr.mxu0 0.0
    %3739 = vmatpush1.msra.mxu0 %v59
    %3740 = vmatprep.subr.mxu0 0.0
    %3741 = vmatpush1.msra.mxu0 %v58
    %3742 = vmatprep.subr.mxu0 0.0
    %3743 = vmatpush2.msra.mxu0 0.0
    %3744 = vmatprep.subr.mxu0 0.0
    %3745 = vmatpush2.msra.mxu0 0.0
    %3746 = vmatprep.subr.mxu0 0.0
    %3747 = vmatpush2.msra.mxu0 0.0
    %3748 = vmatprep.subr.mxu0 0.0
    %3749 = vmatpush2.msra.mxu0 0.0
    %3750 = vmatprep.subr.mxu0 0.0
    %3751 = vmatpush2.msra.mxu0 0.0
    %3752 = vmatprep.subr.mxu0 0.0
    %3753 = vmatpush2.msra.mxu0 0.0
    %3754 = vmatprep.subr.mxu0 0.0
    %3755 = vmatpush2.msra.mxu0 0.0
    %3756 = vmatprep.subr.mxu0 0.0
    %3757 = vmatpush2.msra.mxu0 0.0
    %3758 = vmatprep.subr.mxu0 0.0
    %3759 = vmatpush2.msra.mxu0 0.0
    %3760 = vmatprep.subr.mxu0 0.0
    %3761 = vmatpush2.msra.mxu0 0.0
    %3762 = vmatprep.subr.mxu0 0.0
    %3763 = vmatpush2.msra.mxu0 0.0
    %3764 = vmatprep.subr.mxu0 0.0
    %3765 = vmatpush2.msra.mxu0 0.0
    %3766 = vmatprep.subr.mxu0 0.0
    %3767 = vmatpush2.msra.mxu0 0.0
    %3768 = vmatprep.subr.mxu0 0.0
    %3769 = vmatpush2.msra.mxu0 0.0
    %3770 = vmatprep.subr.mxu0 0.0
    %3771 = vmatpush2.msra.mxu0 0.0
    %3772 = vmatprep.subr.mxu0 0.0
    %3773 = vmatpush2.msra.mxu0 0.0
    %3774 = vmatprep.mubr.f32.mxu0 0.0
    %3775 = vmatmul.mubr.f32.gmra.mxu0 %v3708
    %v3776 = vpop.f32.mrf.mxu0
    %v3777 = vadd.f32 %v577, %v3776
    %v3778 = vpop.f32.mrf.mxu0
    %3779 = vdwg.mxu0
    %v3780 = vxor.u32 %v3777, 2147483648
    %v3781 = vmul.f32 %v3780, 1.442695
    %v3782 = vpow.pop %v3781
    %v3783 = vadd.f32 %v3782, 1.0
    %v3784 = vrcp.pop %v3783
    %v3785 = vmul.f32 1.0, %v3784
    %v3786 = vtanh.pop %v3777
    %v3787 = vmul.f32 %v3785, %v3173
    %3789 = vrot.lane.b32.xlu0 %v3786, 64
    %v3790 = vpop.permute.xlu0 %3789
    %v3792 = vmul.f32 %v3785, %v3790
    %3794 = vrot.lane.b32.xlu0 %v3792, 32
    %v3795 = vpop.permute.xlu0 %3794
    %v3797 = vadd.f32 %v3787, %v3795
    %v3798 = vtanh.pop %v3797
    %3800 = vrot.lane.b32.xlu0 %v3798, 64
    %v3801 = vpop.permute.xlu0 %3800
    %v3803 = vmul.f32 %v3785, %v3801
    %3805 = vrot.lane.b32.xlu0 %v3803, 32
    %v3806 = vpop.permute.xlu0 %3805
    %3808 = vrot.lane.b32.xlu0 %v3698, 32
    %v3809 = vpop.permute.xlu0 %3808
    %v3811 = vsel %vm80, %v3806, %v3809
    %v3813 = vsel %vm691, %v3811, 0
    %3815 = vmatprep.subr.mxu0 0.0
    %3816 = vmatpush1.msra.mxu0 0.0
    %3817 = vmatprep.subr.mxu0 0.0
    %3818 = vmatpush1.msra.mxu0 0.0
    %3819 = vmatprep.subr.mxu0 0.0
    %3820 = vmatpush1.msra.mxu0 0.0
    %3821 = vmatprep.subr.mxu0 0.0
    %3822 = vmatpush1.msra.mxu0 0.0
    %3823 = vmatprep.subr.mxu0 0.0
    %3824 = vmatpush1.msra.mxu0 0.0
    %3825 = vmatprep.subr.mxu0 0.0
    %3826 = vmatpush1.msra.mxu0 0.0
    %3827 = vmatprep.subr.mxu0 0.0
    %3828 = vmatpush1.msra.mxu0 0.0
    %3829 = vmatprep.subr.mxu0 0.0
    %3830 = vmatpush1.msra.mxu0 0.0
    %3831 = vmatprep.subr.mxu0 0.0
    %3832 = vmatpush1.msra.mxu0 %v75
    %3833 = vmatprep.subr.mxu0 0.0
    %3834 = vmatpush1.msra.mxu0 %v74
    %3835 = vmatprep.subr.mxu0 0.0
    %3836 = vmatpush1.msra.mxu0 %v73
    %3837 = vmatprep.subr.mxu0 0.0
    %3838 = vmatpush1.msra.mxu0 %v72
    %3839 = vmatprep.subr.mxu0 0.0
    %3840 = vmatpush1.msra.mxu0 %v71
    %3841 = vmatprep.subr.mxu0 0.0
    %3842 = vmatpush1.msra.mxu0 %v70
    %3843 = vmatprep.subr.mxu0 0.0
    %3844 = vmatpush1.msra.mxu0 %v69
    %3845 = vmatprep.subr.mxu0 0.0
    %3846 = vmatpush1.msra.mxu0 %v68
    %3847 = vmatprep.subr.mxu0 0.0
    %3848 = vmatpush2.msra.mxu0 0.0
    %3849 = vmatprep.subr.mxu0 0.0
    %3850 = vmatpush2.msra.mxu0 0.0
    %3851 = vmatprep.subr.mxu0 0.0
    %3852 = vmatpush2.msra.mxu0 0.0
    %3853 = vmatprep.subr.mxu0 0.0
    %3854 = vmatpush2.msra.mxu0 0.0
    %3855 = vmatprep.subr.mxu0 0.0
    %3856 = vmatpush2.msra.mxu0 0.0
    %3857 = vmatprep.subr.mxu0 0.0
    %3858 = vmatpush2.msra.mxu0 0.0
    %3859 = vmatprep.subr.mxu0 0.0
    %3860 = vmatpush2.msra.mxu0 0.0
    %3861 = vmatprep.subr.mxu0 0.0
    %3862 = vmatpush2.msra.mxu0 0.0
    %3863 = vmatprep.subr.mxu0 0.0
    %3864 = vmatpush2.msra.mxu0 0.0
    %3865 = vmatprep.subr.mxu0 0.0
    %3866 = vmatpush2.msra.mxu0 0.0
    %3867 = vmatprep.subr.mxu0 0.0
    %3868 = vmatpush2.msra.mxu0 0.0
    %3869 = vmatprep.subr.mxu0 0.0
    %3870 = vmatpush2.msra.mxu0 0.0
    %3871 = vmatprep.subr.mxu0 0.0
    %3872 = vmatpush2.msra.mxu0 0.0
    %3873 = vmatprep.subr.mxu0 0.0
    %3874 = vmatpush2.msra.mxu0 0.0
    %3875 = vmatprep.subr.mxu0 0.0
    %3876 = vmatpush2.msra.mxu0 0.0
    %3877 = vmatprep.subr.mxu0 0.0
    %3878 = vmatpush2.msra.mxu0 0.0
    %3879 = vmatprep.mubr.f32.mxu0 0.0
    %3880 = vmatmul.mubr.f32.gmra.mxu0 %v3813
    %v3881 = vpop.f32.mrf.mxu0
    %v3882 = vadd.f32 %v689, %v3881
    %v3883 = vpop.f32.mrf.mxu0
    %3884 = vdwg.mxu0
    %s3885 = scalar_lea.vmem %s9, 12
    %3886 = vst.msk [vmem:[%s3885] sm:$0x3] %vm77, %v3882
    %s3887 = sld [smem:[#allocation2 + $0x6]]
    %s3888 = scalar_lea.vmem %s1, 12
    %v3889 = vld [vmem:[%s3888] sm:$0x3]
    %v3890 = vstv %s3887
    %v3891 = vmul.f32 %v3890, %v3889
    %s3892 = ssub.f32 1.0, %s3887
    %v3893 = vstv %s3892
    %v3894 = vmul.f32 %v3893, %v3882
    %v3895 = vadd.f32 %v3891, %v3894
    %v3896 = vsel %vm80, %v3806, 0
    %3898 = vmatprep.subr.mxu0 0.0
    %3899 = vmatpush1.msra.mxu0 0.0
    %3900 = vmatprep.subr.mxu0 0.0
    %3901 = vmatpush1.msra.mxu0 0.0
    %3902 = vmatprep.subr.mxu0 0.0
    %3903 = vmatpush1.msra.mxu0 0.0
    %3904 = vmatprep.subr.mxu0 0.0
    %3905 = vmatpush1.msra.mxu0 0.0
    %3906 = vmatprep.subr.mxu0 0.0
    %3907 = vmatpush1.msra.mxu0 0.0
    %3908 = vmatprep.subr.mxu0 0.0
    %3909 = vmatpush1.msra.mxu0 0.0
    %3910 = vmatprep.subr.mxu0 0.0
    %3911 = vmatpush1.msra.mxu0 0.0
    %3912 = vmatprep.subr.mxu0 0.0
    %3913 = vmatpush1.msra.mxu0 0.0
    %3914 = vmatprep.subr.mxu0 0.0
    %3915 = vmatpush1.msra.mxu0 0.0
    %3916 = vmatprep.subr.mxu0 0.0
    %3917 = vmatpush1.msra.mxu0 0.0
    %3918 = vmatprep.subr.mxu0 0.0
    %3919 = vmatpush1.msra.mxu0 0.0
    %3920 = vmatprep.subr.mxu0 0.0
    %3921 = vmatpush1.msra.mxu0 0.0
    %3922 = vmatprep.subr.mxu0 0.0
    %3923 = vmatpush1.msra.mxu0 %v57
    %3924 = vmatprep.subr.mxu0 0.0
    %3925 = vmatpush1.msra.mxu0 %v56
    %3926 = vmatprep.subr.mxu0 0.0
    %3927 = vmatpush1.msra.mxu0 %v55
    %3928 = vmatprep.subr.mxu0 0.0
    %3929 = vmatpush1.msra.mxu0 %v54
    %3930 = vmatprep.subr.mxu0 0.0
    %3931 = vmatpush2.msra.mxu0 0.0
    %3932 = vmatprep.subr.mxu0 0.0
    %3933 = vmatpush2.msra.mxu0 0.0
    %3934 = vmatprep.subr.mxu0 0.0
    %3935 = vmatpush2.msra.mxu0 0.0
    %3936 = vmatprep.subr.mxu0 0.0
    %3937 = vmatpush2.msra.mxu0 0.0
    %3938 = vmatprep.subr.mxu0 0.0
    %3939 = vmatpush2.msra.mxu0 0.0
    %3940 = vmatprep.subr.mxu0 0.0
    %3941 = vmatpush2.msra.mxu0 0.0
    %3942 = vmatprep.subr.mxu0 0.0
    %3943 = vmatpush2.msra.mxu0 0.0
    %3944 = vmatprep.subr.mxu0 0.0
    %3945 = vmatpush2.msra.mxu0 0.0
    %3946 = vmatprep.subr.mxu0 0.0
    %3947 = vmatpush2.msra.mxu0 0.0
    %3948 = vmatprep.subr.mxu0 0.0
    %3949 = vmatpush2.msra.mxu0 0.0
    %3950 = vmatprep.subr.mxu0 0.0
    %3951 = vmatpush2.msra.mxu0 0.0
    %3952 = vmatprep.subr.mxu0 0.0
    %3953 = vmatpush2.msra.mxu0 0.0
    %3954 = vmatprep.subr.mxu0 0.0
    %3955 = vmatpush2.msra.mxu0 0.0
    %3956 = vmatprep.subr.mxu0 0.0
    %3957 = vmatpush2.msra.mxu0 0.0
    %3958 = vmatprep.subr.mxu0 0.0
    %3959 = vmatpush2.msra.mxu0 0.0
    %3960 = vmatprep.subr.mxu0 0.0
    %3961 = vmatpush2.msra.mxu0 0.0
    %3962 = vmatprep.mubr.f32.mxu0 0.0
    %3963 = vmatmul.mubr.f32.gmra.mxu0 %v3896
    %v3964 = vpop.f32.mrf.mxu0
    %v3965 = vadd.f32 0.0, %v3964
    %v3966 = vpop.f32.mrf.mxu0
    %3967 = vdwg.mxu0
    %v3970 = vunpack.c.l.s4 1966171168
    %v3971 = vunpack.c.0.s8 %v3970
    %v3972 = vlaneseq
    %v3973 = vshrl.u32 %v3972, 7
    %v3974 = vsub.s32 %v3971, %v3973
    %v3975 = vrot.slane %v3965, %v3974
    %v3976 = vcombine.high %v3975, %v3975
    %v3978 = vunpack.c.l.s4 1966171168
    %v3979 = vunpack.c.0.s8 %v3978
    %v3980 = vlaneseq
    %v3981 = vshrl.u32 %v3980, 7
    %v3982 = vsub.s32 %v3979, %v3981
    %v3983 = vrot.slane %v3975, %v3982
    %v3985 = vunpack.c.l.s4 1966171168
    %v3986 = vunpack.c.0.s8 %v3985
    %v3987 = vlaneseq
    %v3988 = vshrl.u32 %v3987, 7
    %v3989 = vsub.s32 %v3986, %v3988
    %v3990 = vrot.slane %v3976, %v3989
    %v3991 = vlaneseq
    %v3992 = vshrl.u32 %v3991, 7
    %v3993 = vsub.s32 0, %v3992
    %v3994 = vrot.slane %v3983, %v3993
    %v3995 = vlaneseq
    %v3996 = vshrl.u32 %v3995, 7
    %v3997 = vsub.s32 0, %v3996
    %v3998 = vrot.slane %v3990, %v3997
    %v4001 = vmul.f32 %v45, %v3994
    %v4002 = vmul.f32 %v46, %v3994
    %v4003 = vmul.f32 %v47, %v3994
    %v4004 = vmul.f32 %v48, %v3994
    %v4005 = vmul.f32 %v49, %v3998
    %v4006 = vmul.f32 %v50, %v3998
    %v4007 = vmul.f32 %v51, %v3998
    %v4008 = vmul.f32 %v52, %v3998
    %v4009 = vsel %vm80, %v4001, 0.0
    %4010 = vadd.xlane.f32.xlu0 %v4009
    %v4011 = vpop.xlane.xlu0 %4010
    %v4012 = vsel %vm80, %v4002, 0.0
    %4013 = vadd.xlane.f32.xlu0 %v4012
    %v4014 = vpop.xlane.xlu0 %4013
    %v4015 = vsel %vm80, %v4003, 0.0
    %4016 = vadd.xlane.f32.xlu0 %v4015
    %v4017 = vpop.xlane.xlu0 %4016
    %v4018 = vsel %vm80, %v4004, 0.0
    %4019 = vadd.xlane.f32.xlu0 %v4018
    %v4020 = vpop.xlane.xlu0 %4019
    %v4021 = vsel %vm80, %v4005, 0.0
    %4022 = vadd.xlane.f32.xlu0 %v4021
    %v4023 = vpop.xlane.xlu0 %4022
    %v4024 = vsel %vm80, %v4006, 0.0
    %4025 = vadd.xlane.f32.xlu0 %v4024
    %v4026 = vpop.xlane.xlu0 %4025
    %v4027 = vsel %vm80, %v4007, 0.0
    %4028 = vadd.xlane.f32.xlu0 %v4027
    %v4029 = vpop.xlane.xlu0 %4028
    %v4030 = vsel %vm80, %v4008, 0.0
    %4031 = vadd.xlane.f32.xlu0 %v4030
    %v4032 = vpop.xlane.xlu0 %4031
    %v4033 = vadd.f32 %v4011, %v226
    %v4034 = vadd.f32 %v4014, %v230
    %v4035 = vadd.f32 %v4017, %v234
    %v4036 = vadd.f32 %v4020, %v238
    %v4037 = vadd.f32 %v4023, %v245
    %v4038 = vadd.f32 %v4026, %v249
    %v4039 = vadd.f32 %v4029, %v253
    %v4040 = vadd.f32 %v4032, %v257
    %4049 = vset.pattern.permute.xlu0 0
    %4050 = vperm.xlu0 %4049, %v4033
    %v4051 = vpop.permute.xlu0 %4050
    %4052 = vset.pattern.permute.xlu0 0
    %4053 = vperm.xlu0 %4052, %v4034
    %v4054 = vpop.permute.xlu0 %4053
    %4055 = vset.pattern.permute.xlu0 0
    %4056 = vperm.xlu0 %4055, %v4035
    %v4057 = vpop.permute.xlu0 %4056
    %4058 = vset.pattern.permute.xlu0 0
    %4059 = vperm.xlu0 %4058, %v4036
    %v4060 = vpop.permute.xlu0 %4059
    %4061 = vset.pattern.permute.xlu0 0
    %4062 = vperm.xlu0 %4061, %v4037
    %v4063 = vpop.permute.xlu0 %4062
    %4064 = vset.pattern.permute.xlu0 0
    %4065 = vperm.xlu0 %4064, %v4038
    %v4066 = vpop.permute.xlu0 %4065
    %4067 = vset.pattern.permute.xlu0 0
    %4068 = vperm.xlu0 %4067, %v4039
    %v4069 = vpop.permute.xlu0 %4068
    %4070 = vset.pattern.permute.xlu0 0
    %4071 = vperm.xlu0 %4070, %v4040
    %v4072 = vpop.permute.xlu0 %4071
    %v4073 = vlaneseq
    %v4074 = vshrl.u32 %v4073, 7
    %v4075 = vsub.s32 %v307, %v4074
    %v4076 = vrot.slane %v4051, %v4075
    %v4077 = vlaneseq
    %v4078 = vshrl.u32 %v4077, 7
    %v4079 = vsub.s32 %v312, %v4078
    %v4080 = vrot.slane %v4054, %v4079
    %v4081 = vsel %vm317, %v4080, %v4076
    %v4082 = vlaneseq
    %v4083 = vshrl.u32 %v4082, 7
    %v4084 = vsub.s32 %v319, %v4083
    %v4085 = vrot.slane %v4057, %v4084
    %v4086 = vsel %vm324, %v4085, %v4081
    %v4087 = vlaneseq
    %v4088 = vshrl.u32 %v4087, 7
    %v4089 = vsub.s32 %v326, %v4088
    %v4090 = vrot.slane %v4060, %v4089
    %v4091 = vsel %vm331, %v4090, %v4086
    %v4092 = vlaneseq
    %v4093 = vshrl.u32 %v4092, 7
    %v4094 = vsub.s32 %v307, %v4093
    %v4095 = vrot.slane %v4063, %v4094
    %v4096 = vlaneseq
    %v4097 = vshrl.u32 %v4096, 7
    %v4098 = vsub.s32 %v312, %v4097
    %v4099 = vrot.slane %v4066, %v4098
    %v4100 = vsel %vm317, %v4099, %v4095
    %v4101 = vlaneseq
    %v4102 = vshrl.u32 %v4101, 7
    %v4103 = vsub.s32 %v319, %v4102
    %v4104 = vrot.slane %v4069, %v4103
    %v4105 = vsel %vm324, %v4104, %v4100
    %v4106 = vlaneseq
    %v4107 = vshrl.u32 %v4106, 7
    %v4108 = vsub.s32 %v326, %v4107
    %v4109 = vrot.slane %v4072, %v4108
    %v4110 = vsel %vm331, %v4109, %v4105
    %v4111 = vsel %vm352, %v4110, %v4091
    %v4113 = vsel %vm355, %v4111, -inf
    %4114 = vmax.xlane.f32.xlu0 %v4113
    %v4115 = vpop.xlane.xlu0 %4114
    %v4117 = vlaneseq
    %v4118 = vshrl.u32 %v4117, 7
    %v4119 = vsub.s32 0, %v4118
    %v4120 = vrot.slane %v4115, %v4119
    %v4121 = vlaneseq
    %v4122 = vshrl.u32 %v4121, 7
    %v4123 = vsub.s32 1, %v4122
    %v4124 = vrot.slane %v4115, %v4123
    %v4127 = vsub.f32 %v4033, %v4120
    %v4128 = vsub.f32 %v4034, %v4120
    %v4129 = vsub.f32 %v4035, %v4120
    %v4130 = vsub.f32 %v4036, %v4120
    %v4131 = vsub.f32 %v4037, %v4124
    %v4132 = vsub.f32 %v4038, %v4124
    %v4133 = vsub.f32 %v4039, %v4124
    %v4134 = vsub.f32 %v4040, %v4124
    %v4135 = vmul.f32 %v4127, 1.442695
    %v4136 = vpow.pop %v4135
    %v4137 = vmul.f32 %v4128, 1.442695
    %v4138 = vpow.pop %v4137
    %v4139 = vmul.f32 %v4129, 1.442695
    %v4140 = vpow.pop %v4139
    %v4141 = vmul.f32 %v4130, 1.442695
    %v4142 = vpow.pop %v4141
    %v4143 = vmul.f32 %v4131, 1.442695
    %v4144 = vpow.pop %v4143
    %v4145 = vmul.f32 %v4132, 1.442695
    %v4146 = vpow.pop %v4145
    %v4147 = vmul.f32 %v4133, 1.442695
    %v4148 = vpow.pop %v4147
    %v4149 = vmul.f32 %v4134, 1.442695
    %v4150 = vpow.pop %v4149
    %4159 = vset.pattern.permute.xlu0 0
    %4160 = vperm.xlu0 %4159, %v4136
    %v4161 = vpop.permute.xlu0 %4160
    %4162 = vset.pattern.permute.xlu0 0
    %4163 = vperm.xlu0 %4162, %v4138
    %v4164 = vpop.permute.xlu0 %4163
    %4165 = vset.pattern.permute.xlu0 0
    %4166 = vperm.xlu0 %4165, %v4140
    %v4167 = vpop.permute.xlu0 %4166
    %4168 = vset.pattern.permute.xlu0 0
    %4169 = vperm.xlu0 %4168, %v4142
    %v4170 = vpop.permute.xlu0 %4169
    %4171 = vset.pattern.permute.xlu0 0
    %4172 = vperm.xlu0 %4171, %v4144
    %v4173 = vpop.permute.xlu0 %4172
    %4174 = vset.pattern.permute.xlu0 0
    %4175 = vperm.xlu0 %4174, %v4146
    %v4176 = vpop.permute.xlu0 %4175
    %4177 = vset.pattern.permute.xlu0 0
    %4178 = vperm.xlu0 %4177, %v4148
    %v4179 = vpop.permute.xlu0 %4178
    %4180 = vset.pattern.permute.xlu0 0
    %4181 = vperm.xlu0 %4180, %v4150
    %v4182 = vpop.permute.xlu0 %4181
    %v4183 = vlaneseq
    %v4184 = vshrl.u32 %v4183, 7
    %v4185 = vsub.s32 %v307, %v4184
    %v4186 = vrot.slane %v4161, %v4185
    %v4187 = vlaneseq
    %v4188 = vshrl.u32 %v4187, 7
    %v4189 = vsub.s32 %v312, %v4188
    %v4190 = vrot.slane %v4164, %v4189
    %v4191 = vsel %vm317, %v4190, %v4186
    %v4192 = vlaneseq
    %v4193 = vshrl.u32 %v4192, 7
    %v4194 = vsub.s32 %v319, %v4193
    %v4195 = vrot.slane %v4167, %v4194
    %v4196 = vsel %vm324, %v4195, %v4191
    %v4197 = vlaneseq
    %v4198 = vshrl.u32 %v4197, 7
    %v4199 = vsub.s32 %v326, %v4198
    %v4200 = vrot.slane %v4170, %v4199
    %v4201 = vsel %vm331, %v4200, %v4196
    %v4202 = vlaneseq
    %v4203 = vshrl.u32 %v4202, 7
    %v4204 = vsub.s32 %v307, %v4203
    %v4205 = vrot.slane %v4173, %v4204
    %v4206 = vlaneseq
    %v4207 = vshrl.u32 %v4206, 7
    %v4208 = vsub.s32 %v312, %v4207
    %v4209 = vrot.slane %v4176, %v4208
    %v4210 = vsel %vm317, %v4209, %v4205
    %v4211 = vlaneseq
    %v4212 = vshrl.u32 %v4211, 7
    %v4213 = vsub.s32 %v319, %v4212
    %v4214 = vrot.slane %v4179, %v4213
    %v4215 = vsel %vm324, %v4214, %v4210
    %v4216 = vlaneseq
    %v4217 = vshrl.u32 %v4216, 7
    %v4218 = vsub.s32 %v326, %v4217
    %v4219 = vrot.slane %v4182, %v4218
    %v4220 = vsel %vm331, %v4219, %v4215
    %v4221 = vsel %vm352, %v4220, %v4201
    %v4223 = vsel %vm355, %v4221, 0.0
    %4224 = vadd.xlane.f32.xlu0 %v4223
    %v4225 = vpop.xlane.xlu0 %4224
    %v4226 = vrcp.pop %v4225
    %v4228 = vlaneseq
    %v4229 = vshrl.u32 %v4228, 7
    %v4230 = vsub.s32 0, %v4229
    %v4231 = vrot.slane %v4226, %v4230
    %v4232 = vlaneseq
    %v4233 = vshrl.u32 %v4232, 7
    %v4234 = vsub.s32 1, %v4233
    %v4235 = vrot.slane %v4226, %v4234
    %v4238 = vmul.f32 %v4136, %v4231
    %v4239 = vmul.f32 %v4138, %v4231
    %v4240 = vmul.f32 %v4140, %v4231
    %v4241 = vmul.f32 %v4142, %v4231
    %v4242 = vmul.f32 %v4144, %v4235
    %v4243 = vmul.f32 %v4146, %v4235
    %v4244 = vmul.f32 %v4148, %v4235
    %v4245 = vmul.f32 %v4150, %v4235
    %4247 = vset.pattern.permute.xlu0 0
    %4248 = vperm.xlu0 %4247, %v4238
    %v4249 = vpop.permute.xlu0 %4248
    %4252 = vset.pattern.permute.xlu0 0
    %4253 = vperm.xlu0 %4252, %v4239
    %v4254 = vpop.permute.xlu0 %4253
    %4257 = vset.pattern.permute.xlu0 0
    %4258 = vperm.xlu0 %4257, %v4240
    %v4259 = vpop.permute.xlu0 %4258
    %4262 = vset.pattern.permute.xlu0 0
    %4263 = vperm.xlu0 %4262, %v4241
    %v4264 = vpop.permute.xlu0 %4263
    %4267 = vset.pattern.permute.xlu0 0
    %4268 = vperm.xlu0 %4267, %v4242
    %v4269 = vpop.permute.xlu0 %4268
    %4272 = vset.pattern.permute.xlu0 0
    %4273 = vperm.xlu0 %4272, %v4243
    %v4274 = vpop.permute.xlu0 %4273
    %4277 = vset.pattern.permute.xlu0 0
    %4278 = vperm.xlu0 %4277, %v4244
    %v4279 = vpop.permute.xlu0 %4278
    %4282 = vset.pattern.permute.xlu0 0
    %4283 = vperm.xlu0 %4282, %v4245
    %v4284 = vpop.permute.xlu0 %4283
    %v4286 = vmul.f32 %v4249, %v45
    %v4287 = vmul.f32 %v4254, %v46
    %v4288 = vmul.f32 %v4259, %v47
    %v4289 = vmul.f32 %v4264, %v48
    %v4290 = vmul.f32 %v4269, %v49
    %v4291 = vmul.f32 %v4274, %v50
    %v4292 = vmul.f32 %v4279, %v51
    %v4293 = vmul.f32 %v4284, %v52
    %v4294 = vsel %vm80, %v4286, 0.0
    %v4295 = vsel %vm80, %v4287, 0.0
    %v4296 = vadd.f32 %v4294, %v4295
    %v4297 = vsel %vm80, %v4288, 0.0
    %v4298 = vadd.f32 %v4296, %v4297
    %v4299 = vsel %vm80, %v4289, 0.0
    %v4300 = vadd.f32 %v4298, %v4299
    %v4301 = vrot.slane %v4300, 4
    %v4302 = vadd.f32 %v4300, %v4301
    %v4303 = vrot.slane %v4302, 2
    %v4304 = vadd.f32 %v4302, %v4303
    %v4305 = vrot.slane %v4304, 1
    %v4306 = vadd.f32 %v4304, %v4305
    %v4307 = vsel %vm80, %v4290, 0.0
    %v4308 = vsel %vm80, %v4291, 0.0
    %v4309 = vadd.f32 %v4307, %v4308
    %v4310 = vsel %vm80, %v4292, 0.0
    %v4311 = vadd.f32 %v4309, %v4310
    %v4312 = vsel %vm80, %v4293, 0.0
    %v4313 = vadd.f32 %v4311, %v4312
    %v4314 = vrot.slane %v4313, 4
    %v4315 = vadd.f32 %v4313, %v4314
    %v4316 = vrot.slane %v4315, 2
    %v4317 = vadd.f32 %v4315, %v4316
    %v4318 = vrot.slane %v4317, 1
    %v4319 = vadd.f32 %v4317, %v4318
    %v4322 = vsel %vm352, %v4319, %v4306
    %4323 = vrot.lane.b32.xlu0 %v4322, 8
    %v4324 = vpop.permute.xlu0 %4323
    %4326 = vrot.lane.b32.xlu0 %v3803, 72
    %v4327 = vpop.permute.xlu0 %4326
    %v4329 = vsel %vm569, %v3895, %v4324
    %v4330 = vsel %vm571, %v4329, %v4327
    %v4332 = vsel %vm579, %v4330, 0
    %4334 = vmatprep.subr.mxu0 0.0
    %4335 = vmatpush1.msra.mxu0 0.0
    %4336 = vmatprep.subr.mxu0 0.0
    %4337 = vmatpush1.msra.mxu0 0.0
    %4338 = vmatprep.subr.mxu0 0.0
    %4339 = vmatpush1.msra.mxu0 0.0
    %4340 = vmatprep.subr.mxu0 0.0
    %4341 = vmatpush1.msra.mxu0 0.0
    %4342 = vmatprep.subr.mxu0 0.0
    %4343 = vmatpush1.msra.mxu0 0.0
    %4344 = vmatprep.subr.mxu0 0.0
    %4345 = vmatpush1.msra.mxu0 0.0
    %4346 = vmatprep.subr.mxu0 0.0
    %4347 = vmatpush1.msra.mxu0 0.0
    %4348 = vmatprep.subr.mxu0 0.0
    %4349 = vmatpush1.msra.mxu0 %v66
    %4350 = vmatprep.subr.mxu0 0.0
    %4351 = vmatpush1.msra.mxu0 %v65
    %4352 = vmatprep.subr.mxu0 0.0
    %4353 = vmatpush1.msra.mxu0 %v64
    %4354 = vmatprep.subr.mxu0 0.0
    %4355 = vmatpush1.msra.mxu0 %v63
    %4356 = vmatprep.subr.mxu0 0.0
    %4357 = vmatpush1.msra.mxu0 %v62
    %4358 = vmatprep.subr.mxu0 0.0
    %4359 = vmatpush1.msra.mxu0 %v61
    %4360 = vmatprep.subr.mxu0 0.0
    %4361 = vmatpush1.msra.mxu0 %v60
    %4362 = vmatprep.subr.mxu0 0.0
    %4363 = vmatpush1.msra.mxu0 %v59
    %4364 = vmatprep.subr.mxu0 0.0
    %4365 = vmatpush1.msra.mxu0 %v58
    %4366 = vmatprep.subr.mxu0 0.0
    %4367 = vmatpush2.msra.mxu0 0.0
    %4368 = vmatprep.subr.mxu0 0.0
    %4369 = vmatpush2.msra.mxu0 0.0
    %4370 = vmatprep.subr.mxu0 0.0
    %4371 = vmatpush2.msra.mxu0 0.0
    %4372 = vmatprep.subr.mxu0 0.0
    %4373 = vmatpush2.msra.mxu0 0.0
    %4374 = vmatprep.subr.mxu0 0.0
    %4375 = vmatpush2.msra.mxu0 0.0
    %4376 = vmatprep.subr.mxu0 0.0
    %4377 = vmatpush2.msra.mxu0 0.0
    %4378 = vmatprep.subr.mxu0 0.0
    %4379 = vmatpush2.msra.mxu0 0.0
    %4380 = vmatprep.subr.mxu0 0.0
    %4381 = vmatpush2.msra.mxu0 0.0
    %4382 = vmatprep.subr.mxu0 0.0
    %4383 = vmatpush2.msra.mxu0 0.0
    %4384 = vmatprep.subr.mxu0 0.0
    %4385 = vmatpush2.msra.mxu0 0.0
    %4386 = vmatprep.subr.mxu0 0.0
    %4387 = vmatpush2.msra.mxu0 0.0
    %4388 = vmatprep.subr.mxu0 0.0
    %4389 = vmatpush2.msra.mxu0 0.0
    %4390 = vmatprep.subr.mxu0 0.0
    %4391 = vmatpush2.msra.mxu0 0.0
    %4392 = vmatprep.subr.mxu0 0.0
    %4393 = vmatpush2.msra.mxu0 0.0
    %4394 = vmatprep.subr.mxu0 0.0
    %4395 = vmatpush2.msra.mxu0 0.0
    %4396 = vmatprep.subr.mxu0 0.0
    %4397 = vmatpush2.msra.mxu0 0.0
    %4398 = vmatprep.mubr.f32.mxu0 0.0
    %4399 = vmatmul.mubr.f32.gmra.mxu0 %v4332
    %v4400 = vpop.f32.mrf.mxu0
    %v4401 = vadd.f32 %v577, %v4400
    %v4402 = vpop.f32.mrf.mxu0
    %4403 = vdwg.mxu0
    %v4404 = vxor.u32 %v4401, 2147483648
    %v4405 = vmul.f32 %v4404, 1.442695
    %v4406 = vpow.pop %v4405
    %v4407 = vadd.f32 %v4406, 1.0
    %v4408 = vrcp.pop %v4407
    %v4409 = vmul.f32 1.0, %v4408
    %v4410 = vtanh.pop %v4401
    %v4411 = vmul.f32 %v4409, %v3797
    %4413 = vrot.lane.b32.xlu0 %v4410, 64
    %v4414 = vpop.permute.xlu0 %4413
    %v4416 = vmul.f32 %v4409, %v4414
    %4418 = vrot.lane.b32.xlu0 %v4416, 32
    %v4419 = vpop.permute.xlu0 %4418
    %v4421 = vadd.f32 %v4411, %v4419
    %v4422 = vtanh.pop %v4421
    %4424 = vrot.lane.b32.xlu0 %v4422, 64
    %v4425 = vpop.permute.xlu0 %4424
    %v4427 = vmul.f32 %v4409, %v4425
    %4429 = vrot.lane.b32.xlu0 %v4427, 32
    %v4430 = vpop.permute.xlu0 %4429
    %4432 = vrot.lane.b32.xlu0 %v4322, 32
    %v4433 = vpop.permute.xlu0 %4432
    %v4435 = vsel %vm80, %v4430, %v4433
    %v4437 = vsel %vm691, %v4435, 0
    %4439 = vmatprep.subr.mxu0 0.0
    %4440 = vmatpush1.msra.mxu0 0.0
    %4441 = vmatprep.subr.mxu0 0.0
    %4442 = vmatpush1.msra.mxu0 0.0
    %4443 = vmatprep.subr.mxu0 0.0
    %4444 = vmatpush1.msra.mxu0 0.0
    %4445 = vmatprep.subr.mxu0 0.0
    %4446 = vmatpush1.msra.mxu0 0.0
    %4447 = vmatprep.subr.mxu0 0.0
    %4448 = vmatpush1.msra.mxu0 0.0
    %4449 = vmatprep.subr.mxu0 0.0
    %4450 = vmatpush1.msra.mxu0 0.0
    %4451 = vmatprep.subr.mxu0 0.0
    %4452 = vmatpush1.msra.mxu0 0.0
    %4453 = vmatprep.subr.mxu0 0.0
    %4454 = vmatpush1.msra.mxu0 0.0
    %4455 = vmatprep.subr.mxu0 0.0
    %4456 = vmatpush1.msra.mxu0 %v75
    %4457 = vmatprep.subr.mxu0 0.0
    %4458 = vmatpush1.msra.mxu0 %v74
    %4459 = vmatprep.subr.mxu0 0.0
    %4460 = vmatpush1.msra.mxu0 %v73
    %4461 = vmatprep.subr.mxu0 0.0
    %4462 = vmatpush1.msra.mxu0 %v72
    %4463 = vmatprep.subr.mxu0 0.0
    %4464 = vmatpush1.msra.mxu0 %v71
    %4465 = vmatprep.subr.mxu0 0.0
    %4466 = vmatpush1.msra.mxu0 %v70
    %4467 = vmatprep.subr.mxu0 0.0
    %4468 = vmatpush1.msra.mxu0 %v69
    %4469 = vmatprep.subr.mxu0 0.0
    %4470 = vmatpush1.msra.mxu0 %v68
    %4471 = vmatprep.subr.mxu0 0.0
    %4472 = vmatpush2.msra.mxu0 0.0
    %4473 = vmatprep.subr.mxu0 0.0
    %4474 = vmatpush2.msra.mxu0 0.0
    %4475 = vmatprep.subr.mxu0 0.0
    %4476 = vmatpush2.msra.mxu0 0.0
    %4477 = vmatprep.subr.mxu0 0.0
    %4478 = vmatpush2.msra.mxu0 0.0
    %4479 = vmatprep.subr.mxu0 0.0
    %4480 = vmatpush2.msra.mxu0 0.0
    %4481 = vmatprep.subr.mxu0 0.0
    %4482 = vmatpush2.msra.mxu0 0.0
    %4483 = vmatprep.subr.mxu0 0.0
    %4484 = vmatpush2.msra.mxu0 0.0
    %4485 = vmatprep.subr.mxu0 0.0
    %4486 = vmatpush2.msra.mxu0 0.0
    %4487 = vmatprep.subr.mxu0 0.0
    %4488 = vmatpush2.msra.mxu0 0.0
    %4489 = vmatprep.subr.mxu0 0.0
    %4490 = vmatpush2.msra.mxu0 0.0
    %4491 = vmatprep.subr.mxu0 0.0
    %4492 = vmatpush2.msra.mxu0 0.0
    %4493 = vmatprep.subr.mxu0 0.0
    %4494 = vmatpush2.msra.mxu0 0.0
    %4495 = vmatprep.subr.mxu0 0.0
    %4496 = vmatpush2.msra.mxu0 0.0
    %4497 = vmatprep.subr.mxu0 0.0
    %4498 = vmatpush2.msra.mxu0 0.0
    %4499 = vmatprep.subr.mxu0 0.0
    %4500 = vmatpush2.msra.mxu0 0.0
    %4501 = vmatprep.subr.mxu0 0.0
    %4502 = vmatpush2.msra.mxu0 0.0
    %4503 = vmatprep.mubr.f32.mxu0 0.0
    %4504 = vmatmul.mubr.f32.gmra.mxu0 %v4437
    %v4505 = vpop.f32.mrf.mxu0
    %v4506 = vadd.f32 %v689, %v4505
    %v4507 = vpop.f32.mrf.mxu0
    %4508 = vdwg.mxu0
    %s4509 = scalar_lea.vmem %s9, 14
    %4510 = vst.msk [vmem:[%s4509] sm:$0x3] %vm77, %v4506
    // Predicated region
    $region42: #{_seq2seq_forward_jit.3} parent=1 // pred_check
      _
    $region43: #{_seq2seq_forward_jit.3} parent=1 // pred_check_branch
      %4512 = sbr.rel (0) target = $region45
    $region44: #{_seq2seq_forward_jit.3} parent=1 // pred_region
      _
    $region45: #{_seq2seq_forward_jit.3} parent=1 // pred_fallthru
      _
    // Predicated region
    $region46: #{_seq2seq_forward_jit.3} parent=1 // pred_check
      _
    $region47: #{_seq2seq_forward_jit.3} parent=1 // pred_check_branch
      %4514 = sbr.rel (0) target = $region49
    $region48: #{_seq2seq_forward_jit.3} parent=1 // pred_region
      _
    $region49: #{_seq2seq_forward_jit.3} parent=1 // pred_fallthru
      _
    %4515 = vsyncpa [#allocation3], 1

</llo_original>
